<compile_context>
chip_gen: v6e
topology: v6e:2x2x1
jax: 0.10.0
libtpu: 0.0.40
codegen_flags: <defaults>
</compile_context>

<pallas_src>
import functools
import math

import numpy as np
import jax
import jax.numpy as jnp
from jax import lax
from jax.experimental import pallas as pl
from jax.experimental.pallas import tpu as pltpu

_BACKBONE_STRIDE = 8   # TODO(synk): ResnetEncoder definition not provided; stride-8 stem placeholder.
_NEG_BIG = -1e30


# ----------------------- cached host-side constants -----------------------

@functools.lru_cache(maxsize=None)
def _conv3x3_constants(h, w, nb, d):
    """Static tap offsets and a (nb*h*w, 9*d) zero-padding validity mask."""
    l = h * w
    ys, xs = np.meshgrid(np.arange(h), np.arange(w), indexing="ij")
    cols, offsets = [], []
    for dy in (-1, 0, 1):
        for dx in (-1, 0, 1):
            valid = ((ys + dy >= 0) & (ys + dy < h) &
                     (xs + dx >= 0) & (xs + dx < w)).reshape(l, 1)
            cols.append(np.broadcast_to(valid, (l, d)))
            offsets.append(dy * w + dx)
    base = np.concatenate(cols, axis=1).astype(np.float32)      # (L, 9d)
    return jnp.asarray(np.tile(base, (nb, 1))), tuple(offsets)  # (nb*L, 9d)


@functools.lru_cache(maxsize=None)
def _mesh_grid(h, w, stride, nb):
    xs = np.arange(w, dtype=np.float32)
    ys = np.arange(h, dtype=np.float32)
    gx, gy = np.meshgrid(xs, ys)
    coord = ((np.stack([gx, gy], axis=-1) + 0.5) * float(stride)).reshape(h * w, 2)
    return jnp.asarray(np.tile(coord, (nb, 1)))                  # (nb*L, 2) = (x, y)


@functools.lru_cache(maxsize=None)
def _pos_encoding_sine(d_model, h, w, nb):
    # TODO(synk): PositionEncodingSine definition not provided; LoFTR-style sine PE.
    pe = np.zeros((d_model, h, w), np.float32)
    y_pos = np.cumsum(np.ones((h, w), np.float32), axis=0) - 1.0
    x_pos = np.cumsum(np.ones((h, w), np.float32), axis=1) - 1.0
    div = np.exp(np.arange(0, d_model // 2, 2, dtype=np.float32)
                 * (-np.log(10000.0) / (d_model // 2)))
    pe[0::4] = np.sin(x_pos[None] * div[:, None, None])
    pe[1::4] = np.cos(x_pos[None] * div[:, None, None])
    pe[2::4] = np.sin(y_pos[None] * div[:, None, None])
    pe[3::4] = np.cos(y_pos[None] * div[:, None, None])
    base = pe.transpose(1, 2, 0).reshape(h * w, d_model)
    return jnp.asarray(np.tile(base, (nb, 1)))                   # (nb*L, d)


# ------------------------------ Pallas kernel -------------------------------

def _per_sample_softmax(score, sel_bool, sel_f):
    """Independent softmax over each sample's rows.  score:(R,1), sel:(R,nb) block-diag."""
    cols = jnp.where(sel_bool, score, _NEG_BIG)                  # (R, nb)
    m = jnp.max(cols, axis=0, keepdims=True)                     # (1, nb)
    e = jnp.exp(cols - m) * sel_f                                # (R, nb)
    den = jnp.sum(e, axis=0, keepdims=True)                      # (1, nb)
    e_own = jnp.sum(e, axis=1, keepdims=True)                    # (R, 1)
    den_own = jnp.sum(sel_f * den, axis=1, keepdims=True)        # (R, 1)
    return e_own / den_own                                       # exact normalization


def _oetr_fused_kernel(fcat_ref, pos_ref, q_ref, mask_ref, coord_ref,
                       wslab_ref, tw2_ref, pvec_ref, out_ref,
                       *, nb, l, d, n_total, shifts, eps=1e-5):
    r = nb * l
    inv_sqrt_d = 1.0 / math.sqrt(d)
    g = pl.program_id(0)

    # --- unpack packed small params / weight slab (static, tile-aligned slices) ---
    pvec = pvec_ref[...]                         # (8, d)
    b2_proj = pvec[0:1]                          # (1, d)  input_proj2 bias
    b1_conv = pvec[1:2]                          # (1, d)  heatmap conv3x3 bias
    gamma = pvec[2:3]                            # (1, d)  GroupNorm gamma
    beta = pvec[3:4]                             # (1, d)  GroupNorm beta
    w2h = pvec[4:5]                              # (1, d)  heatmap 1x1 conv row
    tb2 = pvec[5:6, 0:4]                         # (1, 4)  tlbr final bias

    wsl = wslab_ref[...]                         # (12d, d)
    w_proj2 = wsl[0:2 * d]                       # (2d, d)
    w_conv = wsl[2 * d:11 * d]                   # (9d, d)
    tw1 = wsl[11 * d:12 * d]                     # (d, d)

    # --- per-sample block-diagonal selectors (built on the VPU, no int division) ---
    ridx = lax.broadcasted_iota(jnp.int32, (r, nb), 0)
    cidx = lax.broadcasted_iota(jnp.int32, (r, nb), 1)
    sel_bool = (ridx >= cidx * l) & (ridx < cidx * l + l)        # (R, nb)
    sel = sel_bool.astype(jnp.float32)
    rT = lax.broadcasted_iota(jnp.int32, (nb, r), 0)
    cT = lax.broadcasted_iota(jnp.int32, (nb, r), 1)
    selT = ((cT >= rT * l) & (cT < rT * l + l)).astype(jnp.float32)   # (nb, R)
    # row -> global query index (this program owns samples [g*nb, g*nb+nb)).
    grow = lax.broadcasted_iota(jnp.int32, (r, n_total), 0)
    gcol = lax.broadcasted_iota(jnp.int32, (r, n_total), 1)
    base = (gcol - g * nb) * l
    pick = ((grow >= base) & (grow < base + l)).astype(jnp.float32)   # (R, N)

    # --- input_proj2 (PatchMerging channel-doubling pre-concatenated by wrapper) ---
    feat = jnp.dot(fcat_ref[...], w_proj2,
                   preferred_element_type=jnp.float32) + b2_proj      # (R, d)

    # --- simplified single-head cross attention over each sample's L tokens ---
    # TODO(synk): QueryTransformer (nhead=8, num_layers=4) definition not provided.
    q_rows = jnp.dot(pick, q_ref[...], preferred_element_type=jnp.float32)   # (R, d)
    k = feat + pos_ref[...]
    score = jnp.sum(k * q_rows, axis=-1, keepdims=True) * inv_sqrt_d         # (R, 1)
    p_att = _per_sample_softmax(score, sel_bool, sel)                        # (R, 1)
    hs = jnp.dot(selT, p_att * feat, preferred_element_type=jnp.float32)     # (nb, d)

    # --- center estimation ---
    hs_rows = jnp.dot(sel, hs, preferred_element_type=jnp.float32)           # (R, d)
    att = jnp.sum(feat * hs_rows, axis=-1, keepdims=True)                    # (R, 1)
    weighted = feat * att                                                    # (R, d)
    # 3x3 conv (padding=1) as ONE K=9*d matmul over XLU-rolled, edge-masked taps.
    # Cross-sample / cross-row wraps of the flat roll are exactly the positions
    # zeroed by the validity mask, so the flattened roll is equivalent.
    taps = jnp.concatenate(
        [weighted if s == 0 else pltpu.roll(weighted, s, 0) for s in shifts],
        axis=1)                                                              # (R, 9d)
    taps = taps * mask_ref[...]
    x = jnp.dot(taps, w_conv, preferred_element_type=jnp.float32) + b1_conv  # (R, d)

    # GroupNorm(32, d=32): one channel per group -> per-sample per-channel spatial norm.
    meanb = jnp.dot(selT, x, preferred_element_type=jnp.float32) * (1.0 / l)     # (nb, d)
    msqb = jnp.dot(selT, x * x, preferred_element_type=jnp.float32) * (1.0 / l)  # (nb, d)
    varb = jnp.maximum(msqb - meanb * meanb, 0.0)
    a2 = lax.rsqrt(varb + eps) * gamma                                       # (nb, d)
    c2 = beta - meanb * a2                                                   # (nb, d)
    x = x * jnp.dot(sel, a2, preferred_element_type=jnp.float32) \
          + jnp.dot(sel, c2, preferred_element_type=jnp.float32)
    x = jnp.maximum(x, 0.0)

    # heatmap 1x1 conv as a VPU lane reduce (its bias is spatially constant and the
    # heatmap is consumed only through a spatial softmax, so it cancels exactly).
    heat = jnp.sum(x * w2h, axis=-1, keepdims=True)                          # (R, 1)
    prob = _per_sample_softmax(heat, sel_bool, sel)                          # (R, 1)
    cxy = jnp.dot(selT, prob * coord_ref[...],
                  preferred_element_type=jnp.float32)                        # (nb, 2)

    # --- tlbr regression: Linear(no bias) -> ReLU -> Linear -> sigmoid ---
    h1 = jnp.maximum(jnp.dot(hs, tw1, preferred_element_type=jnp.float32), 0.0)
    t = jnp.dot(h1, tw2_ref[...], preferred_element_type=jnp.float32) + tb2  # (nb, 4)
    tlbr = 1.0 / (1.0 + jnp.exp(-t))

    # Lane-packed output: [cx, cy, t, l, b, r, 0, 0] per sample.
    out_ref[0] = jnp.concatenate(
        [cxy, tlbr, jnp.zeros((nb, 2), jnp.float32)], axis=1)                # (nb, 8)


# ------------------------------ kernel wrapper ------------------------------

def _fused_overlap_head(fcat2, pos_t, q_full, mask_t, coord_t, wslab, tw2, pvec,
                        *, num_programs, nb, l, d, shifts):
    n_total = q_full.shape[0]
    r = nb * l
    kernel = functools.partial(_oetr_fused_kernel, nb=nb, l=l, d=d,
                               n_total=n_total, shifts=shifts)
    out = pl.pallas_call(
        kernel,
        out_shape=jax.ShapeDtypeStruct((num_programs, nb, 8), jnp.float32),
        grid=(num_programs,),
        in_specs=[
            pl.BlockSpec((r, 2 * d), lambda g: (g, 0)),      # fcat rows for this program
            pl.BlockSpec((r, d), lambda g: (0, 0)),          # tiled positional encoding
            pl.BlockSpec((n_total, d), lambda g: (0, 0)),    # all query embeddings
            pl.BlockSpec((r, 9 * d), lambda g: (0, 0)),      # conv3x3 tap validity mask
            pl.BlockSpec((r, 2), lambda g: (0, 0)),          # tiled mesh-grid coords
            pl.BlockSpec((12 * d, d), lambda g: (0, 0)),     # packed weight slab
            pl.BlockSpec((d, 4), lambda g: (0, 0)),          # tlbr W2
            pl.BlockSpec((8, d), lambda g: (0, 0)),          # packed small params
        ],
        out_specs=pl.BlockSpec((1, nb, 8), lambda g: (g, 0, 0)),
        compiler_params=pltpu.CompilerParams(dimension_semantics=("parallel",)),
    )(fcat2, pos_t, q_full, mask_t, coord_t, wslab, tw2, pvec)
    return out.reshape(num_programs * nb, 8)


# ------------------------------ plain-JAX glue ------------------------------

def _predict_stream(images, q_full, params, h_img):
    """Backbone placeholder + one fused Pallas kernel for a batched stream."""
    n, h, w, cin = images.shape
    s = _BACKBONE_STRIDE
    hf, wf = h // s, w // s
    l = hf * wf
    d = params['proj_w'].shape[1]

    # 2 grid programs (v7x megacore) when the halves tile cleanly, else 1.
    num_programs = 2 if (n >= 2 and n % 2 == 0 and ((n // 2) * l) % 8 == 0) else 1
    nb = n // num_programs
    r = nb * l

    # TODO(synk): ResnetEncoder definition not provided; stride-8 average-pool stem placeholder.
    pooled = images.reshape(n, hf, s, wf, s, cin).mean(axis=(2, 4))          # (N, hf, wf, Cin)
    # Fold stem 1x1 conv + input_proj (both linear) into one tiny XLA matmul
    # right after the pooling reduce (removes the K=3 in-kernel matmul).
    wa = params['bb_w'] @ params['proj_w']                                   # (Cin, d)
    ba = params['bb_b'] @ params['proj_w'] + params['proj_b']                # (d,)
    f = pooled.reshape(n, l, cin) @ wa + ba                                  # (N, L, d)
    # TODO(synk): PatchMerging definition not provided; vertical-roll channel-doubling
    # placeholder, pre-concatenated so input_proj2 is a single K=2d contraction.
    f_roll = jnp.roll(f.reshape(n, hf, wf, d), shift=1, axis=1).reshape(n, l, d)
    fcat2 = jnp.concatenate([f, f_roll], axis=-1).reshape(n * l, 2 * d)      # (N*L, 2d)

    pos_t = _pos_encoding_sine(d, hf, wf, nb)                                # (R, d)
    mask_t, offsets = _conv3x3_constants(hf, wf, nb, d)                      # (R, 9d)
    coord_t = _mesh_grid(hf, wf, h_img // hf, nb)                            # (R, 2)
    shifts = tuple((-off) % r for off in offsets)

    # Packed weight slab and small-parameter rows (single lane-dense operands).
    wslab = jnp.concatenate([params['proj2_w'],
                             params['hm_w1'].reshape(9 * d, d),
                             params['tlbr_w1']], axis=0)                     # (12d, d)
    pvec = jnp.zeros((8, d), jnp.float32)
    pvec = pvec.at[0].set(params['proj2_b'])
    pvec = pvec.at[1].set(params['hm_b1'])
    pvec = pvec.at[2].set(params['hm_gamma'])
    pvec = pvec.at[3].set(params['hm_beta'])
    pvec = pvec.at[4].set(params['hm_w2'].reshape(d))
    pvec = pvec.at[5, 0:4].set(params['tlbr_b2'])
    # NOTE: params['hm_b2'] is constant over spatial positions and the heatmap is
    # only consumed via a spatial softmax, so it cancels exactly and is not passed.

    out = _fused_overlap_head(fcat2.astype(jnp.float32), pos_t,
                              q_full.astype(jnp.float32), mask_t, coord_t,
                              wslab, params['tlbr_w2'], pvec,
                              num_programs=num_programs, nb=nb, l=l, d=d,
                              shifts=shifts)
    return out[:, 0:2], out[:, 2:6]


def obtain_overlap_bbox(box_cxy1, tlbr1, box_cxy2, tlbr2, h1, w1, h2, w2):
    xyxy1 = jnp.stack([box_cxy1[:, 0] - tlbr1[:, 1] * w1,
                       box_cxy1[:, 1] - tlbr1[:, 0] * h1,
                       box_cxy1[:, 0] + tlbr1[:, 3] * w1,
                       box_cxy1[:, 1] + tlbr1[:, 2] * h1], axis=1)
    xyxy2 = jnp.stack([box_cxy2[:, 0] - tlbr2[:, 1] * w2,
                       box_cxy2[:, 1] - tlbr2[:, 0] * h2,
                       box_cxy2[:, 0] + tlbr2[:, 3] * w2,
                       box_cxy2[:, 1] + tlbr2[:, 2] * h2], axis=1)
    cxywh1 = jnp.concatenate([(xyxy1[:, :2] + xyxy1[:, 2:]) / 2,
                              xyxy1[:, 2:] - xyxy1[:, :2]], axis=-1)
    cxywh2 = jnp.concatenate([(xyxy2[:, :2] + xyxy2[:, 2:]) / 2,
                              xyxy2[:, 2:] - xyxy2[:, :2]], axis=-1)
    return xyxy1, xyxy2, cxywh1, cxywh2


def _oetr_forward(image1, image2, params):
    """OETR.forward_dummy-style bbox prediction (loss modules omitted)."""
    h1, w1 = image1.shape[1:3]
    h2, w2 = image2.shape[1:3]
    b = image1.shape[0]
    d = params['proj_w'].shape[1]
    q1 = jnp.broadcast_to(params['qe1'], (b, d))
    q2 = jnp.broadcast_to(params['qe2'], (b, d))

    if image1.shape == image2.shape:
        # Both images in a single fused pass over 2B samples.
        imgs = jnp.concatenate([image1, image2], axis=0)
        q = jnp.concatenate([q1, q2], axis=0)
        cxy, tlbr = _predict_stream(imgs, q, params, h1)
        box_cxy1, box_cxy2 = cxy[:b], cxy[b:]
        tlbr1, tlbr2 = tlbr[:b], tlbr[b:]
    else:
        box_cxy1, tlbr1 = _predict_stream(image1, q1, params, h1)
        box_cxy2, tlbr2 = _predict_stream(image2, q2, params, h2)

    # TODO(synk): box_tlbr_to_xyxy / loss modules (IouOverlapLoss, bbox_overlaps,
    # bbox_oiou) definitions not provided; returning the bbox predictions only.
    return obtain_overlap_bbox(box_cxy1, tlbr1, box_cxy2, tlbr2, h1, w1, h2, w2)


oetr_forward = jax.jit(_oetr_forward)


# --------------------------------- params -----------------------------------

def init_params(key, last_layer=128):
    d_model = last_layer // 4          # 32 -> GroupNorm(32, 32) == per-channel norm
    ks = jax.random.split(key, 12)

    def nrm(k, shape, scale=0.05):
        return scale * jax.random.normal(k, shape, jnp.float32)

    return {
        'bb_w': nrm(ks[0], (3, last_layer)),
        'bb_b': jnp.zeros((last_layer,), jnp.float32),
        'proj_w': nrm(ks[1], (last_layer, d_model)),
        'proj_b': jnp.zeros((d_model,), jnp.float32),
        'proj2_w': nrm(ks[2], (2 * d_model, d_model)),
        'proj2_b': jnp.zeros((d_model,), jnp.float32),
        'qe1': nrm(ks[3], (1, d_model), 1.0),
        'qe2': nrm(ks[4], (1, d_model), 1.0),
        # heatmap_conv: conv3x3 weights stored as (9, Cin, Cout), taps in (dy, dx) row-major order
        'hm_w1': nrm(ks[5], (9, d_model, d_model)),
        'hm_b1': jnp.zeros((d_model,), jnp.float32),
        'hm_gamma': jnp.ones((d_model,), jnp.float32),
        'hm_beta': jnp.zeros((d_model,), jnp.float32),
        'hm_w2': nrm(ks[6], (d_model, 1)),
        'hm_b2': jnp.zeros((1,), jnp.float32),   # cancels under the spatial softmax
        # tlbr_reg: Linear(C,C,bias=False) -> ReLU -> Linear(C,4), stored (in, out)
        'tlbr_w1': nrm(ks[7], (d_model, d_model)),
        'tlbr_w2': nrm(ks[8], (d_model, 4)),
        'tlbr_b2': jnp.zeros((4,), jnp.float32),
    }


if __name__ == "__main__":
    key = jax.random.PRNGKey(0)
    kp, k1, k2 = jax.random.split(key, 3)
    params = init_params(kp)

    B, H, W = 2, 64, 64
    image1 = jax.random.normal(k1, (B, H, W, 3), jnp.float32)
    image2 = jax.random.normal(k2, (B, H, W, 3), jnp.float32)

    xyxy1, xyxy2, cxywh1, cxywh2 = oetr_forward(image1, image2, params)
    jax.block_until_ready((xyxy1, xyxy2, cxywh1, cxywh2))

    assert xyxy1.shape == (B, 4) and xyxy2.shape == (B, 4)
    assert cxywh1.shape == (B, 4) and cxywh2.shape == (B, 4)
    assert bool(jnp.all(jnp.isfinite(xyxy1))) and bool(jnp.all(jnp.isfinite(xyxy2)))
    print("KERNEL_OK")
</pallas_src>

<mosaic_0001>
module attributes {stable_mosaic.version = 11 : i64} {
  func.func @_oetr_fused_kernel(%arg0: i32, %arg1: memref<128x64xf32, #tpu.memory_space<vmem>>, %arg2: memref<128x32xf32, #tpu.memory_space<vmem>>, %arg3: memref<4x32xf32, #tpu.memory_space<vmem>>, %arg4: memref<128x288xf32, #tpu.memory_space<vmem>>, %arg5: memref<128x2xf32, #tpu.memory_space<vmem>>, %arg6: memref<384x32xf32, #tpu.memory_space<vmem>>, %arg7: memref<32x4xf32, #tpu.memory_space<vmem>>, %arg8: memref<8x32xf32, #tpu.memory_space<vmem>>, %arg9: memref<1x2x8xf32, #tpu.memory_space<vmem>>) attributes {dimension_semantics = [#tpu.dimension_semantics<parallel>], iteration_bounds = array<i64: 2>, scalar_prefetch = 0 : i64, scratch_operands = 0 : i64, tpu.core_type = #tpu.core_type<tc>, window_params = [{transform_indices = @transform_0, window_bounds = array<i64: 128, 64>}, {pipeline_mode = #tpu.pipeline_mode<synchronous>, transform_indices = @transform_1, window_bounds = array<i64: 128, 32>}, {pipeline_mode = #tpu.pipeline_mode<synchronous>, transform_indices = @transform_2, window_bounds = array<i64: 4, 32>}, {pipeline_mode = #tpu.pipeline_mode<synchronous>, transform_indices = @transform_3, window_bounds = array<i64: 128, 288>}, {pipeline_mode = #tpu.pipeline_mode<synchronous>, transform_indices = @transform_4, window_bounds = array<i64: 128, 2>}, {pipeline_mode = #tpu.pipeline_mode<synchronous>, transform_indices = @transform_5, window_bounds = array<i64: 384, 32>}, {pipeline_mode = #tpu.pipeline_mode<synchronous>, transform_indices = @transform_6, window_bounds = array<i64: 32, 4>}, {pipeline_mode = #tpu.pipeline_mode<synchronous>, transform_indices = @transform_7, window_bounds = array<i64: 8, 32>}, {transform_indices = @transform_8, window_bounds = array<i64: 1, 2, 8>}]} {
    %c0 = arith.constant 0 : index
    %c0_0 = arith.constant 0 : index
    %0 = vector.load %arg8[%c0, %c0_0] : memref<8x32xf32, #tpu.memory_space<vmem>>, vector<8x32xf32>
    %1 = vector.extract_strided_slice %0 {offsets = [0, 0], sizes = [1, 32], strides = [1, 1]} : vector<8x32xf32> to vector<1x32xf32>
    %2 = vector.extract_strided_slice %0 {offsets = [1, 0], sizes = [1, 32], strides = [1, 1]} : vector<8x32xf32> to vector<1x32xf32>
    %3 = vector.extract_strided_slice %0 {offsets = [2, 0], sizes = [1, 32], strides = [1, 1]} : vector<8x32xf32> to vector<1x32xf32>
    %4 = vector.extract_strided_slice %0 {offsets = [3, 0], sizes = [1, 32], strides = [1, 1]} : vector<8x32xf32> to vector<1x32xf32>
    %5 = vector.extract_strided_slice %0 {offsets = [4, 0], sizes = [1, 32], strides = [1, 1]} : vector<8x32xf32> to vector<1x32xf32>
    %6 = vector.extract_strided_slice %0 {offsets = [5, 0], sizes = [1, 4], strides = [1, 1]} : vector<8x32xf32> to vector<1x4xf32>
    %c0_1 = arith.constant 0 : index
    %c0_2 = arith.constant 0 : index
    %7 = vector.load %arg6[%c0_1, %c0_2] : memref<384x32xf32, #tpu.memory_space<vmem>>, vector<384x32xf32>
    %8 = vector.extract_strided_slice %7 {offsets = [0, 0], sizes = [64, 32], strides = [1, 1]} : vector<384x32xf32> to vector<64x32xf32>
    %9 = vector.extract_strided_slice %7 {offsets = [64, 0], sizes = [288, 32], strides = [1, 1]} : vector<384x32xf32> to vector<288x32xf32>
    %10 = vector.extract_strided_slice %7 {offsets = [352, 0], sizes = [32, 32], strides = [1, 1]} : vector<384x32xf32> to vector<32x32xf32>
    %11 = tpu.iota {dimensions = array<i32: 0>} : vector<128x2xi32>
    %12 = tpu.iota {dimensions = array<i32: 1>} : vector<128x2xi32>
    %c64_i32 = arith.constant 64 : i32
    %13 = vector.broadcast %c64_i32 : i32 to vector<128x2xi32>
    %14 = arith.muli %12, %13 : vector<128x2xi32>
    %15 = arith.cmpi sge, %11, %14 : vector<128x2xi32>
    %c64_i32_3 = arith.constant 64 : i32
    %16 = vector.broadcast %c64_i32_3 : i32 to vector<128x2xi32>
    %17 = arith.muli %12, %16 : vector<128x2xi32>
    %c64_i32_4 = arith.constant 64 : i32
    %18 = vector.broadcast %c64_i32_4 : i32 to vector<128x2xi32>
    %19 = arith.addi %17, %18 : vector<128x2xi32>
    %20 = arith.cmpi slt, %11, %19 : vector<128x2xi32>
    %21 = arith.andi %15, %20 : vector<128x2xi1>
    %22 = arith.extui %21 : vector<128x2xi1> to vector<128x2xi32>
    %23 = arith.sitofp %22 : vector<128x2xi32> to vector<128x2xf32>
    %24 = tpu.iota {dimensions = array<i32: 0>} : vector<2x128xi32>
    %25 = tpu.iota {dimensions = array<i32: 1>} : vector<2x128xi32>
    %c64_i32_5 = arith.constant 64 : i32
    %26 = vector.broadcast %c64_i32_5 : i32 to vector<2x128xi32>
    %27 = arith.muli %24, %26 : vector<2x128xi32>
    %28 = arith.cmpi sge, %25, %27 : vector<2x128xi32>
    %c64_i32_6 = arith.constant 64 : i32
    %29 = vector.broadcast %c64_i32_6 : i32 to vector<2x128xi32>
    %30 = arith.muli %24, %29 : vector<2x128xi32>
    %c64_i32_7 = arith.constant 64 : i32
    %31 = vector.broadcast %c64_i32_7 : i32 to vector<2x128xi32>
    %32 = arith.addi %30, %31 : vector<2x128xi32>
    %33 = arith.cmpi slt, %25, %32 : vector<2x128xi32>
    %34 = arith.andi %28, %33 : vector<2x128xi1>
    %35 = arith.extui %34 : vector<2x128xi1> to vector<2x128xi32>
    %36 = arith.sitofp %35 : vector<2x128xi32> to vector<2x128xf32>
    %37 = tpu.iota {dimensions = array<i32: 0>} : vector<128x4xi32>
    %38 = tpu.iota {dimensions = array<i32: 1>} : vector<128x4xi32>
    %c2_i32 = arith.constant 2 : i32
    %39 = arith.muli %arg0, %c2_i32 : i32
    %40 = vector.broadcast %39 : i32 to vector<128x4xi32>
    %41 = arith.subi %38, %40 : vector<128x4xi32>
    %c64_i32_8 = arith.constant 64 : i32
    %42 = vector.broadcast %c64_i32_8 : i32 to vector<128x4xi32>
    %43 = arith.muli %41, %42 : vector<128x4xi32>
    %44 = arith.cmpi sge, %37, %43 : vector<128x4xi32>
    %c64_i32_9 = arith.constant 64 : i32
    %45 = vector.broadcast %c64_i32_9 : i32 to vector<128x4xi32>
    %46 = arith.addi %43, %45 : vector<128x4xi32>
    %47 = arith.cmpi slt, %37, %46 : vector<128x4xi32>
    %48 = arith.andi %44, %47 : vector<128x4xi1>
    %49 = arith.extui %48 : vector<128x4xi1> to vector<128x4xi32>
    %50 = arith.sitofp %49 : vector<128x4xi32> to vector<128x4xf32>
    %c0_10 = arith.constant 0 : index
    %c0_11 = arith.constant 0 : index
    %51 = vector.load %arg1[%c0_10, %c0_11] : memref<128x64xf32, #tpu.memory_space<vmem>>, vector<128x64xf32>
    %cst = arith.constant dense<0.000000e+00> : vector<128x32xf32>
    %52 = tpu.matmul %51, %8, %cst {dimension_numbers = #tpu.dot_dimension_numbers<[1], [0], [0], [1], [0, 0, 1, 1], [], []>} : vector<128x64xf32>, vector<64x32xf32>, vector<128x32xf32> -> vector<128x32xf32>
    %53 = vector.broadcast %1 : vector<1x32xf32> to vector<128x32xf32>
    %54 = arith.addf %52, %53 : vector<128x32xf32>
    %c0_12 = arith.constant 0 : index
    %c0_13 = arith.constant 0 : index
    %55 = vector.load %arg3[%c0_12, %c0_13] : memref<4x32xf32, #tpu.memory_space<vmem>>, vector<4x32xf32>
    %cst_14 = arith.constant dense<0.000000e+00> : vector<128x32xf32>
    %56 = tpu.matmul %50, %55, %cst_14 {dimension_numbers = #tpu.dot_dimension_numbers<[1], [0], [0], [1], [0, 0, 1, 1], [], []>} : vector<128x4xf32>, vector<4x32xf32>, vector<128x32xf32> -> vector<128x32xf32>
    %c0_15 = arith.constant 0 : index
    %c0_16 = arith.constant 0 : index
    %57 = vector.load %arg2[%c0_15, %c0_16] : memref<128x32xf32, #tpu.memory_space<vmem>>, vector<128x32xf32>
    %58 = arith.addf %54, %57 : vector<128x32xf32>
    %59 = arith.mulf %58, %56 : vector<128x32xf32>
    %cst_17 = arith.constant dense<0.000000e+00> : vector<128xf32>
    %60 = vector.multi_reduction <add>, %59, %cst_17 [1] : vector<128x32xf32> to vector<128xf32>
    %61 = vector.shape_cast %60 : vector<128xf32> to vector<128x1xf32>
    %cst_18 = arith.constant 0.176776692 : f32
    %62 = vector.broadcast %cst_18 : f32 to vector<128x1xf32>
    %63 = arith.mulf %61, %62 : vector<128x1xf32>
    %cst_19 = arith.constant -1.000000e+30 : f32
    %64 = vector.shape_cast %63 : vector<128x1xf32> to vector<128x1xf32>
    %65 = vector.broadcast %64 : vector<128x1xf32> to vector<128x2xf32>
    %66 = vector.broadcast %cst_19 : f32 to vector<128x2xf32>
    %67 = arith.select %21, %65, %66 : vector<128x2xi1>, vector<128x2xf32>
    %cst_20 = arith.constant dense<0xFF800000> : vector<2xf32>
    %68 = vector.multi_reduction <maximumf>, %67, %cst_20 [0] : vector<128x2xf32> to vector<2xf32>
    %69 = vector.shape_cast %68 : vector<2xf32> to vector<1x2xf32>
    %70 = vector.broadcast %69 : vector<1x2xf32> to vector<128x2xf32>
    %71 = arith.subf %67, %70 : vector<128x2xf32>
    %72 = math.exp %71 : vector<128x2xf32>
    %73 = arith.mulf %72, %23 : vector<128x2xf32>
    %cst_21 = arith.constant dense<0.000000e+00> : vector<2xf32>
    %74 = vector.multi_reduction <add>, %73, %cst_21 [0] : vector<128x2xf32> to vector<2xf32>
    %75 = vector.shape_cast %74 : vector<2xf32> to vector<1x2xf32>
    %cst_22 = arith.constant dense<0.000000e+00> : vector<128xf32>
    %76 = vector.multi_reduction <add>, %73, %cst_22 [1] : vector<128x2xf32> to vector<128xf32>
    %77 = vector.shape_cast %76 : vector<128xf32> to vector<128x1xf32>
    %78 = vector.broadcast %75 : vector<1x2xf32> to vector<128x2xf32>
    %79 = arith.mulf %23, %78 : vector<128x2xf32>
    %cst_23 = arith.constant dense<0.000000e+00> : vector<128xf32>
    %80 = vector.multi_reduction <add>, %79, %cst_23 [1] : vector<128x2xf32> to vector<128xf32>
    %81 = vector.shape_cast %80 : vector<128xf32> to vector<128x1xf32>
    %82 = arith.divf %77, %81 : vector<128x1xf32>
    %83 = vector.broadcast %82 : vector<128x1xf32> to vector<128x32xf32>
    %84 = arith.mulf %83, %54 : vector<128x32xf32>
    %cst_24 = arith.constant dense<0.000000e+00> : vector<2x32xf32>
    %85 = tpu.matmul %36, %84, %cst_24 {dimension_numbers = #tpu.dot_dimension_numbers<[1], [0], [0], [1], [0, 0, 1, 1], [], []>} : vector<2x128xf32>, vector<128x32xf32>, vector<2x32xf32> -> vector<2x32xf32>
    %cst_25 = arith.constant dense<0.000000e+00> : vector<128x32xf32>
    %86 = tpu.matmul %23, %85, %cst_25 {dimension_numbers = #tpu.dot_dimension_numbers<[1], [0], [0], [1], [0, 0, 1, 1], [], []>} : vector<128x2xf32>, vector<2x32xf32>, vector<128x32xf32> -> vector<128x32xf32>
    %87 = arith.mulf %54, %86 : vector<128x32xf32>
    %cst_26 = arith.constant dense<0.000000e+00> : vector<128xf32>
    %88 = vector.multi_reduction <add>, %87, %cst_26 [1] : vector<128x32xf32> to vector<128xf32>
    %89 = vector.shape_cast %88 : vector<128xf32> to vector<128x1xf32>
    %90 = vector.broadcast %89 : vector<128x1xf32> to vector<128x32xf32>
    %91 = arith.mulf %54, %90 : vector<128x32xf32>
    %c9_i32 = arith.constant 9 : i32
    %92 = tpu.dynamic_rotate %91 by %c9_i32 dim 0 : vector<128x32xf32>, i32 -> vector<128x32xf32>
    %c8_i32 = arith.constant 8 : i32
    %93 = tpu.dynamic_rotate %91 by %c8_i32 dim 0 : vector<128x32xf32>, i32 -> vector<128x32xf32>
    %c7_i32 = arith.constant 7 : i32
    %94 = tpu.dynamic_rotate %91 by %c7_i32 dim 0 : vector<128x32xf32>, i32 -> vector<128x32xf32>
    %c1_i32 = arith.constant 1 : i32
    %95 = tpu.dynamic_rotate %91 by %c1_i32 dim 0 : vector<128x32xf32>, i32 -> vector<128x32xf32>
    %c127_i32 = arith.constant 127 : i32
    %96 = tpu.dynamic_rotate %91 by %c127_i32 dim 0 : vector<128x32xf32>, i32 -> vector<128x32xf32>
    %c121_i32 = arith.constant 121 : i32
    %97 = tpu.dynamic_rotate %91 by %c121_i32 dim 0 : vector<128x32xf32>, i32 -> vector<128x32xf32>
    %c120_i32 = arith.constant 120 : i32
    %98 = tpu.dynamic_rotate %91 by %c120_i32 dim 0 : vector<128x32xf32>, i32 -> vector<128x32xf32>
    %c119_i32 = arith.constant 119 : i32
    %99 = tpu.dynamic_rotate %91 by %c119_i32 dim 0 : vector<128x32xf32>, i32 -> vector<128x32xf32>
    %100 = tpu.concatenate %92, %93, %94, %95, %91, %96, %97, %98, %99 in 1 : vector<128x32xf32>, vector<128x32xf32>, vector<128x32xf32>, vector<128x32xf32>, vector<128x32xf32>, vector<128x32xf32>, vector<128x32xf32>, vector<128x32xf32>, vector<128x32xf32> -> vector<128x288xf32>
    %c0_27 = arith.constant 0 : index
    %c0_28 = arith.constant 0 : index
    %101 = vector.load %arg4[%c0_27, %c0_28] : memref<128x288xf32, #tpu.memory_space<vmem>>, vector<128x288xf32>
    %102 = arith.mulf %100, %101 : vector<128x288xf32>
    %cst_29 = arith.constant dense<0.000000e+00> : vector<128x32xf32>
    %103 = tpu.matmul %102, %9, %cst_29 {dimension_numbers = #tpu.dot_dimension_numbers<[1], [0], [0], [1], [0, 0, 1, 1], [], []>} : vector<128x288xf32>, vector<288x32xf32>, vector<128x32xf32> -> vector<128x32xf32>
    %104 = vector.broadcast %2 : vector<1x32xf32> to vector<128x32xf32>
    %105 = arith.addf %103, %104 : vector<128x32xf32>
    %cst_30 = arith.constant dense<0.000000e+00> : vector<2x32xf32>
    %106 = tpu.matmul %36, %105, %cst_30 {dimension_numbers = #tpu.dot_dimension_numbers<[1], [0], [0], [1], [0, 0, 1, 1], [], []>} : vector<2x128xf32>, vector<128x32xf32>, vector<2x32xf32> -> vector<2x32xf32>
    %cst_31 = arith.constant 1.562500e-02 : f32
    %107 = vector.broadcast %cst_31 : f32 to vector<2x32xf32>
    %108 = arith.mulf %106, %107 : vector<2x32xf32>
    %109 = arith.mulf %105, %105 : vector<128x32xf32>
    %cst_32 = arith.constant dense<0.000000e+00> : vector<2x32xf32>
    %110 = tpu.matmul %36, %109, %cst_32 {dimension_numbers = #tpu.dot_dimension_numbers<[1], [0], [0], [1], [0, 0, 1, 1], [], []>} : vector<2x128xf32>, vector<128x32xf32>, vector<2x32xf32> -> vector<2x32xf32>
    %cst_33 = arith.constant 1.562500e-02 : f32
    %111 = vector.broadcast %cst_33 : f32 to vector<2x32xf32>
    %112 = arith.mulf %110, %111 : vector<2x32xf32>
    %113 = arith.mulf %108, %108 : vector<2x32xf32>
    %114 = arith.subf %112, %113 : vector<2x32xf32>
    %cst_34 = arith.constant 0.000000e+00 : f32
    %115 = vector.broadcast %cst_34 : f32 to vector<2x32xf32>
    %116 = arith.maximumf %114, %115 : vector<2x32xf32>
    %cst_35 = arith.constant 9.99999974E-6 : f32
    %117 = vector.broadcast %cst_35 : f32 to vector<2x32xf32>
    %118 = arith.addf %116, %117 : vector<2x32xf32>
    %119 = math.rsqrt %118 : vector<2x32xf32>
    %120 = vector.broadcast %3 : vector<1x32xf32> to vector<2x32xf32>
    %121 = arith.mulf %119, %120 : vector<2x32xf32>
    %122 = arith.mulf %108, %121 : vector<2x32xf32>
    %123 = vector.broadcast %4 : vector<1x32xf32> to vector<2x32xf32>
    %124 = arith.subf %123, %122 : vector<2x32xf32>
    %cst_36 = arith.constant dense<0.000000e+00> : vector<128x32xf32>
    %125 = tpu.matmul %23, %121, %cst_36 {dimension_numbers = #tpu.dot_dimension_numbers<[1], [0], [0], [1], [0, 0, 1, 1], [], []>} : vector<128x2xf32>, vector<2x32xf32>, vector<128x32xf32> -> vector<128x32xf32>
    %126 = arith.mulf %105, %125 : vector<128x32xf32>
    %cst_37 = arith.constant dense<0.000000e+00> : vector<128x32xf32>
    %127 = tpu.matmul %23, %124, %cst_37 {dimension_numbers = #tpu.dot_dimension_numbers<[1], [0], [0], [1], [0, 0, 1, 1], [], []>} : vector<128x2xf32>, vector<2x32xf32>, vector<128x32xf32> -> vector<128x32xf32>
    %128 = arith.addf %126, %127 : vector<128x32xf32>
    %cst_38 = arith.constant 0.000000e+00 : f32
    %129 = vector.broadcast %cst_38 : f32 to vector<128x32xf32>
    %130 = arith.maximumf %128, %129 : vector<128x32xf32>
    %131 = vector.broadcast %5 : vector<1x32xf32> to vector<128x32xf32>
    %132 = arith.mulf %130, %131 : vector<128x32xf32>
    %cst_39 = arith.constant dense<0.000000e+00> : vector<128xf32>
    %133 = vector.multi_reduction <add>, %132, %cst_39 [1] : vector<128x32xf32> to vector<128xf32>
    %134 = vector.shape_cast %133 : vector<128xf32> to vector<128x1xf32>
    %cst_40 = arith.constant -1.000000e+30 : f32
    %135 = vector.shape_cast %134 : vector<128x1xf32> to vector<128x1xf32>
    %136 = vector.broadcast %135 : vector<128x1xf32> to vector<128x2xf32>
    %137 = vector.broadcast %cst_40 : f32 to vector<128x2xf32>
    %138 = arith.select %21, %136, %137 : vector<128x2xi1>, vector<128x2xf32>
    %cst_41 = arith.constant dense<0xFF800000> : vector<2xf32>
    %139 = vector.multi_reduction <maximumf>, %138, %cst_41 [0] : vector<128x2xf32> to vector<2xf32>
    %140 = vector.shape_cast %139 : vector<2xf32> to vector<1x2xf32>
    %141 = vector.broadcast %140 : vector<1x2xf32> to vector<128x2xf32>
    %142 = arith.subf %138, %141 : vector<128x2xf32>
    %143 = math.exp %142 : vector<128x2xf32>
    %144 = arith.mulf %143, %23 : vector<128x2xf32>
    %cst_42 = arith.constant dense<0.000000e+00> : vector<2xf32>
    %145 = vector.multi_reduction <add>, %144, %cst_42 [0] : vector<128x2xf32> to vector<2xf32>
    %146 = vector.shape_cast %145 : vector<2xf32> to vector<1x2xf32>
    %cst_43 = arith.constant dense<0.000000e+00> : vector<128xf32>
    %147 = vector.multi_reduction <add>, %144, %cst_43 [1] : vector<128x2xf32> to vector<128xf32>
    %148 = vector.shape_cast %147 : vector<128xf32> to vector<128x1xf32>
    %149 = vector.broadcast %146 : vector<1x2xf32> to vector<128x2xf32>
    %150 = arith.mulf %23, %149 : vector<128x2xf32>
    %cst_44 = arith.constant dense<0.000000e+00> : vector<128xf32>
    %151 = vector.multi_reduction <add>, %150, %cst_44 [1] : vector<128x2xf32> to vector<128xf32>
    %152 = vector.shape_cast %151 : vector<128xf32> to vector<128x1xf32>
    %153 = arith.divf %148, %152 : vector<128x1xf32>
    %c0_45 = arith.constant 0 : index
    %c0_46 = arith.constant 0 : index
    %154 = vector.load %arg5[%c0_45, %c0_46] : memref<128x2xf32, #tpu.memory_space<vmem>>, vector<128x2xf32>
    %155 = vector.broadcast %153 : vector<128x1xf32> to vector<128x2xf32>
    %156 = arith.mulf %155, %154 : vector<128x2xf32>
    %cst_47 = arith.constant dense<0.000000e+00> : vector<2x2xf32>
    %157 = tpu.matmul %36, %156, %cst_47 {dimension_numbers = #tpu.dot_dimension_numbers<[1], [0], [0], [1], [0, 0, 1, 1], [], []>} : vector<2x128xf32>, vector<128x2xf32>, vector<2x2xf32> -> vector<2x2xf32>
    %cst_48 = arith.constant dense<0.000000e+00> : vector<2x32xf32>
    %158 = tpu.matmul %85, %10, %cst_48 {dimension_numbers = #tpu.dot_dimension_numbers<[1], [0], [0], [1], [0, 0, 1, 1], [], []>} : vector<2x32xf32>, vector<32x32xf32>, vector<2x32xf32> -> vector<2x32xf32>
    %cst_49 = arith.constant 0.000000e+00 : f32
    %159 = vector.broadcast %cst_49 : f32 to vector<2x32xf32>
    %160 = arith.maximumf %158, %159 : vector<2x32xf32>
    %c0_50 = arith.constant 0 : index
    %c0_51 = arith.constant 0 : index
    %161 = vector.load %arg7[%c0_50, %c0_51] : memref<32x4xf32, #tpu.memory_space<vmem>>, vector<32x4xf32>
    %cst_52 = arith.constant dense<0.000000e+00> : vector<2x4xf32>
    %162 = tpu.matmul %160, %161, %cst_52 {dimension_numbers = #tpu.dot_dimension_numbers<[1], [0], [0], [1], [0, 0, 1, 1], [], []>} : vector<2x32xf32>, vector<32x4xf32>, vector<2x4xf32> -> vector<2x4xf32>
    %163 = vector.broadcast %6 : vector<1x4xf32> to vector<2x4xf32>
    %164 = arith.addf %162, %163 : vector<2x4xf32>
    %cst_53 = arith.constant 0.000000e+00 : f32
    %165 = vector.broadcast %cst_53 : f32 to vector<2x4xf32>
    %166 = arith.subf %165, %164 : vector<2x4xf32>
    %167 = math.exp %166 : vector<2x4xf32>
    %cst_54 = arith.constant 1.000000e+00 : f32
    %168 = vector.broadcast %cst_54 : f32 to vector<2x4xf32>
    %169 = arith.addf %168, %167 : vector<2x4xf32>
    %cst_55 = arith.constant 1.000000e+00 : f32
    %170 = vector.broadcast %cst_55 : f32 to vector<2x4xf32>
    %171 = arith.divf %170, %169 : vector<2x4xf32>
    %cst_56 = arith.constant 0.000000e+00 : f32
    %172 = vector.broadcast %cst_56 : f32 to vector<2x2xf32>
    %173 = tpu.concatenate %157, %171, %172 in 1 : vector<2x2xf32>, vector<2x4xf32>, vector<2x2xf32> -> vector<2x8xf32>
    %c0_57 = arith.constant 0 : index
    %c0_58 = arith.constant 0 : index
    %c0_59 = arith.constant 0 : index
    %174 = vector.load %arg9[%c0_57, %c0_58, %c0_59] : memref<1x2x8xf32, #tpu.memory_space<vmem>>, vector<1x2x8xf32>
    %175 = vector.shape_cast %174 : vector<1x2x8xf32> to vector<2x8xf32>
    %176 = vector.shape_cast %173 : vector<2x8xf32> to vector<1x2x8xf32>
    tpu.vector_store %arg9[%c0_57, %c0_58, %c0_59], %176 {strides = array<i32>} : memref<1x2x8xf32, #tpu.memory_space<vmem>>, vector<1x2x8xf32>,
    return
  }
  func.func @transform_0(%arg0: i32) -> (i32, i32) {
    %c0_i32 = arith.constant 0 : i32
    %c0_i32_0 = arith.constant 0 : i32
    return %arg0, %c0_i32 : i32, i32
  }
  func.func @transform_1(%arg0: i32) -> (i32, i32) {
    %c0_i32 = arith.constant 0 : i32
    %c0_i32_0 = arith.constant 0 : i32
    %c0_i32_1 = arith.constant 0 : i32
    return %c0_i32, %c0_i32_0 : i32, i32
  }
  func.func @transform_2(%arg0: i32) -> (i32, i32) {
    %c0_i32 = arith.constant 0 : i32
    %c0_i32_0 = arith.constant 0 : i32
    %c0_i32_1 = arith.constant 0 : i32
    return %c0_i32, %c0_i32_0 : i32, i32
  }
  func.func @transform_3(%arg0: i32) -> (i32, i32) {
    %c0_i32 = arith.constant 0 : i32
    %c0_i32_0 = arith.constant 0 : i32
    %c0_i32_1 = arith.constant 0 : i32
    return %c0_i32, %c0_i32_0 : i32, i32
  }
  func.func @transform_4(%arg0: i32) -> (i32, i32) {
    %c0_i32 = arith.constant 0 : i32
    %c0_i32_0 = arith.constant 0 : i32
    %c0_i32_1 = arith.constant 0 : i32
    return %c0_i32, %c0_i32_0 : i32, i32
  }
  func.func @transform_5(%arg0: i32) -> (i32, i32) {
    %c0_i32 = arith.constant 0 : i32
    %c0_i32_0 = arith.constant 0 : i32
    %c0_i32_1 = arith.constant 0 : i32
    return %c0_i32, %c0_i32_0 : i32, i32
  }
  func.func @transform_6(%arg0: i32) -> (i32, i32) {
    %c0_i32 = arith.constant 0 : i32
    %c0_i32_0 = arith.constant 0 : i32
    %c0_i32_1 = arith.constant 0 : i32
    return %c0_i32, %c0_i32_0 : i32, i32
  }
  func.func @transform_7(%arg0: i32) -> (i32, i32) {
    %c0_i32 = arith.constant 0 : i32
    %c0_i32_0 = arith.constant 0 : i32
    %c0_i32_1 = arith.constant 0 : i32
    return %c0_i32, %c0_i32_0 : i32, i32
  }
  func.func @transform_8(%arg0: i32) -> (i32, i32, i32) {
    %c0_i32 = arith.constant 0 : i32
    %c0_i32_0 = arith.constant 0 : i32
    %c0_i32_1 = arith.constant 0 : i32
    return %arg0, %c0_i32, %c0_i32_0 : i32, i32, i32
  }
}

</mosaic_0001>

<llo_original>
// kernel: _oetr_forward.1
$region0: #{_oetr_forward.1}
  #allocation0 [shape = 'u32[]', space=smem, size = 0x4, offset = 0x4, fixed_abs, tag = 'smem constant byte address 0x4 - core index']
  #allocation1 [shape = 'u32[144,128]{1,0:T(1,128)}', space=vmem, size = 0x12000, scoped, tag = 'internal scratch']
  %s0 = inlined_call_operand.vmem [shape: f32[256,64], index: 0, kind: input, shape index: {}]
  %s1 = inlined_call_operand.vmem [shape: f32[128,32], index: 1, kind: input, shape index: {}]
  %s2 = inlined_call_operand.vmem [shape: f32[4,32], index: 2, kind: input, shape index: {}]
  %s3 = inlined_call_operand.vmem [shape: f32[128,288], index: 3, kind: input, shape index: {}]
  %s4 = inlined_call_operand.vmem [shape: f32[128,2], index: 4, kind: input, shape index: {}]
  %s5 = inlined_call_operand.vmem [shape: f32[384,32], index: 5, kind: input, shape index: {}]
  %s6 = inlined_call_operand.vmem [shape: f32[32,4], index: 6, kind: input, shape index: {}]
  %s7 = inlined_call_operand.vmem [shape: f32[8,32], index: 7, kind: input, shape index: {}]
  %s8 = inlined_call_operand.vmem [shape: f32[2,2,8], index: 8, kind: output, shape index: {}]
  %s9 = sld [smem:[#allocation0]]
  $region65: #{_oetr_forward.1} parent=0
    _
  %s11 = ssub.s32 1, %s9
  %s12 = scalar_select 0, %s11, %s9
  loop: start=0, step=1, limit=4
  $region2: #{_oetr_forward.1} parent=0 // loop_pre_header
    _
  $region3: #{_oetr_forward.1} parent=0 // loop_header
    %s14 = sphi 0, %s18
    %p15 = scmp.ge.s32.totalorder %s14, 4
    %s24 = sphi 0, %s26
    %s27 = sphi 0, %s24
    %s28 = sphi 0, %s27
    %s44 = sphi 0, %s28
    %s48 = sphi 0, %s48
    %s50 = sphi 0, %s48
    %s51 = sphi 0, %s50
    %s65 = sphi 0, %s51
    %s69 = sphi 0, %s69
    %s71 = sphi 0, %s69
    %s72 = sphi 0, %s71
    %s86 = sphi 0, %s72
    %s90 = sphi 0, %s90
    %s92 = sphi 0, %s90
    %s93 = sphi 0, %s92
    %s107 = sphi 0, %s93
    %s111 = sphi 0, %s111
    %s113 = sphi 0, %s111
    %s114 = sphi 0, %s113
    %s128 = sphi 0, %s114
    %s132 = sphi 0, %s132
    %s134 = sphi 0, %s132
    %s135 = sphi 0, %s134
    %s149 = sphi 0, %s135
    %s153 = sphi 0, %s153
    %s155 = sphi 0, %s153
    %s156 = sphi 0, %s155
    %s170 = sphi 0, %s156
    %s174 = sphi 0, %s174
    %s176 = sphi 0, %s174
    %s177 = sphi 0, %s176
    %s191 = sphi 0, %s177
    %s197 = sphi 0, %s199
    %s200 = sphi 0, %s197
    %s201 = sphi 0, %s200
    %s217 = sphi 0, %s201
  $region4: #{_oetr_forward.1} parent=0 // loop_header_branch
    %17 = sbr.rel (%p15) target = $region8
  $region5: #{_oetr_forward.1} parent=0 // loop_body
    %s19 = ssub.s32 %s14, 1
    %s20 = ssub.s32 %s14, 2
    %s21 = sadd.s32 %s14, 1
    %s22 = ssub.s32 %s14, %s21
    %p23 = scmp.eq.s32.totalorder %s22, 0
    %s25 = sadd.s32 %s24, 1
    %s26 = scalar_select %p23, %s24, %s25
    %p29 = pneg %p23
    %p30 = scmp.eq.s32.totalorder %s14, 1
    %p31 = por %p29, %p30
    %p32 = scmp.ne.s32.totalorder %s24, %s27
    %p33 = scmp.eq.s32.totalorder %s14, 0
    %p34 = por %p32, %p33
    %p35 = scmp.ne.s32.totalorder %s24, %s27
    %p36 = scmp.eq.s32.totalorder %s19, 1
    %p37 = por %p35, %p36
    %p38 = scmp.ne.s32.totalorder %s27, %s28
    %p39 = scmp.eq.s32.totalorder %s19, 0
    %p40 = por %p38, %p39
    %p41 = scmp.ne.s32.totalorder %s27, %s28
    %p42 = scmp.eq.s32.totalorder %s20, 1
    %p43 = por %p41, %p42
    %p45 = scmp.ne.s32.totalorder %s28, %s44
    %p46 = scmp.eq.s32.totalorder %s20, 0
    %p47 = por %p45, %p46
    %s49 = sadd.s32 %s48, 1
    %p52 = scmp.eq.s32.totalorder %s14, 1
    %p53 = scmp.ne.s32.totalorder %s48, %s50
    %p54 = scmp.eq.s32.totalorder %s14, 0
    %p55 = por %p53, %p54
    %p56 = scmp.ne.s32.totalorder %s48, %s50
    %p57 = scmp.eq.s32.totalorder %s19, 1
    %p58 = por %p56, %p57
    %p59 = scmp.ne.s32.totalorder %s50, %s51
    %p60 = scmp.eq.s32.totalorder %s19, 0
    %p61 = por %p59, %p60
    %p62 = scmp.ne.s32.totalorder %s50, %s51
    %p63 = scmp.eq.s32.totalorder %s20, 1
    %p64 = por %p62, %p63
    %p66 = scmp.ne.s32.totalorder %s51, %s65
    %p67 = scmp.eq.s32.totalorder %s20, 0
    %p68 = por %p66, %p67
    %s70 = sadd.s32 %s69, 1
    %p73 = scmp.eq.s32.totalorder %s14, 1
    %p74 = scmp.ne.s32.totalorder %s69, %s71
    %p75 = scmp.eq.s32.totalorder %s14, 0
    %p76 = por %p74, %p75
    %p77 = scmp.ne.s32.totalorder %s69, %s71
    %p78 = scmp.eq.s32.totalorder %s19, 1
    %p79 = por %p77, %p78
    %p80 = scmp.ne.s32.totalorder %s71, %s72
    %p81 = scmp.eq.s32.totalorder %s19, 0
    %p82 = por %p80, %p81
    %p83 = scmp.ne.s32.totalorder %s71, %s72
    %p84 = scmp.eq.s32.totalorder %s20, 1
    %p85 = por %p83, %p84
    %p87 = scmp.ne.s32.totalorder %s72, %s86
    %p88 = scmp.eq.s32.totalorder %s20, 0
    %p89 = por %p87, %p88
    %s91 = sadd.s32 %s90, 1
    %p94 = scmp.eq.s32.totalorder %s14, 1
    %p95 = scmp.ne.s32.totalorder %s90, %s92
    %p96 = scmp.eq.s32.totalorder %s14, 0
    %p97 = por %p95, %p96
    %p98 = scmp.ne.s32.totalorder %s90, %s92
    %p99 = scmp.eq.s32.totalorder %s19, 1
    %p100 = por %p98, %p99
    %p101 = scmp.ne.s32.totalorder %s92, %s93
    %p102 = scmp.eq.s32.totalorder %s19, 0
    %p103 = por %p101, %p102
    %p104 = scmp.ne.s32.totalorder %s92, %s93
    %p105 = scmp.eq.s32.totalorder %s20, 1
    %p106 = por %p104, %p105
    %p108 = scmp.ne.s32.totalorder %s93, %s107
    %p109 = scmp.eq.s32.totalorder %s20, 0
    %p110 = por %p108, %p109
    %s112 = sadd.s32 %s111, 1
    %p115 = scmp.eq.s32.totalorder %s14, 1
    %p116 = scmp.ne.s32.totalorder %s111, %s113
    %p117 = scmp.eq.s32.totalorder %s14, 0
    %p118 = por %p116, %p117
    %p119 = scmp.ne.s32.totalorder %s111, %s113
    %p120 = scmp.eq.s32.totalorder %s19, 1
    %p121 = por %p119, %p120
    %p122 = scmp.ne.s32.totalorder %s113, %s114
    %p123 = scmp.eq.s32.totalorder %s19, 0
    %p124 = por %p122, %p123
    %p125 = scmp.ne.s32.totalorder %s113, %s114
    %p126 = scmp.eq.s32.totalorder %s20, 1
    %p127 = por %p125, %p126
    %p129 = scmp.ne.s32.totalorder %s114, %s128
    %p130 = scmp.eq.s32.totalorder %s20, 0
    %p131 = por %p129, %p130
    %s133 = sadd.s32 %s132, 1
    %p136 = scmp.eq.s32.totalorder %s14, 1
    %p137 = scmp.ne.s32.totalorder %s132, %s134
    %p138 = scmp.eq.s32.totalorder %s14, 0
    %p139 = por %p137, %p138
    %p140 = scmp.ne.s32.totalorder %s132, %s134
    %p141 = scmp.eq.s32.totalorder %s19, 1
    %p142 = por %p140, %p141
    %p143 = scmp.ne.s32.totalorder %s134, %s135
    %p144 = scmp.eq.s32.totalorder %s19, 0
    %p145 = por %p143, %p144
    %p146 = scmp.ne.s32.totalorder %s134, %s135
    %p147 = scmp.eq.s32.totalorder %s20, 1
    %p148 = por %p146, %p147
    %p150 = scmp.ne.s32.totalorder %s135, %s149
    %p151 = scmp.eq.s32.totalorder %s20, 0
    %p152 = por %p150, %p151
    %s154 = sadd.s32 %s153, 1
    %p157 = scmp.eq.s32.totalorder %s14, 1
    %p158 = scmp.ne.s32.totalorder %s153, %s155
    %p159 = scmp.eq.s32.totalorder %s14, 0
    %p160 = por %p158, %p159
    %p161 = scmp.ne.s32.totalorder %s153, %s155
    %p162 = scmp.eq.s32.totalorder %s19, 1
    %p163 = por %p161, %p162
    %p164 = scmp.ne.s32.totalorder %s155, %s156
    %p165 = scmp.eq.s32.totalorder %s19, 0
    %p166 = por %p164, %p165
    %p167 = scmp.ne.s32.totalorder %s155, %s156
    %p168 = scmp.eq.s32.totalorder %s20, 1
    %p169 = por %p167, %p168
    %p171 = scmp.ne.s32.totalorder %s156, %s170
    %p172 = scmp.eq.s32.totalorder %s20, 0
    %p173 = por %p171, %p172
    %s175 = sadd.s32 %s174, 1
    %p178 = scmp.eq.s32.totalorder %s14, 1
    %p179 = scmp.ne.s32.totalorder %s174, %s176
    %p180 = scmp.eq.s32.totalorder %s14, 0
    %p181 = por %p179, %p180
    %p182 = scmp.ne.s32.totalorder %s174, %s176
    %p183 = scmp.eq.s32.totalorder %s19, 1
    %p184 = por %p182, %p183
    %p185 = scmp.ne.s32.totalorder %s176, %s177
    %p186 = scmp.eq.s32.totalorder %s19, 0
    %p187 = por %p185, %p186
    %p188 = scmp.ne.s32.totalorder %s176, %s177
    %p189 = scmp.eq.s32.totalorder %s20, 1
    %p190 = por %p188, %p189
    %p192 = scmp.ne.s32.totalorder %s177, %s191
    %p193 = scmp.eq.s32.totalorder %s20, 0
    %p194 = por %p192, %p193
    %s195 = ssub.s32 %s14, %s21
    %p196 = scmp.eq.s32.totalorder %s195, 0
    %s198 = sadd.s32 %s197, 1
    %s199 = scalar_select %p196, %s197, %s198
    %p202 = pneg %p196
    %p203 = scmp.eq.s32.totalorder %s14, 1
    %p204 = por %p202, %p203
    %p205 = scmp.ne.s32.totalorder %s197, %s200
    %p206 = scmp.eq.s32.totalorder %s14, 0
    %p207 = por %p205, %p206
    %p208 = scmp.ne.s32.totalorder %s197, %s200
    %p209 = scmp.eq.s32.totalorder %s19, 1
    %p210 = por %p208, %p209
    %p211 = scmp.ne.s32.totalorder %s200, %s201
    %p212 = scmp.eq.s32.totalorder %s19, 0
    %p213 = por %p211, %p212
    %p214 = scmp.ne.s32.totalorder %s200, %s201
    %p215 = scmp.eq.s32.totalorder %s20, 1
    %p216 = por %p214, %p215
    %p218 = scmp.ne.s32.totalorder %s201, %s217
    %p219 = scmp.eq.s32.totalorder %s20, 0
    %p220 = por %p218, %p219
    %p221 = scmp.le.s32.totalorder 1, %s14
    %p222 = scmp.lt.s32.totalorder %s14, 3
    %p223 = pnand %p221, %p222
    %p224 = pneg %p223
    // Predicated region
    $region9: #{_oetr_forward.1} parent=5 // pred_check
      _
    $region10: #{_oetr_forward.1} parent=5 // pred_check_branch
      %226 = sbr.rel (%p223) target = $region12
    $region11: #{_oetr_forward.1} parent=5 // pred_region
      %s227 = ssub.s32 %s14, 1
      // Predicated region
      $region13: #{_oetr_forward.1} parent=11 // pred_check
        %p228 = pneg %p61
      $region14: #{_oetr_forward.1} parent=11 // pred_check_branch
        %230 = sbr.rel (%p228) target = $region16
      $region15: #{_oetr_forward.1} parent=11 // pred_region
        _
      $region16: #{_oetr_forward.1} parent=11 // pred_fallthru
        _
      // Predicated region
      $region17: #{_oetr_forward.1} parent=11 // pred_check
        %p231 = pneg %p82
      $region18: #{_oetr_forward.1} parent=11 // pred_check_branch
        %233 = sbr.rel (%p231) target = $region20
      $region19: #{_oetr_forward.1} parent=11 // pred_region
        _
      $region20: #{_oetr_forward.1} parent=11 // pred_fallthru
        _
      // Predicated region
      $region21: #{_oetr_forward.1} parent=11 // pred_check
        %p234 = pneg %p103
      $region22: #{_oetr_forward.1} parent=11 // pred_check_branch
        %236 = sbr.rel (%p234) target = $region24
      $region23: #{_oetr_forward.1} parent=11 // pred_region
        _
      $region24: #{_oetr_forward.1} parent=11 // pred_fallthru
        _
      // Predicated region
      $region25: #{_oetr_forward.1} parent=11 // pred_check
        %p237 = pneg %p124
      $region26: #{_oetr_forward.1} parent=11 // pred_check_branch
        %239 = sbr.rel (%p237) target = $region28
      $region27: #{_oetr_forward.1} parent=11 // pred_region
        _
      $region28: #{_oetr_forward.1} parent=11 // pred_fallthru
        _
      // Predicated region
      $region29: #{_oetr_forward.1} parent=11 // pred_check
        %p240 = pneg %p145
      $region30: #{_oetr_forward.1} parent=11 // pred_check_branch
        %242 = sbr.rel (%p240) target = $region32
      $region31: #{_oetr_forward.1} parent=11 // pred_region
        _
      $region32: #{_oetr_forward.1} parent=11 // pred_fallthru
        _
      // Predicated region
      $region33: #{_oetr_forward.1} parent=11 // pred_check
        %p243 = pneg %p166
      $region34: #{_oetr_forward.1} parent=11 // pred_check_branch
        %245 = sbr.rel (%p243) target = $region36
      $region35: #{_oetr_forward.1} parent=11 // pred_region
        _
      $region36: #{_oetr_forward.1} parent=11 // pred_fallthru
        _
      // Predicated region
      $region37: #{_oetr_forward.1} parent=11 // pred_check
        %p246 = pneg %p187
      $region38: #{_oetr_forward.1} parent=11 // pred_check_branch
        %248 = sbr.rel (%p246) target = $region40
      $region39: #{_oetr_forward.1} parent=11 // pred_region
        _
      $region40: #{_oetr_forward.1} parent=11 // pred_fallthru
        _
    $region12: #{_oetr_forward.1} parent=5 // pred_fallthru
      _
    %p249 = scmp.lt.s32.totalorder %s14, 2
    // Predicated region
    $region41: #{_oetr_forward.1} parent=5 // pred_check
      %p250 = pneg %p249
    $region42: #{_oetr_forward.1} parent=5 // pred_check_branch
      %252 = sbr.rel (%p250) target = $region44
    $region43: #{_oetr_forward.1} parent=5 // pred_region
      // Predicated region
      $region45: #{_oetr_forward.1} parent=43 // pred_check
        %p253 = pneg %p34
      $region46: #{_oetr_forward.1} parent=43 // pred_check_branch
        %255 = sbr.rel (%p253) target = $region48
      $region47: #{_oetr_forward.1} parent=43 // pred_region
        %s256 = smul.u32 16, %s14
        %p257 = scmp.lt.s32.totalorder %s256, 31
        %s258 = scalar_select %p257, %s256, 31
        %s259 = smul.addr %s258, 8
        %s260 = scalar_lea.vmem %s0, %s259
        %s261 = smul.u32 16, %s14
      $region48: #{_oetr_forward.1} parent=43 // pred_fallthru
        _
    $region44: #{_oetr_forward.1} parent=5 // pred_fallthru
      _
    %p262 = scmp.le.s32.totalorder 1, %s14
    %p263 = scmp.lt.s32.totalorder %s14, 3
    %p264 = pnand %p262, %p263
    %p265 = pneg %p264
    // Predicated region
    $region49: #{_oetr_forward.1} parent=5 // pred_check
      _
    $region50: #{_oetr_forward.1} parent=5 // pred_check_branch
      %267 = sbr.rel (%p264) target = $region52
    $region51: #{_oetr_forward.1} parent=5 // pred_region
      %s268 = ssub.s32 %s14, 1
      %s269 = smul.u32 16, %s19
      %p270 = scmp.lt.s32.totalorder %s269, 31
      %s271 = scalar_select %p270, %s269, 31
      %s272 = smul.addr %s271, 8
      %s273 = scalar_lea.vmem %s0, %s272
      %p274 = pneg %p40
      %p275 = pneg %p37
      %p276 = pneg %p61
      %p277 = pneg %p58
      %p278 = pneg %p82
      %p279 = pneg %p79
      %p280 = pneg %p103
      %p281 = pneg %p100
      %p282 = pneg %p124
      %p283 = pneg %p121
      %p284 = pneg %p145
      %p285 = pneg %p142
      %p286 = pneg %p166
      %p287 = pneg %p163
      %p288 = pneg %p187
      %p289 = pneg %p184
      %p290 = pneg %p213
      %p291 = pneg %p210
      %p292 = scmp.lt.s32.totalorder %s19, 1
      %s293 = scalar_select %p292, %s19, 1
      %s294 = smul.addr %s293, 2
      %s295 = scalar_lea.vmem %s8, %s294
      %s296 = smul.u32 16, %s19
      %p297 = scmp.lt.s32.totalorder %s296, 31
      %s298 = scalar_select %p297, %s296, 31
      %s299 = smul.addr %s298, 8
      %s300 = scalar_lea.vmem %s0, %s299
      %s301 = smul.u32 16, %s19
      %p302 = scmp.lt.s32.totalorder %s19, 1
      %s303 = scalar_select %p302, %s19, 1
      %s304 = smul.addr %s303, 2
      %s305 = scalar_lea.vmem %s8, %s304
      %v306 = vld [vmem:[%s7] sm:$0xff]
      %v307 = vld [vmem:[%s5] sm:$0xff]
      %v308 = vld [vmem:[%s5 + $0x8] sm:$0xff]
      %v309 = vld [vmem:[%s5 + $0x10] sm:$0xff]
      %v310 = vld [vmem:[%s5 + $0x18] sm:$0xff]
      %v311 = vld [vmem:[%s5 + $0x20] sm:$0xff]
      %v312 = vld [vmem:[%s5 + $0x28] sm:$0xff]
      %v313 = vld [vmem:[%s5 + $0x30] sm:$0xff]
      %v314 = vld [vmem:[%s5 + $0x38] sm:$0xff]
      %v315 = vld [vmem:[%s5 + $0x40] sm:$0xff]
      %v316 = vld [vmem:[%s5 + $0x48] sm:$0xff]
      %v317 = vld [vmem:[%s5 + $0x50] sm:$0xff]
      %v318 = vld [vmem:[%s5 + $0x58] sm:$0xff]
      %v319 = vld [vmem:[%s5 + $0x60] sm:$0xff]
      %v320 = vld [vmem:[%s5 + $0x68] sm:$0xff]
      %v321 = vld [vmem:[%s5 + $0x70] sm:$0xff]
      %v322 = vld [vmem:[%s5 + $0x78] sm:$0xff]
      %v323 = vld [vmem:[%s5 + $0x80] sm:$0xff]
      %v324 = vld [vmem:[%s5 + $0x88] sm:$0xff]
      %v325 = vld [vmem:[%s5 + $0x90] sm:$0xff]
      %v326 = vld [vmem:[%s5 + $0x98] sm:$0xff]
      %v327 = vld [vmem:[%s5 + $0xa0] sm:$0xff]
      %v328 = vld [vmem:[%s5 + $0xa8] sm:$0xff]
      %v329 = vld [vmem:[%s5 + $0xb0] sm:$0xff]
      %v330 = vld [vmem:[%s5 + $0xb8] sm:$0xff]
      %v331 = vld [vmem:[%s5 + $0xc0] sm:$0xff]
      %v332 = vld [vmem:[%s5 + $0xc8] sm:$0xff]
      %v333 = vld [vmem:[%s5 + $0xd0] sm:$0xff]
      %v334 = vld [vmem:[%s5 + $0xd8] sm:$0xff]
      %v335 = vld [vmem:[%s5 + $0xe0] sm:$0xff]
      %v336 = vld [vmem:[%s5 + $0xe8] sm:$0xff]
      %v337 = vld [vmem:[%s5 + $0xf0] sm:$0xff]
      %v338 = vld [vmem:[%s5 + $0xf8] sm:$0xff]
      %v339 = vld [vmem:[%s5 + $0x100] sm:$0xff]
      %v340 = vld [vmem:[%s5 + $0x108] sm:$0xff]
      %v341 = vld [vmem:[%s5 + $0x110] sm:$0xff]
      %v342 = vld [vmem:[%s5 + $0x118] sm:$0xff]
      %v343 = vld [vmem:[%s5 + $0x120] sm:$0xff]
      %v344 = vld [vmem:[%s5 + $0x128] sm:$0xff]
      %v345 = vld [vmem:[%s5 + $0x130] sm:$0xff]
      %v346 = vld [vmem:[%s5 + $0x138] sm:$0xff]
      %v347 = vld [vmem:[%s5 + $0x140] sm:$0xff]
      %v348 = vld [vmem:[%s5 + $0x148] sm:$0xff]
      %v349 = vld [vmem:[%s5 + $0x150] sm:$0xff]
      %v350 = vld [vmem:[%s5 + $0x158] sm:$0xff]
      %v351 = vld [vmem:[%s5 + $0x160] sm:$0xff]
      %v352 = vld [vmem:[%s5 + $0x168] sm:$0xff]
      %v353 = vld [vmem:[%s5 + $0x170] sm:$0xff]
      %v354 = vld [vmem:[%s5 + $0x178] sm:$0xff]
      %v355 = vlaneseq
      %v356 = vshrl.u32 %v355, 7
      %v357 = vadd.s32 %v356, 8
      %v358 = vadd.s32 %v356, 16
      %v359 = vadd.s32 %v356, 24
      %v360 = vadd.s32 %v356, 32
      %v361 = vadd.s32 %v356, 40
      %v362 = vadd.s32 %v356, 48
      %v363 = vadd.s32 %v356, 56
      %v364 = vadd.s32 %v356, 64
      %v365 = vadd.s32 %v356, 72
      %v366 = vadd.s32 %v356, 80
      %v367 = vadd.s32 %v356, 88
      %v368 = vadd.s32 %v356, 96
      %v369 = vadd.s32 %v356, 104
      %v370 = vadd.s32 %v356, 112
      %v371 = vadd.s32 %v356, 120
      %v372 = vlaneseq
      %v373 = vand.u32 %v372, 127
      %v374 = vmul.u32 %v373, 64
      %vm375 = vcmp.ge.s32.totalorder %v356, %v374
      %vm376 = vcmp.ge.s32.totalorder %v357, %v374
      %vm377 = vcmp.ge.s32.totalorder %v358, %v374
      %vm378 = vcmp.ge.s32.totalorder %v359, %v374
      %vm379 = vcmp.ge.s32.totalorder %v360, %v374
      %vm380 = vcmp.ge.s32.totalorder %v361, %v374
      %vm381 = vcmp.ge.s32.totalorder %v362, %v374
      %vm382 = vcmp.ge.s32.totalorder %v363, %v374
      %vm383 = vcmp.ge.s32.totalorder %v364, %v374
      %vm384 = vcmp.ge.s32.totalorder %v365, %v374
      %vm385 = vcmp.ge.s32.totalorder %v366, %v374
      %vm386 = vcmp.ge.s32.totalorder %v367, %v374
      %vm387 = vcmp.ge.s32.totalorder %v368, %v374
      %vm388 = vcmp.ge.s32.totalorder %v369, %v374
      %vm389 = vcmp.ge.s32.totalorder %v370, %v374
      %vm390 = vcmp.ge.s32.totalorder %v371, %v374
      %v391 = vadd.s32 %v374, 64
      %vm392 = vcmp.lt.s32.totalorder %v356, %v391
      %vm393 = vcmp.lt.s32.totalorder %v357, %v391
      %vm394 = vcmp.lt.s32.totalorder %v358, %v391
      %vm395 = vcmp.lt.s32.totalorder %v359, %v391
      %vm396 = vcmp.lt.s32.totalorder %v360, %v391
      %vm397 = vcmp.lt.s32.totalorder %v361, %v391
      %vm398 = vcmp.lt.s32.totalorder %v362, %v391
      %vm399 = vcmp.lt.s32.totalorder %v363, %v391
      %vm400 = vcmp.lt.s32.totalorder %v364, %v391
      %vm401 = vcmp.lt.s32.totalorder %v365, %v391
      %vm402 = vcmp.lt.s32.totalorder %v366, %v391
      %vm403 = vcmp.lt.s32.totalorder %v367, %v391
      %vm404 = vcmp.lt.s32.totalorder %v368, %v391
      %vm405 = vcmp.lt.s32.totalorder %v369, %v391
      %vm406 = vcmp.lt.s32.totalorder %v370, %v391
      %vm407 = vcmp.lt.s32.totalorder %v371, %v391
      %vm408 = vmand %vm375, %vm392
      %vm409 = vmand %vm376, %vm393
      %vm410 = vmand %vm377, %vm394
      %vm411 = vmand %vm378, %vm395
      %vm412 = vmand %vm379, %vm396
      %vm413 = vmand %vm380, %vm397
      %vm414 = vmand %vm381, %vm398
      %vm415 = vmand %vm382, %vm399
      %vm416 = vmand %vm383, %vm400
      %vm417 = vmand %vm384, %vm401
      %vm418 = vmand %vm385, %vm402
      %vm419 = vmand %vm386, %vm403
      %vm420 = vmand %vm387, %vm404
      %vm421 = vmand %vm388, %vm405
      %vm422 = vmand %vm389, %vm406
      %vm423 = vmand %vm390, %vm407
      %v424 = vsel %vm408, 1, 0
      %v425 = vsel %vm409, 1, 0
      %v426 = vsel %vm410, 1, 0
      %v427 = vsel %vm411, 1, 0
      %v428 = vsel %vm412, 1, 0
      %v429 = vsel %vm413, 1, 0
      %v430 = vsel %vm414, 1, 0
      %v431 = vsel %vm415, 1, 0
      %v432 = vsel %vm416, 1, 0
      %v433 = vsel %vm417, 1, 0
      %v434 = vsel %vm418, 1, 0
      %v435 = vsel %vm419, 1, 0
      %v436 = vsel %vm420, 1, 0
      %v437 = vsel %vm421, 1, 0
      %v438 = vsel %vm422, 1, 0
      %v439 = vsel %vm423, 1, 0
      %v440 = vcvt.s32.f32 %v424
      %v441 = vcvt.s32.f32 %v425
      %v442 = vcvt.s32.f32 %v426
      %v443 = vcvt.s32.f32 %v427
      %v444 = vcvt.s32.f32 %v428
      %v445 = vcvt.s32.f32 %v429
      %v446 = vcvt.s32.f32 %v430
      %v447 = vcvt.s32.f32 %v431
      %v448 = vcvt.s32.f32 %v432
      %v449 = vcvt.s32.f32 %v433
      %v450 = vcvt.s32.f32 %v434
      %v451 = vcvt.s32.f32 %v435
      %v452 = vcvt.s32.f32 %v436
      %v453 = vcvt.s32.f32 %v437
      %v454 = vcvt.s32.f32 %v438
      %v455 = vcvt.s32.f32 %v439
      %v456 = vmul.u32 %v356, 64
      %vm457 = vcmp.ge.s32.totalorder %v373, %v456
      %v458 = vadd.s32 %v456, 64
      %vm459 = vcmp.lt.s32.totalorder %v373, %v458
      %vm460 = vmand %vm457, %vm459
      %v461 = vsel %vm460, 1, 0
      %v462 = vcvt.s32.f32 %v461
      %s463 = smul.u32 %s19, 2
      %v464 = vstv %s463
      %v465 = vsub.s32 %v373, %v464
      %v466 = vmul.u32 %v465, 64
      %vm467 = vcmp.ge.s32.totalorder %v356, %v466
      %vm468 = vcmp.ge.s32.totalorder %v357, %v466
      %vm469 = vcmp.ge.s32.totalorder %v358, %v466
      %vm470 = vcmp.ge.s32.totalorder %v359, %v466
      %vm471 = vcmp.ge.s32.totalorder %v360, %v466
      %vm472 = vcmp.ge.s32.totalorder %v361, %v466
      %vm473 = vcmp.ge.s32.totalorder %v362, %v466
      %vm474 = vcmp.ge.s32.totalorder %v363, %v466
      %vm475 = vcmp.ge.s32.totalorder %v364, %v466
      %vm476 = vcmp.ge.s32.totalorder %v365, %v466
      %vm477 = vcmp.ge.s32.totalorder %v366, %v466
      %vm478 = vcmp.ge.s32.totalorder %v367, %v466
      %vm479 = vcmp.ge.s32.totalorder %v368, %v466
      %vm480 = vcmp.ge.s32.totalorder %v369, %v466
      %vm481 = vcmp.ge.s32.totalorder %v370, %v466
      %vm482 = vcmp.ge.s32.totalorder %v371, %v466
      %v483 = vadd.s32 %v466, 64
      %vm484 = vcmp.lt.s32.totalorder %v356, %v483
      %vm485 = vcmp.lt.s32.totalorder %v357, %v483
      %vm486 = vcmp.lt.s32.totalorder %v358, %v483
      %vm487 = vcmp.lt.s32.totalorder %v359, %v483
      %vm488 = vcmp.lt.s32.totalorder %v360, %v483
      %vm489 = vcmp.lt.s32.totalorder %v361, %v483
      %vm490 = vcmp.lt.s32.totalorder %v362, %v483
      %vm491 = vcmp.lt.s32.totalorder %v363, %v483
      %vm492 = vcmp.lt.s32.totalorder %v364, %v483
      %vm493 = vcmp.lt.s32.totalorder %v365, %v483
      %vm494 = vcmp.lt.s32.totalorder %v366, %v483
      %vm495 = vcmp.lt.s32.totalorder %v367, %v483
      %vm496 = vcmp.lt.s32.totalorder %v368, %v483
      %vm497 = vcmp.lt.s32.totalorder %v369, %v483
      %vm498 = vcmp.lt.s32.totalorder %v370, %v483
      %vm499 = vcmp.lt.s32.totalorder %v371, %v483
      %vm500 = vmand %vm467, %vm484
      %vm501 = vmand %vm468, %vm485
      %vm502 = vmand %vm469, %vm486
      %vm503 = vmand %vm470, %vm487
      %vm504 = vmand %vm471, %vm488
      %vm505 = vmand %vm472, %vm489
      %vm506 = vmand %vm473, %vm490
      %vm507 = vmand %vm474, %vm491
      %vm508 = vmand %vm475, %vm492
      %vm509 = vmand %vm476, %vm493
      %vm510 = vmand %vm477, %vm494
      %vm511 = vmand %vm478, %vm495
      %vm512 = vmand %vm479, %vm496
      %vm513 = vmand %vm480, %vm497
      %vm514 = vmand %vm481, %vm498
      %vm515 = vmand %vm482, %vm499
      %v516 = vsel %vm500, 1, 0
      %v517 = vsel %vm501, 1, 0
      %v518 = vsel %vm502, 1, 0
      %v519 = vsel %vm503, 1, 0
      %v520 = vsel %vm504, 1, 0
      %v521 = vsel %vm505, 1, 0
      %v522 = vsel %vm506, 1, 0
      %v523 = vsel %vm507, 1, 0
      %v524 = vsel %vm508, 1, 0
      %v525 = vsel %vm509, 1, 0
      %v526 = vsel %vm510, 1, 0
      %v527 = vsel %vm511, 1, 0
      %v528 = vsel %vm512, 1, 0
      %v529 = vsel %vm513, 1, 0
      %v530 = vsel %vm514, 1, 0
      %v531 = vsel %vm515, 1, 0
      %v532 = vcvt.s32.f32 %v516
      %v533 = vcvt.s32.f32 %v517
      %v534 = vcvt.s32.f32 %v518
      %v535 = vcvt.s32.f32 %v519
      %v536 = vcvt.s32.f32 %v520
      %v537 = vcvt.s32.f32 %v521
      %v538 = vcvt.s32.f32 %v522
      %v539 = vcvt.s32.f32 %v523
      %v540 = vcvt.s32.f32 %v524
      %v541 = vcvt.s32.f32 %v525
      %v542 = vcvt.s32.f32 %v526
      %v543 = vcvt.s32.f32 %v527
      %v544 = vcvt.s32.f32 %v528
      %v545 = vcvt.s32.f32 %v529
      %v546 = vcvt.s32.f32 %v530
      %v547 = vcvt.s32.f32 %v531
      %v548 = vld [vmem:[%s300] sm:$0xff]
      %v549 = vld [vmem:[%s300 + $0x8] sm:$0xff]
      %v550 = vld [vmem:[%s300 + $0x10] sm:$0xff]
      %v551 = vld [vmem:[%s300 + $0x18] sm:$0xff]
      %v552 = vld [vmem:[%s300 + $0x20] sm:$0xff]
      %v553 = vld [vmem:[%s300 + $0x28] sm:$0xff]
      %v554 = vld [vmem:[%s300 + $0x30] sm:$0xff]
      %v555 = vld [vmem:[%s300 + $0x38] sm:$0xff]
      %v556 = vld [vmem:[%s300 + $0x40] sm:$0xff]
      %v557 = vld [vmem:[%s300 + $0x48] sm:$0xff]
      %v558 = vld [vmem:[%s300 + $0x50] sm:$0xff]
      %v559 = vld [vmem:[%s300 + $0x58] sm:$0xff]
      %v560 = vld [vmem:[%s300 + $0x60] sm:$0xff]
      %v561 = vld [vmem:[%s300 + $0x68] sm:$0xff]
      %v562 = vld [vmem:[%s300 + $0x70] sm:$0xff]
      %v563 = vld [vmem:[%s300 + $0x78] sm:$0xff]
      %v564 = vlaneseq
      %v565 = vshrl.u32 %v564, 7
      %v566 = vsub.s32 0, %v565
      %v567 = vrot.slane %v306, %v566
      %vm568 = vcmask 523264
      %v570 = vsel %vm568, %v548, 0
      %v573 = vsel %vm568, %v549, 0
      %v576 = vsel %vm568, %v550, 0
      %v579 = vsel %vm568, %v551, 0
      %v582 = vsel %vm568, %v552, 0
      %v585 = vsel %vm568, %v553, 0
      %v588 = vsel %vm568, %v554, 0
      %v591 = vsel %vm568, %v555, 0
      %v594 = vsel %vm568, %v556, 0
      %v597 = vsel %vm568, %v557, 0
      %v600 = vsel %vm568, %v558, 0
      %v603 = vsel %vm568, %v559, 0
      %v606 = vsel %vm568, %v560, 0
      %v609 = vsel %vm568, %v561, 0
      %v612 = vsel %vm568, %v562, 0
      %v615 = vsel %vm568, %v563, 0
      %617 = vmatprep.subr.mxu0 0.0
      %618 = vmatpush1.msra.mxu0 0.0
      %619 = vmatprep.subr.mxu0 0.0
      %620 = vmatpush1.msra.mxu0 0.0
      %621 = vmatprep.subr.mxu0 0.0
      %622 = vmatpush1.msra.mxu0 0.0
      %623 = vmatprep.subr.mxu0 0.0
      %624 = vmatpush1.msra.mxu0 0.0
      %625 = vmatprep.subr.mxu0 0.0
      %626 = vmatpush1.msra.mxu0 0.0
      %627 = vmatprep.subr.mxu0 0.0
      %628 = vmatpush1.msra.mxu0 0.0
      %629 = vmatprep.subr.mxu0 0.0
      %630 = vmatpush1.msra.mxu0 0.0
      %631 = vmatprep.subr.mxu0 0.0
      %632 = vmatpush1.msra.mxu0 0.0
      %633 = vmatprep.subr.mxu0 0.0
      %634 = vmatpush1.msra.mxu0 %v314
      %635 = vmatprep.subr.mxu0 0.0
      %636 = vmatpush1.msra.mxu0 %v313
      %637 = vmatprep.subr.mxu0 0.0
      %638 = vmatpush1.msra.mxu0 %v312
      %639 = vmatprep.subr.mxu0 0.0
      %640 = vmatpush1.msra.mxu0 %v311
      %641 = vmatprep.subr.mxu0 0.0
      %642 = vmatpush1.msra.mxu0 %v310
      %643 = vmatprep.subr.mxu0 0.0
      %644 = vmatpush1.msra.mxu0 %v309
      %645 = vmatprep.subr.mxu0 0.0
      %646 = vmatpush1.msra.mxu0 %v308
      %647 = vmatprep.subr.mxu0 0.0
      %648 = vmatpush1.msra.mxu0 %v307
      %649 = vmatprep.subr.mxu0 0.0
      %650 = vmatpush2.msra.mxu0 0.0
      %651 = vmatprep.subr.mxu0 0.0
      %652 = vmatpush2.msra.mxu0 0.0
      %653 = vmatprep.subr.mxu0 0.0
      %654 = vmatpush2.msra.mxu0 0.0
      %655 = vmatprep.subr.mxu0 0.0
      %656 = vmatpush2.msra.mxu0 0.0
      %657 = vmatprep.subr.mxu0 0.0
      %658 = vmatpush2.msra.mxu0 0.0
      %659 = vmatprep.subr.mxu0 0.0
      %660 = vmatpush2.msra.mxu0 0.0
      %661 = vmatprep.subr.mxu0 0.0
      %662 = vmatpush2.msra.mxu0 0.0
      %663 = vmatprep.subr.mxu0 0.0
      %664 = vmatpush2.msra.mxu0 0.0
      %665 = vmatprep.subr.mxu0 0.0
      %666 = vmatpush2.msra.mxu0 0.0
      %667 = vmatprep.subr.mxu0 0.0
      %668 = vmatpush2.msra.mxu0 0.0
      %669 = vmatprep.subr.mxu0 0.0
      %670 = vmatpush2.msra.mxu0 0.0
      %671 = vmatprep.subr.mxu0 0.0
      %672 = vmatpush2.msra.mxu0 0.0
      %673 = vmatprep.subr.mxu0 0.0
      %674 = vmatpush2.msra.mxu0 0.0
      %675 = vmatprep.subr.mxu0 0.0
      %676 = vmatpush2.msra.mxu0 0.0
      %677 = vmatprep.subr.mxu0 0.0
      %678 = vmatpush2.msra.mxu0 0.0
      %679 = vmatprep.subr.mxu0 0.0
      %680 = vmatpush2.msra.mxu0 0.0
      %681 = vmatprep.mubr.f32.mxu0 0.0
      %682 = vmatmul.mubr.f32.gmra.mxu0 %v570
      %v683 = vpop.f32.mrf.mxu0
      %v684 = vadd.f32 %v567, %v683
      %v685 = vpop.f32.mrf.mxu0
      %686 = vmatprep.mubr.f32.mxu0 0.0
      %687 = vmatmul.mubr.f32.gmra.mxu0 %v573
      %v688 = vpop.f32.mrf.mxu0
      %v689 = vadd.f32 %v567, %v688
      %v690 = vpop.f32.mrf.mxu0
      %691 = vmatprep.mubr.f32.mxu0 0.0
      %692 = vmatmul.mubr.f32.gmra.mxu0 %v576
      %v693 = vpop.f32.mrf.mxu0
      %v694 = vadd.f32 %v567, %v693
      %v695 = vpop.f32.mrf.mxu0
      %696 = vmatprep.mubr.f32.mxu0 0.0
      %697 = vmatmul.mubr.f32.gmra.mxu0 %v579
      %v698 = vpop.f32.mrf.mxu0
      %v699 = vadd.f32 %v567, %v698
      %v700 = vpop.f32.mrf.mxu0
      %701 = vmatprep.mubr.f32.mxu0 0.0
      %702 = vmatmul.mubr.f32.gmra.mxu0 %v582
      %v703 = vpop.f32.mrf.mxu0
      %v704 = vadd.f32 %v567, %v703
      %v705 = vpop.f32.mrf.mxu0
      %706 = vmatprep.mubr.f32.mxu0 0.0
      %707 = vmatmul.mubr.f32.gmra.mxu0 %v585
      %v708 = vpop.f32.mrf.mxu0
      %v709 = vadd.f32 %v567, %v708
      %v710 = vpop.f32.mrf.mxu0
      %711 = vmatprep.mubr.f32.mxu0 0.0
      %712 = vmatmul.mubr.f32.gmra.mxu0 %v588
      %v713 = vpop.f32.mrf.mxu0
      %v714 = vadd.f32 %v567, %v713
      %v715 = vpop.f32.mrf.mxu0
      %716 = vmatprep.mubr.f32.mxu0 0.0
      %717 = vmatmul.mubr.f32.gmra.mxu0 %v591
      %v718 = vpop.f32.mrf.mxu0
      %v719 = vadd.f32 %v567, %v718
      %v720 = vpop.f32.mrf.mxu0
      %721 = vmatprep.mubr.f32.mxu0 0.0
      %722 = vmatmul.mubr.f32.gmra.mxu0 %v594
      %v723 = vpop.f32.mrf.mxu0
      %v724 = vadd.f32 %v567, %v723
      %v725 = vpop.f32.mrf.mxu0
      %726 = vmatprep.mubr.f32.mxu0 0.0
      %727 = vmatmul.mubr.f32.gmra.mxu0 %v597
      %v728 = vpop.f32.mrf.mxu0
      %v729 = vadd.f32 %v567, %v728
      %v730 = vpop.f32.mrf.mxu0
      %731 = vmatprep.mubr.f32.mxu0 0.0
      %732 = vmatmul.mubr.f32.gmra.mxu0 %v600
      %v733 = vpop.f32.mrf.mxu0
      %v734 = vadd.f32 %v567, %v733
      %v735 = vpop.f32.mrf.mxu0
      %736 = vmatprep.mubr.f32.mxu0 0.0
      %737 = vmatmul.mubr.f32.gmra.mxu0 %v603
      %v738 = vpop.f32.mrf.mxu0
      %v739 = vadd.f32 %v567, %v738
      %v740 = vpop.f32.mrf.mxu0
      %741 = vmatprep.mubr.f32.mxu0 0.0
      %742 = vmatmul.mubr.f32.gmra.mxu0 %v606
      %v743 = vpop.f32.mrf.mxu0
      %v744 = vadd.f32 %v567, %v743
      %v745 = vpop.f32.mrf.mxu0
      %746 = vmatprep.mubr.f32.mxu0 0.0
      %747 = vmatmul.mubr.f32.gmra.mxu0 %v609
      %v748 = vpop.f32.mrf.mxu0
      %v749 = vadd.f32 %v567, %v748
      %v750 = vpop.f32.mrf.mxu0
      %751 = vmatprep.mubr.f32.mxu0 0.0
      %752 = vmatmul.mubr.f32.gmra.mxu0 %v612
      %v753 = vpop.f32.mrf.mxu0
      %v754 = vadd.f32 %v567, %v753
      %v755 = vpop.f32.mrf.mxu0
      %756 = vmatprep.mubr.f32.mxu0 0.0
      %757 = vmatmul.mubr.f32.gmra.mxu0 %v615
      %v758 = vpop.f32.mrf.mxu0
      %v759 = vadd.f32 %v567, %v758
      %v760 = vpop.f32.mrf.mxu0
      %761 = vdwg.mxu0
      %v762 = vld [vmem:[%s2] sm:$0xf]
      %vm763 = vcmask 31744
      %v765 = vsel %vm763, %v532, 0
      %v768 = vsel %vm763, %v533, 0
      %v771 = vsel %vm763, %v534, 0
      %v774 = vsel %vm763, %v535, 0
      %v777 = vsel %vm763, %v536, 0
      %v780 = vsel %vm763, %v537, 0
      %v783 = vsel %vm763, %v538, 0
      %v786 = vsel %vm763, %v539, 0
      %v789 = vsel %vm763, %v540, 0
      %v792 = vsel %vm763, %v541, 0
      %v795 = vsel %vm763, %v542, 0
      %v798 = vsel %vm763, %v543, 0
      %v801 = vsel %vm763, %v544, 0
      %v804 = vsel %vm763, %v545, 0
      %v807 = vsel %vm763, %v546, 0
      %v810 = vsel %vm763, %v547, 0
      %vm812 = vcmask 1043456
      %v814 = vsel %vm812, %v762, 0
      %816 = vmatprep.subr.mxu0 0.0
      %817 = vmatpush1.msra.mxu0 0.0
      %818 = vmatprep.subr.mxu0 0.0
      %819 = vmatpush1.msra.mxu0 0.0
      %820 = vmatprep.subr.mxu0 0.0
      %821 = vmatpush1.msra.mxu0 0.0
      %822 = vmatprep.subr.mxu0 0.0
      %823 = vmatpush1.msra.mxu0 0.0
      %824 = vmatprep.subr.mxu0 0.0
      %825 = vmatpush1.msra.mxu0 0.0
      %826 = vmatprep.subr.mxu0 0.0
      %827 = vmatpush1.msra.mxu0 0.0
      %828 = vmatprep.subr.mxu0 0.0
      %829 = vmatpush1.msra.mxu0 0.0
      %830 = vmatprep.subr.mxu0 0.0
      %831 = vmatpush1.msra.mxu0 0.0
      %832 = vmatprep.subr.mxu0 0.0
      %833 = vmatpush1.msra.mxu0 0.0
      %834 = vmatprep.subr.mxu0 0.0
      %835 = vmatpush1.msra.mxu0 0.0
      %836 = vmatprep.subr.mxu0 0.0
      %837 = vmatpush1.msra.mxu0 0.0
      %838 = vmatprep.subr.mxu0 0.0
      %839 = vmatpush1.msra.mxu0 0.0
      %840 = vmatprep.subr.mxu0 0.0
      %841 = vmatpush1.msra.mxu0 0.0
      %842 = vmatprep.subr.mxu0 0.0
      %843 = vmatpush1.msra.mxu0 0.0
      %844 = vmatprep.subr.mxu0 0.0
      %845 = vmatpush1.msra.mxu0 0.0
      %846 = vmatprep.subr.mxu0 0.0
      %847 = vmatpush1.msra.mxu0 %v814
      %848 = vmatprep.subr.mxu0 0.0
      %849 = vmatpush2.msra.mxu0 0.0
      %850 = vmatprep.subr.mxu0 0.0
      %851 = vmatpush2.msra.mxu0 0.0
      %852 = vmatprep.subr.mxu0 0.0
      %853 = vmatpush2.msra.mxu0 0.0
      %854 = vmatprep.subr.mxu0 0.0
      %855 = vmatpush2.msra.mxu0 0.0
      %856 = vmatprep.subr.mxu0 0.0
      %857 = vmatpush2.msra.mxu0 0.0
      %858 = vmatprep.subr.mxu0 0.0
      %859 = vmatpush2.msra.mxu0 0.0
      %860 = vmatprep.subr.mxu0 0.0
      %861 = vmatpush2.msra.mxu0 0.0
      %862 = vmatprep.subr.mxu0 0.0
      %863 = vmatpush2.msra.mxu0 0.0
      %864 = vmatprep.subr.mxu0 0.0
      %865 = vmatpush2.msra.mxu0 0.0
      %866 = vmatprep.subr.mxu0 0.0
      %867 = vmatpush2.msra.mxu0 0.0
      %868 = vmatprep.subr.mxu0 0.0
      %869 = vmatpush2.msra.mxu0 0.0
      %870 = vmatprep.subr.mxu0 0.0
      %871 = vmatpush2.msra.mxu0 0.0
      %872 = vmatprep.subr.mxu0 0.0
      %873 = vmatpush2.msra.mxu0 0.0
      %874 = vmatprep.subr.mxu0 0.0
      %875 = vmatpush2.msra.mxu0 0.0
      %876 = vmatprep.subr.mxu0 0.0
      %877 = vmatpush2.msra.mxu0 0.0
      %878 = vmatprep.subr.mxu0 0.0
      %879 = vmatpush2.msra.mxu0 0.0
      %880 = vmatprep.mubr.f32.mxu0 0.0
      %881 = vmatmul.mubr.f32.gmra.mxu0 %v765
      %v882 = vpop.f32.mrf.mxu0
      %v883 = vadd.f32 0.0, %v882
      %v884 = vpop.f32.mrf.mxu0
      %885 = vmatprep.mubr.f32.mxu0 0.0
      %886 = vmatmul.mubr.f32.gmra.mxu0 %v768
      %v887 = vpop.f32.mrf.mxu0
      %v888 = vadd.f32 0.0, %v887
      %v889 = vpop.f32.mrf.mxu0
      %890 = vmatprep.mubr.f32.mxu0 0.0
      %891 = vmatmul.mubr.f32.gmra.mxu0 %v771
      %v892 = vpop.f32.mrf.mxu0
      %v893 = vadd.f32 0.0, %v892
      %v894 = vpop.f32.mrf.mxu0
      %895 = vmatprep.mubr.f32.mxu0 0.0
      %896 = vmatmul.mubr.f32.gmra.mxu0 %v774
      %v897 = vpop.f32.mrf.mxu0
      %v898 = vadd.f32 0.0, %v897
      %v899 = vpop.f32.mrf.mxu0
      %900 = vmatprep.mubr.f32.mxu0 0.0
      %901 = vmatmul.mubr.f32.gmra.mxu0 %v777
      %v902 = vpop.f32.mrf.mxu0
      %v903 = vadd.f32 0.0, %v902
      %v904 = vpop.f32.mrf.mxu0
      %905 = vmatprep.mubr.f32.mxu0 0.0
      %906 = vmatmul.mubr.f32.gmra.mxu0 %v780
      %v907 = vpop.f32.mrf.mxu0
      %v908 = vadd.f32 0.0, %v907
      %v909 = vpop.f32.mrf.mxu0
      %910 = vmatprep.mubr.f32.mxu0 0.0
      %911 = vmatmul.mubr.f32.gmra.mxu0 %v783
      %v912 = vpop.f32.mrf.mxu0
      %v913 = vadd.f32 0.0, %v912
      %v914 = vpop.f32.mrf.mxu0
      %915 = vmatprep.mubr.f32.mxu0 0.0
      %916 = vmatmul.mubr.f32.gmra.mxu0 %v786
      %v917 = vpop.f32.mrf.mxu0
      %v918 = vadd.f32 0.0, %v917
      %v919 = vpop.f32.mrf.mxu0
      %920 = vmatprep.mubr.f32.mxu0 0.0
      %921 = vmatmul.mubr.f32.gmra.mxu0 %v789
      %v922 = vpop.f32.mrf.mxu0
      %v923 = vadd.f32 0.0, %v922
      %v924 = vpop.f32.mrf.mxu0
      %925 = vmatprep.mubr.f32.mxu0 0.0
      %926 = vmatmul.mubr.f32.gmra.mxu0 %v792
      %v927 = vpop.f32.mrf.mxu0
      %v928 = vadd.f32 0.0, %v927
      %v929 = vpop.f32.mrf.mxu0
      %930 = vmatprep.mubr.f32.mxu0 0.0
      %931 = vmatmul.mubr.f32.gmra.mxu0 %v795
      %v932 = vpop.f32.mrf.mxu0
      %v933 = vadd.f32 0.0, %v932
      %v934 = vpop.f32.mrf.mxu0
      %935 = vmatprep.mubr.f32.mxu0 0.0
      %936 = vmatmul.mubr.f32.gmra.mxu0 %v798
      %v937 = vpop.f32.mrf.mxu0
      %v938 = vadd.f32 0.0, %v937
      %v939 = vpop.f32.mrf.mxu0
      %940 = vmatprep.mubr.f32.mxu0 0.0
      %941 = vmatmul.mubr.f32.gmra.mxu0 %v801
      %v942 = vpop.f32.mrf.mxu0
      %v943 = vadd.f32 0.0, %v942
      %v944 = vpop.f32.mrf.mxu0
      %945 = vmatprep.mubr.f32.mxu0 0.0
      %946 = vmatmul.mubr.f32.gmra.mxu0 %v804
      %v947 = vpop.f32.mrf.mxu0
      %v948 = vadd.f32 0.0, %v947
      %v949 = vpop.f32.mrf.mxu0
      %950 = vmatprep.mubr.f32.mxu0 0.0
      %951 = vmatmul.mubr.f32.gmra.mxu0 %v807
      %v952 = vpop.f32.mrf.mxu0
      %v953 = vadd.f32 0.0, %v952
      %v954 = vpop.f32.mrf.mxu0
      %955 = vmatprep.mubr.f32.mxu0 0.0
      %956 = vmatmul.mubr.f32.gmra.mxu0 %v810
      %v957 = vpop.f32.mrf.mxu0
      %v958 = vadd.f32 0.0, %v957
      %v959 = vpop.f32.mrf.mxu0
      %960 = vdwg.mxu0
      %v961 = vld [vmem:[%s1] sm:$0xff]
      %v962 = vld [vmem:[%s1 + $0x8] sm:$0xff]
      %v963 = vld [vmem:[%s1 + $0x10] sm:$0xff]
      %v964 = vld [vmem:[%s1 + $0x18] sm:$0xff]
      %v965 = vld [vmem:[%s1 + $0x20] sm:$0xff]
      %v966 = vld [vmem:[%s1 + $0x28] sm:$0xff]
      %v967 = vld [vmem:[%s1 + $0x30] sm:$0xff]
      %v968 = vld [vmem:[%s1 + $0x38] sm:$0xff]
      %v969 = vld [vmem:[%s1 + $0x40] sm:$0xff]
      %v970 = vld [vmem:[%s1 + $0x48] sm:$0xff]
      %v971 = vld [vmem:[%s1 + $0x50] sm:$0xff]
      %v972 = vld [vmem:[%s1 + $0x58] sm:$0xff]
      %v973 = vld [vmem:[%s1 + $0x60] sm:$0xff]
      %v974 = vld [vmem:[%s1 + $0x68] sm:$0xff]
      %v975 = vld [vmem:[%s1 + $0x70] sm:$0xff]
      %v976 = vld [vmem:[%s1 + $0x78] sm:$0xff]
      %v977 = vadd.f32 %v684, %v961
      %v978 = vadd.f32 %v689, %v962
      %v979 = vadd.f32 %v694, %v963
      %v980 = vadd.f32 %v699, %v964
      %v981 = vadd.f32 %v704, %v965
      %v982 = vadd.f32 %v709, %v966
      %v983 = vadd.f32 %v714, %v967
      %v984 = vadd.f32 %v719, %v968
      %v985 = vadd.f32 %v724, %v969
      %v986 = vadd.f32 %v729, %v970
      %v987 = vadd.f32 %v734, %v971
      %v988 = vadd.f32 %v739, %v972
      %v989 = vadd.f32 %v744, %v973
      %v990 = vadd.f32 %v749, %v974
      %v991 = vadd.f32 %v754, %v975
      %v992 = vadd.f32 %v759, %v976
      %v993 = vmul.f32 %v977, %v883
      %v994 = vmul.f32 %v978, %v888
      %v995 = vmul.f32 %v979, %v893
      %v996 = vmul.f32 %v980, %v898
      %v997 = vmul.f32 %v981, %v903
      %v998 = vmul.f32 %v982, %v908
      %v999 = vmul.f32 %v983, %v913
      %v1000 = vmul.f32 %v984, %v918
      %v1001 = vmul.f32 %v985, %v923
      %v1002 = vmul.f32 %v986, %v928
      %v1003 = vmul.f32 %v987, %v933
      %v1004 = vmul.f32 %v988, %v938
      %v1005 = vmul.f32 %v989, %v943
      %v1006 = vmul.f32 %v990, %v948
      %v1007 = vmul.f32 %v991, %v953
      %v1008 = vmul.f32 %v992, %v958
      %vm1009 = vcmask 261120
      %v1010 = vsel %vm1009, %v993, 0.0
      %1011 = vadd.xlane.f32.xlu0 %v1010
      %v1012 = vpop.xlane.xlu0 %1011
      %v1013 = vsel %vm1009, %v994, 0.0
      %1014 = vadd.xlane.f32.xlu0 %v1013
      %v1015 = vpop.xlane.xlu0 %1014
      %v1016 = vsel %vm1009, %v995, 0.0
      %1017 = vadd.xlane.f32.xlu0 %v1016
      %v1018 = vpop.xlane.xlu0 %1017
      %v1019 = vsel %vm1009, %v996, 0.0
      %1020 = vadd.xlane.f32.xlu0 %v1019
      %v1021 = vpop.xlane.xlu0 %1020
      %v1022 = vsel %vm1009, %v997, 0.0
      %1023 = vadd.xlane.f32.xlu0 %v1022
      %v1024 = vpop.xlane.xlu0 %1023
      %v1025 = vsel %vm1009, %v998, 0.0
      %1026 = vadd.xlane.f32.xlu0 %v1025
      %v1027 = vpop.xlane.xlu0 %1026
      %v1028 = vsel %vm1009, %v999, 0.0
      %1029 = vadd.xlane.f32.xlu0 %v1028
      %v1030 = vpop.xlane.xlu0 %1029
      %v1031 = vsel %vm1009, %v1000, 0.0
      %1032 = vadd.xlane.f32.xlu0 %v1031
      %v1033 = vpop.xlane.xlu0 %1032
      %v1034 = vsel %vm1009, %v1001, 0.0
      %1035 = vadd.xlane.f32.xlu0 %v1034
      %v1036 = vpop.xlane.xlu0 %1035
      %v1037 = vsel %vm1009, %v1002, 0.0
      %1038 = vadd.xlane.f32.xlu0 %v1037
      %v1039 = vpop.xlane.xlu0 %1038
      %v1040 = vsel %vm1009, %v1003, 0.0
      %1041 = vadd.xlane.f32.xlu0 %v1040
      %v1042 = vpop.xlane.xlu0 %1041
      %v1043 = vsel %vm1009, %v1004, 0.0
      %1044 = vadd.xlane.f32.xlu0 %v1043
      %v1045 = vpop.xlane.xlu0 %1044
      %v1046 = vsel %vm1009, %v1005, 0.0
      %1047 = vadd.xlane.f32.xlu0 %v1046
      %v1048 = vpop.xlane.xlu0 %1047
      %v1049 = vsel %vm1009, %v1006, 0.0
      %1050 = vadd.xlane.f32.xlu0 %v1049
      %v1051 = vpop.xlane.xlu0 %1050
      %v1052 = vsel %vm1009, %v1007, 0.0
      %1053 = vadd.xlane.f32.xlu0 %v1052
      %v1054 = vpop.xlane.xlu0 %1053
      %v1055 = vsel %vm1009, %v1008, 0.0
      %1056 = vadd.xlane.f32.xlu0 %v1055
      %v1057 = vpop.xlane.xlu0 %1056
      %v1058 = vmul.f32 %v1012, 0.17677669
      %v1059 = vmul.f32 %v1015, 0.17677669
      %v1060 = vmul.f32 %v1018, 0.17677669
      %v1061 = vmul.f32 %v1021, 0.17677669
      %v1062 = vmul.f32 %v1024, 0.17677669
      %v1063 = vmul.f32 %v1027, 0.17677669
      %v1064 = vmul.f32 %v1030, 0.17677669
      %v1065 = vmul.f32 %v1033, 0.17677669
      %v1066 = vmul.f32 %v1036, 0.17677669
      %v1067 = vmul.f32 %v1039, 0.17677669
      %v1068 = vmul.f32 %v1042, 0.17677669
      %v1069 = vmul.f32 %v1045, 0.17677669
      %v1070 = vmul.f32 %v1048, 0.17677669
      %v1071 = vmul.f32 %v1051, 0.17677669
      %v1072 = vmul.f32 %v1054, 0.17677669
      %v1073 = vmul.f32 %v1057, 0.17677669
      %v1074 = vsel %vm408, %v1058, -1e+30
      %v1075 = vsel %vm409, %v1059, -1e+30
      %v1076 = vsel %vm410, %v1060, -1e+30
      %v1077 = vsel %vm411, %v1061, -1e+30
      %v1078 = vsel %vm412, %v1062, -1e+30
      %v1079 = vsel %vm413, %v1063, -1e+30
      %v1080 = vsel %vm414, %v1064, -1e+30
      %v1081 = vsel %vm415, %v1065, -1e+30
      %v1082 = vsel %vm416, %v1066, -1e+30
      %v1083 = vsel %vm417, %v1067, -1e+30
      %v1084 = vsel %vm418, %v1068, -1e+30
      %v1085 = vsel %vm419, %v1069, -1e+30
      %v1086 = vsel %vm420, %v1070, -1e+30
      %v1087 = vsel %vm421, %v1071, -1e+30
      %v1088 = vsel %vm422, %v1072, -1e+30
      %v1089 = vsel %vm423, %v1073, -1e+30
      %vm1090 = vcmask 15360
      %v1091 = vsel %vm1090, %v1074, -inf
      %v1092 = vsel %vm1090, %v1075, -inf
      %v1093 = vsel %vm1090, %v1076, -inf
      %v1094 = vsel %vm1090, %v1077, -inf
      %v1095 = vsel %vm1090, %v1078, -inf
      %v1096 = vmax.f32 %v1091, %v1095
      %v1097 = vsel %vm1090, %v1079, -inf
      %v1098 = vmax.f32 %v1092, %v1097
      %v1099 = vsel %vm1090, %v1080, -inf
      %v1100 = vmax.f32 %v1093, %v1099
      %v1101 = vsel %vm1090, %v1081, -inf
      %v1102 = vmax.f32 %v1094, %v1101
      %v1103 = vsel %vm1090, %v1082, -inf
      %v1104 = vmax.f32 %v1096, %v1103
      %v1105 = vsel %vm1090, %v1083, -inf
      %v1106 = vmax.f32 %v1098, %v1105
      %v1107 = vsel %vm1090, %v1084, -inf
      %v1108 = vmax.f32 %v1100, %v1107
      %v1109 = vsel %vm1090, %v1085, -inf
      %v1110 = vmax.f32 %v1102, %v1109
      %v1111 = vsel %vm1090, %v1086, -inf
      %v1112 = vmax.f32 %v1104, %v1111
      %v1113 = vsel %vm1090, %v1087, -inf
      %v1114 = vmax.f32 %v1106, %v1113
      %v1115 = vsel %vm1090, %v1088, -inf
      %v1116 = vmax.f32 %v1108, %v1115
      %v1117 = vsel %vm1090, %v1089, -inf
      %v1118 = vmax.f32 %v1110, %v1117
      %v1119 = vmax.f32 %v1112, %v1114
      %v1120 = vmax.f32 %v1116, %v1118
      %v1121 = vmax.f32 %v1119, %v1120
      %v1122 = vrot.slane %v1121, 4
      %v1123 = vmax.f32 %v1121, %v1122
      %v1124 = vrot.slane %v1123, 2
      %v1125 = vmax.f32 %v1123, %v1124
      %v1126 = vrot.slane %v1125, 1
      %v1127 = vmax.f32 %v1125, %v1126
      %v1128 = vsub.f32 %v1074, %v1127
      %v1129 = vsub.f32 %v1075, %v1127
      %v1130 = vsub.f32 %v1076, %v1127
      %v1131 = vsub.f32 %v1077, %v1127
      %v1132 = vsub.f32 %v1078, %v1127
      %v1133 = vsub.f32 %v1079, %v1127
      %v1134 = vsub.f32 %v1080, %v1127
      %v1135 = vsub.f32 %v1081, %v1127
      %v1136 = vsub.f32 %v1082, %v1127
      %v1137 = vsub.f32 %v1083, %v1127
      %v1138 = vsub.f32 %v1084, %v1127
      %v1139 = vsub.f32 %v1085, %v1127
      %v1140 = vsub.f32 %v1086, %v1127
      %v1141 = vsub.f32 %v1087, %v1127
      %v1142 = vsub.f32 %v1088, %v1127
      %v1143 = vsub.f32 %v1089, %v1127
      %v1144 = vmul.f32 %v1128, 1.442695
      %v1145 = vpow.pop %v1144
      %v1146 = vmul.f32 %v1129, 1.442695
      %v1147 = vpow.pop %v1146
      %v1148 = vmul.f32 %v1130, 1.442695
      %v1149 = vpow.pop %v1148
      %v1150 = vmul.f32 %v1131, 1.442695
      %v1151 = vpow.pop %v1150
      %v1152 = vmul.f32 %v1132, 1.442695
      %v1153 = vpow.pop %v1152
      %v1154 = vmul.f32 %v1133, 1.442695
      %v1155 = vpow.pop %v1154
      %v1156 = vmul.f32 %v1134, 1.442695
      %v1157 = vpow.pop %v1156
      %v1158 = vmul.f32 %v1135, 1.442695
      %v1159 = vpow.pop %v1158
      %v1160 = vmul.f32 %v1136, 1.442695
      %v1161 = vpow.pop %v1160
      %v1162 = vmul.f32 %v1137, 1.442695
      %v1163 = vpow.pop %v1162
      %v1164 = vmul.f32 %v1138, 1.442695
      %v1165 = vpow.pop %v1164
      %v1166 = vmul.f32 %v1139, 1.442695
      %v1167 = vpow.pop %v1166
      %v1168 = vmul.f32 %v1140, 1.442695
      %v1169 = vpow.pop %v1168
      %v1170 = vmul.f32 %v1141, 1.442695
      %v1171 = vpow.pop %v1170
      %v1172 = vmul.f32 %v1142, 1.442695
      %v1173 = vpow.pop %v1172
      %v1174 = vmul.f32 %v1143, 1.442695
      %v1175 = vpow.pop %v1174
      %v1176 = vmul.f32 %v1145, %v440
      %v1177 = vmul.f32 %v1147, %v441
      %v1178 = vmul.f32 %v1149, %v442
      %v1179 = vmul.f32 %v1151, %v443
      %v1180 = vmul.f32 %v1153, %v444
      %v1181 = vmul.f32 %v1155, %v445
      %v1182 = vmul.f32 %v1157, %v446
      %v1183 = vmul.f32 %v1159, %v447
      %v1184 = vmul.f32 %v1161, %v448
      %v1185 = vmul.f32 %v1163, %v449
      %v1186 = vmul.f32 %v1165, %v450
      %v1187 = vmul.f32 %v1167, %v451
      %v1188 = vmul.f32 %v1169, %v452
      %v1189 = vmul.f32 %v1171, %v453
      %v1190 = vmul.f32 %v1173, %v454
      %v1191 = vmul.f32 %v1175, %v455
      %v1192 = vsel %vm1090, %v1176, 0.0
      %v1193 = vsel %vm1090, %v1177, 0.0
      %v1194 = vadd.f32 %v1192, %v1193
      %v1195 = vsel %vm1090, %v1178, 0.0
      %v1196 = vadd.f32 %v1194, %v1195
      %v1197 = vsel %vm1090, %v1179, 0.0
      %v1198 = vadd.f32 %v1196, %v1197
      %v1199 = vsel %vm1090, %v1180, 0.0
      %v1200 = vadd.f32 %v1198, %v1199
      %v1201 = vsel %vm1090, %v1181, 0.0
      %v1202 = vadd.f32 %v1200, %v1201
      %v1203 = vsel %vm1090, %v1182, 0.0
      %v1204 = vadd.f32 %v1202, %v1203
      %v1205 = vsel %vm1090, %v1183, 0.0
      %v1206 = vadd.f32 %v1204, %v1205
      %v1207 = vsel %vm1090, %v1184, 0.0
      %v1208 = vadd.f32 %v1206, %v1207
      %v1209 = vsel %vm1090, %v1185, 0.0
      %v1210 = vadd.f32 %v1208, %v1209
      %v1211 = vsel %vm1090, %v1186, 0.0
      %v1212 = vadd.f32 %v1210, %v1211
      %v1213 = vsel %vm1090, %v1187, 0.0
      %v1214 = vadd.f32 %v1212, %v1213
      %v1215 = vsel %vm1090, %v1188, 0.0
      %v1216 = vadd.f32 %v1214, %v1215
      %v1217 = vsel %vm1090, %v1189, 0.0
      %v1218 = vadd.f32 %v1216, %v1217
      %v1219 = vsel %vm1090, %v1190, 0.0
      %v1220 = vadd.f32 %v1218, %v1219
      %v1221 = vsel %vm1090, %v1191, 0.0
      %v1222 = vadd.f32 %v1220, %v1221
      %v1223 = vrot.slane %v1222, 4
      %v1224 = vadd.f32 %v1222, %v1223
      %v1225 = vrot.slane %v1224, 2
      %v1226 = vadd.f32 %v1224, %v1225
      %v1227 = vrot.slane %v1226, 1
      %v1228 = vadd.f32 %v1226, %v1227
      %1229 = vadd.xlane.f32.xlu0 %v1192
      %v1230 = vpop.xlane.xlu0 %1229
      %1231 = vadd.xlane.f32.xlu0 %v1193
      %v1232 = vpop.xlane.xlu0 %1231
      %1233 = vadd.xlane.f32.xlu0 %v1195
      %v1234 = vpop.xlane.xlu0 %1233
      %1235 = vadd.xlane.f32.xlu0 %v1197
      %v1236 = vpop.xlane.xlu0 %1235
      %1237 = vadd.xlane.f32.xlu0 %v1199
      %v1238 = vpop.xlane.xlu0 %1237
      %1239 = vadd.xlane.f32.xlu0 %v1201
      %v1240 = vpop.xlane.xlu0 %1239
      %1241 = vadd.xlane.f32.xlu0 %v1203
      %v1242 = vpop.xlane.xlu0 %1241
      %1243 = vadd.xlane.f32.xlu0 %v1205
      %v1244 = vpop.xlane.xlu0 %1243
      %1245 = vadd.xlane.f32.xlu0 %v1207
      %v1246 = vpop.xlane.xlu0 %1245
      %1247 = vadd.xlane.f32.xlu0 %v1209
      %v1248 = vpop.xlane.xlu0 %1247
      %1249 = vadd.xlane.f32.xlu0 %v1211
      %v1250 = vpop.xlane.xlu0 %1249
      %1251 = vadd.xlane.f32.xlu0 %v1213
      %v1252 = vpop.xlane.xlu0 %1251
      %1253 = vadd.xlane.f32.xlu0 %v1215
      %v1254 = vpop.xlane.xlu0 %1253
      %1255 = vadd.xlane.f32.xlu0 %v1217
      %v1256 = vpop.xlane.xlu0 %1255
      %1257 = vadd.xlane.f32.xlu0 %v1219
      %v1258 = vpop.xlane.xlu0 %1257
      %1259 = vadd.xlane.f32.xlu0 %v1221
      %v1260 = vpop.xlane.xlu0 %1259
      %v1261 = vmul.f32 %v440, %v1228
      %v1262 = vmul.f32 %v441, %v1228
      %v1263 = vmul.f32 %v442, %v1228
      %v1264 = vmul.f32 %v443, %v1228
      %v1265 = vmul.f32 %v444, %v1228
      %v1266 = vmul.f32 %v445, %v1228
      %v1267 = vmul.f32 %v446, %v1228
      %v1268 = vmul.f32 %v447, %v1228
      %v1269 = vmul.f32 %v448, %v1228
      %v1270 = vmul.f32 %v449, %v1228
      %v1271 = vmul.f32 %v450, %v1228
      %v1272 = vmul.f32 %v451, %v1228
      %v1273 = vmul.f32 %v452, %v1228
      %v1274 = vmul.f32 %v453, %v1228
      %v1275 = vmul.f32 %v454, %v1228
      %v1276 = vmul.f32 %v455, %v1228
      %v1277 = vsel %vm1090, %v1261, 0.0
      %1278 = vadd.xlane.f32.xlu0 %v1277
      %v1279 = vpop.xlane.xlu0 %1278
      %v1280 = vsel %vm1090, %v1262, 0.0
      %1281 = vadd.xlane.f32.xlu0 %v1280
      %v1282 = vpop.xlane.xlu0 %1281
      %v1283 = vsel %vm1090, %v1263, 0.0
      %1284 = vadd.xlane.f32.xlu0 %v1283
      %v1285 = vpop.xlane.xlu0 %1284
      %v1286 = vsel %vm1090, %v1264, 0.0
      %1287 = vadd.xlane.f32.xlu0 %v1286
      %v1288 = vpop.xlane.xlu0 %1287
      %v1289 = vsel %vm1090, %v1265, 0.0
      %1290 = vadd.xlane.f32.xlu0 %v1289
      %v1291 = vpop.xlane.xlu0 %1290
      %v1292 = vsel %vm1090, %v1266, 0.0
      %1293 = vadd.xlane.f32.xlu0 %v1292
      %v1294 = vpop.xlane.xlu0 %1293
      %v1295 = vsel %vm1090, %v1267, 0.0
      %1296 = vadd.xlane.f32.xlu0 %v1295
      %v1297 = vpop.xlane.xlu0 %1296
      %v1298 = vsel %vm1090, %v1268, 0.0
      %1299 = vadd.xlane.f32.xlu0 %v1298
      %v1300 = vpop.xlane.xlu0 %1299
      %v1301 = vsel %vm1090, %v1269, 0.0
      %1302 = vadd.xlane.f32.xlu0 %v1301
      %v1303 = vpop.xlane.xlu0 %1302
      %v1304 = vsel %vm1090, %v1270, 0.0
      %1305 = vadd.xlane.f32.xlu0 %v1304
      %v1306 = vpop.xlane.xlu0 %1305
      %v1307 = vsel %vm1090, %v1271, 0.0
      %1308 = vadd.xlane.f32.xlu0 %v1307
      %v1309 = vpop.xlane.xlu0 %1308
      %v1310 = vsel %vm1090, %v1272, 0.0
      %1311 = vadd.xlane.f32.xlu0 %v1310
      %v1312 = vpop.xlane.xlu0 %1311
      %v1313 = vsel %vm1090, %v1273, 0.0
      %1314 = vadd.xlane.f32.xlu0 %v1313
      %v1315 = vpop.xlane.xlu0 %1314
      %v1316 = vsel %vm1090, %v1274, 0.0
      %1317 = vadd.xlane.f32.xlu0 %v1316
      %v1318 = vpop.xlane.xlu0 %1317
      %v1319 = vsel %vm1090, %v1275, 0.0
      %1320 = vadd.xlane.f32.xlu0 %v1319
      %v1321 = vpop.xlane.xlu0 %1320
      %v1322 = vsel %vm1090, %v1276, 0.0
      %1323 = vadd.xlane.f32.xlu0 %v1322
      %v1324 = vpop.xlane.xlu0 %1323
      %v1325 = vrcp.pop %v1279
      %v1326 = vmul.f32 %v1230, %v1325
      %v1327 = vrcp.pop %v1282
      %v1328 = vmul.f32 %v1232, %v1327
      %v1329 = vrcp.pop %v1285
      %v1330 = vmul.f32 %v1234, %v1329
      %v1331 = vrcp.pop %v1288
      %v1332 = vmul.f32 %v1236, %v1331
      %v1333 = vrcp.pop %v1291
      %v1334 = vmul.f32 %v1238, %v1333
      %v1335 = vrcp.pop %v1294
      %v1336 = vmul.f32 %v1240, %v1335
      %v1337 = vrcp.pop %v1297
      %v1338 = vmul.f32 %v1242, %v1337
      %v1339 = vrcp.pop %v1300
      %v1340 = vmul.f32 %v1244, %v1339
      %v1341 = vrcp.pop %v1303
      %v1342 = vmul.f32 %v1246, %v1341
      %v1343 = vrcp.pop %v1306
      %v1344 = vmul.f32 %v1248, %v1343
      %v1345 = vrcp.pop %v1309
      %v1346 = vmul.f32 %v1250, %v1345
      %v1347 = vrcp.pop %v1312
      %v1348 = vmul.f32 %v1252, %v1347
      %v1349 = vrcp.pop %v1315
      %v1350 = vmul.f32 %v1254, %v1349
      %v1351 = vrcp.pop %v1318
      %v1352 = vmul.f32 %v1256, %v1351
      %v1353 = vrcp.pop %v1321
      %v1354 = vmul.f32 %v1258, %v1353
      %v1355 = vrcp.pop %v1324
      %v1356 = vmul.f32 %v1260, %v1355
      %v1357 = vmul.f32 %v1326, %v684
      %v1358 = vmul.f32 %v1328, %v689
      %v1359 = vmul.f32 %v1330, %v694
      %v1360 = vmul.f32 %v1332, %v699
      %v1361 = vmul.f32 %v1334, %v704
      %v1362 = vmul.f32 %v1336, %v709
      %v1363 = vmul.f32 %v1338, %v714
      %v1364 = vmul.f32 %v1340, %v719
      %v1365 = vmul.f32 %v1342, %v724
      %v1366 = vmul.f32 %v1344, %v729
      %v1367 = vmul.f32 %v1346, %v734
      %v1368 = vmul.f32 %v1348, %v739
      %v1369 = vmul.f32 %v1350, %v744
      %v1370 = vmul.f32 %v1352, %v749
      %v1371 = vmul.f32 %v1354, %v754
      %v1372 = vmul.f32 %v1356, %v759
      %1373 = vmatprep.subr.mxu0 0.0
      %1374 = vmatpush1.msra.mxu0 %v1372
      %1375 = vmatprep.subr.mxu0 0.0
      %1376 = vmatpush1.msra.mxu0 %v1371
      %1377 = vmatprep.subr.mxu0 0.0
      %1378 = vmatpush1.msra.mxu0 %v1370
      %1379 = vmatprep.subr.mxu0 0.0
      %1380 = vmatpush1.msra.mxu0 %v1369
      %1381 = vmatprep.subr.mxu0 0.0
      %1382 = vmatpush1.msra.mxu0 %v1368
      %1383 = vmatprep.subr.mxu0 0.0
      %1384 = vmatpush1.msra.mxu0 %v1367
      %1385 = vmatprep.subr.mxu0 0.0
      %1386 = vmatpush1.msra.mxu0 %v1366
      %1387 = vmatprep.subr.mxu0 0.0
      %1388 = vmatpush1.msra.mxu0 %v1365
      %1389 = vmatprep.subr.mxu0 0.0
      %1390 = vmatpush1.msra.mxu0 %v1364
      %1391 = vmatprep.subr.mxu0 0.0
      %1392 = vmatpush1.msra.mxu0 %v1363
      %1393 = vmatprep.subr.mxu0 0.0
      %1394 = vmatpush1.msra.mxu0 %v1362
      %1395 = vmatprep.subr.mxu0 0.0
      %1396 = vmatpush1.msra.mxu0 %v1361
      %1397 = vmatprep.subr.mxu0 0.0
      %1398 = vmatpush1.msra.mxu0 %v1360
      %1399 = vmatprep.subr.mxu0 0.0
      %1400 = vmatpush1.msra.mxu0 %v1359
      %1401 = vmatprep.subr.mxu0 0.0
      %1402 = vmatpush1.msra.mxu0 %v1358
      %1403 = vmatprep.subr.mxu0 0.0
      %1404 = vmatpush1.msra.mxu0 %v1357
      %1405 = vmatprep.subr.mxu0 0.0
      %1406 = vmatpush2.msra.mxu0 0.0
      %1407 = vmatprep.subr.mxu0 0.0
      %1408 = vmatpush2.msra.mxu0 0.0
      %1409 = vmatprep.subr.mxu0 0.0
      %1410 = vmatpush2.msra.mxu0 0.0
      %1411 = vmatprep.subr.mxu0 0.0
      %1412 = vmatpush2.msra.mxu0 0.0
      %1413 = vmatprep.subr.mxu0 0.0
      %1414 = vmatpush2.msra.mxu0 0.0
      %1415 = vmatprep.subr.mxu0 0.0
      %1416 = vmatpush2.msra.mxu0 0.0
      %1417 = vmatprep.subr.mxu0 0.0
      %1418 = vmatpush2.msra.mxu0 0.0
      %1419 = vmatprep.subr.mxu0 0.0
      %1420 = vmatpush2.msra.mxu0 0.0
      %1421 = vmatprep.subr.mxu0 0.0
      %1422 = vmatpush2.msra.mxu0 0.0
      %1423 = vmatprep.subr.mxu0 0.0
      %1424 = vmatpush2.msra.mxu0 0.0
      %1425 = vmatprep.subr.mxu0 0.0
      %1426 = vmatpush2.msra.mxu0 0.0
      %1427 = vmatprep.subr.mxu0 0.0
      %1428 = vmatpush2.msra.mxu0 0.0
      %1429 = vmatprep.subr.mxu0 0.0
      %1430 = vmatpush2.msra.mxu0 0.0
      %1431 = vmatprep.subr.mxu0 0.0
      %1432 = vmatpush2.msra.mxu0 0.0
      %1433 = vmatprep.subr.mxu0 0.0
      %1434 = vmatpush2.msra.mxu0 0.0
      %1435 = vmatprep.subr.mxu0 0.0
      %1436 = vmatpush2.msra.mxu0 0.0
      %1437 = vmatprep.mubr.f32.mxu0 0.0
      %1438 = vmatmul.mubr.f32.gmra.mxu0 %v462
      %v1439 = vpop.f32.mrf.mxu0
      %v1440 = vadd.f32 0.0, %v1439
      %v1441 = vpop.f32.mrf.mxu0
      %1442 = vdwg.mxu0
      %v1444 = vsel %vm1090, %v440, 0
      %v1447 = vsel %vm1090, %v441, 0
      %v1450 = vsel %vm1090, %v442, 0
      %v1453 = vsel %vm1090, %v443, 0
      %v1456 = vsel %vm1090, %v444, 0
      %v1459 = vsel %vm1090, %v445, 0
      %v1462 = vsel %vm1090, %v446, 0
      %v1465 = vsel %vm1090, %v447, 0
      %v1468 = vsel %vm1090, %v448, 0
      %v1471 = vsel %vm1090, %v449, 0
      %v1474 = vsel %vm1090, %v450, 0
      %v1477 = vsel %vm1090, %v451, 0
      %v1480 = vsel %vm1090, %v452, 0
      %v1483 = vsel %vm1090, %v453, 0
      %v1486 = vsel %vm1090, %v454, 0
      %v1489 = vsel %vm1090, %v455, 0
      %vm1491 = vcmask 1041408
      %v1493 = vsel %vm1491, %v1440, 0
      %1495 = vmatprep.subr.mxu0 0.0
      %1496 = vmatpush1.msra.mxu0 0.0
      %1497 = vmatprep.subr.mxu0 0.0
      %1498 = vmatpush1.msra.mxu0 0.0
      %1499 = vmatprep.subr.mxu0 0.0
      %1500 = vmatpush1.msra.mxu0 0.0
      %1501 = vmatprep.subr.mxu0 0.0
      %1502 = vmatpush1.msra.mxu0 0.0
      %1503 = vmatprep.subr.mxu0 0.0
      %1504 = vmatpush1.msra.mxu0 0.0
      %1505 = vmatprep.subr.mxu0 0.0
      %1506 = vmatpush1.msra.mxu0 0.0
      %1507 = vmatprep.subr.mxu0 0.0
      %1508 = vmatpush1.msra.mxu0 0.0
      %1509 = vmatprep.subr.mxu0 0.0
      %1510 = vmatpush1.msra.mxu0 0.0
      %1511 = vmatprep.subr.mxu0 0.0
      %1512 = vmatpush1.msra.mxu0 0.0
      %1513 = vmatprep.subr.mxu0 0.0
      %1514 = vmatpush1.msra.mxu0 0.0
      %1515 = vmatprep.subr.mxu0 0.0
      %1516 = vmatpush1.msra.mxu0 0.0
      %1517 = vmatprep.subr.mxu0 0.0
      %1518 = vmatpush1.msra.mxu0 0.0
      %1519 = vmatprep.subr.mxu0 0.0
      %1520 = vmatpush1.msra.mxu0 0.0
      %1521 = vmatprep.subr.mxu0 0.0
      %1522 = vmatpush1.msra.mxu0 0.0
      %1523 = vmatprep.subr.mxu0 0.0
      %1524 = vmatpush1.msra.mxu0 0.0
      %1525 = vmatprep.subr.mxu0 0.0
      %1526 = vmatpush1.msra.mxu0 %v1493
      %1527 = vmatprep.subr.mxu0 0.0
      %1528 = vmatpush2.msra.mxu0 0.0
      %1529 = vmatprep.subr.mxu0 0.0
      %1530 = vmatpush2.msra.mxu0 0.0
      %1531 = vmatprep.subr.mxu0 0.0
      %1532 = vmatpush2.msra.mxu0 0.0
      %1533 = vmatprep.subr.mxu0 0.0
      %1534 = vmatpush2.msra.mxu0 0.0
      %1535 = vmatprep.subr.mxu0 0.0
      %1536 = vmatpush2.msra.mxu0 0.0
      %1537 = vmatprep.subr.mxu0 0.0
      %1538 = vmatpush2.msra.mxu0 0.0
      %1539 = vmatprep.subr.mxu0 0.0
      %1540 = vmatpush2.msra.mxu0 0.0
      %1541 = vmatprep.subr.mxu0 0.0
      %1542 = vmatpush2.msra.mxu0 0.0
      %1543 = vmatprep.subr.mxu0 0.0
      %1544 = vmatpush2.msra.mxu0 0.0
      %1545 = vmatprep.subr.mxu0 0.0
      %1546 = vmatpush2.msra.mxu0 0.0
      %1547 = vmatprep.subr.mxu0 0.0
      %1548 = vmatpush2.msra.mxu0 0.0
      %1549 = vmatprep.subr.mxu0 0.0
      %1550 = vmatpush2.msra.mxu0 0.0
      %1551 = vmatprep.subr.mxu0 0.0
      %1552 = vmatpush2.msra.mxu0 0.0
      %1553 = vmatprep.subr.mxu0 0.0
      %1554 = vmatpush2.msra.mxu0 0.0
      %1555 = vmatprep.subr.mxu0 0.0
      %1556 = vmatpush2.msra.mxu0 0.0
      %1557 = vmatprep.subr.mxu0 0.0
      %1558 = vmatpush2.msra.mxu0 0.0
      %1559 = vmatprep.mubr.f32.mxu0 0.0
      %1560 = vmatmul.mubr.f32.gmra.mxu0 %v1444
      %v1561 = vpop.f32.mrf.mxu0
      %v1562 = vadd.f32 0.0, %v1561
      %v1563 = vpop.f32.mrf.mxu0
      %1564 = vmatprep.mubr.f32.mxu0 0.0
      %1565 = vmatmul.mubr.f32.gmra.mxu0 %v1447
      %v1566 = vpop.f32.mrf.mxu0
      %v1567 = vadd.f32 0.0, %v1566
      %v1568 = vpop.f32.mrf.mxu0
      %1569 = vmatprep.mubr.f32.mxu0 0.0
      %1570 = vmatmul.mubr.f32.gmra.mxu0 %v1450
      %v1571 = vpop.f32.mrf.mxu0
      %v1572 = vadd.f32 0.0, %v1571
      %v1573 = vpop.f32.mrf.mxu0
      %1574 = vmatprep.mubr.f32.mxu0 0.0
      %1575 = vmatmul.mubr.f32.gmra.mxu0 %v1453
      %v1576 = vpop.f32.mrf.mxu0
      %v1577 = vadd.f32 0.0, %v1576
      %v1578 = vpop.f32.mrf.mxu0
      %1579 = vmatprep.mubr.f32.mxu0 0.0
      %1580 = vmatmul.mubr.f32.gmra.mxu0 %v1456
      %v1581 = vpop.f32.mrf.mxu0
      %v1582 = vadd.f32 0.0, %v1581
      %v1583 = vpop.f32.mrf.mxu0
      %1584 = vmatprep.mubr.f32.mxu0 0.0
      %1585 = vmatmul.mubr.f32.gmra.mxu0 %v1459
      %v1586 = vpop.f32.mrf.mxu0
      %v1587 = vadd.f32 0.0, %v1586
      %v1588 = vpop.f32.mrf.mxu0
      %1589 = vmatprep.mubr.f32.mxu0 0.0
      %1590 = vmatmul.mubr.f32.gmra.mxu0 %v1462
      %v1591 = vpop.f32.mrf.mxu0
      %v1592 = vadd.f32 0.0, %v1591
      %v1593 = vpop.f32.mrf.mxu0
      %1594 = vmatprep.mubr.f32.mxu0 0.0
      %1595 = vmatmul.mubr.f32.gmra.mxu0 %v1465
      %v1596 = vpop.f32.mrf.mxu0
      %v1597 = vadd.f32 0.0, %v1596
      %v1598 = vpop.f32.mrf.mxu0
      %1599 = vmatprep.mubr.f32.mxu0 0.0
      %1600 = vmatmul.mubr.f32.gmra.mxu0 %v1468
      %v1601 = vpop.f32.mrf.mxu0
      %v1602 = vadd.f32 0.0, %v1601
      %v1603 = vpop.f32.mrf.mxu0
      %1604 = vmatprep.mubr.f32.mxu0 0.0
      %1605 = vmatmul.mubr.f32.gmra.mxu0 %v1471
      %v1606 = vpop.f32.mrf.mxu0
      %v1607 = vadd.f32 0.0, %v1606
      %v1608 = vpop.f32.mrf.mxu0
      %1609 = vmatprep.mubr.f32.mxu0 0.0
      %1610 = vmatmul.mubr.f32.gmra.mxu0 %v1474
      %v1611 = vpop.f32.mrf.mxu0
      %v1612 = vadd.f32 0.0, %v1611
      %v1613 = vpop.f32.mrf.mxu0
      %1614 = vmatprep.mubr.f32.mxu0 0.0
      %1615 = vmatmul.mubr.f32.gmra.mxu0 %v1477
      %v1616 = vpop.f32.mrf.mxu0
      %v1617 = vadd.f32 0.0, %v1616
      %v1618 = vpop.f32.mrf.mxu0
      %1619 = vmatprep.mubr.f32.mxu0 0.0
      %1620 = vmatmul.mubr.f32.gmra.mxu0 %v1480
      %v1621 = vpop.f32.mrf.mxu0
      %v1622 = vadd.f32 0.0, %v1621
      %v1623 = vpop.f32.mrf.mxu0
      %1624 = vmatprep.mubr.f32.mxu0 0.0
      %1625 = vmatmul.mubr.f32.gmra.mxu0 %v1483
      %v1626 = vpop.f32.mrf.mxu0
      %v1627 = vadd.f32 0.0, %v1626
      %v1628 = vpop.f32.mrf.mxu0
      %1629 = vmatprep.mubr.f32.mxu0 0.0
      %1630 = vmatmul.mubr.f32.gmra.mxu0 %v1486
      %v1631 = vpop.f32.mrf.mxu0
      %v1632 = vadd.f32 0.0, %v1631
      %v1633 = vpop.f32.mrf.mxu0
      %1634 = vmatprep.mubr.f32.mxu0 0.0
      %1635 = vmatmul.mubr.f32.gmra.mxu0 %v1489
      %v1636 = vpop.f32.mrf.mxu0
      %v1637 = vadd.f32 0.0, %v1636
      %v1638 = vpop.f32.mrf.mxu0
      %1639 = vdwg.mxu0
      %v1640 = vmul.f32 %v684, %v1562
      %v1641 = vmul.f32 %v689, %v1567
      %v1642 = vmul.f32 %v694, %v1572
      %v1643 = vmul.f32 %v699, %v1577
      %v1644 = vmul.f32 %v704, %v1582
      %v1645 = vmul.f32 %v709, %v1587
      %v1646 = vmul.f32 %v714, %v1592
      %v1647 = vmul.f32 %v719, %v1597
      %v1648 = vmul.f32 %v724, %v1602
      %v1649 = vmul.f32 %v729, %v1607
      %v1650 = vmul.f32 %v734, %v1612
      %v1651 = vmul.f32 %v739, %v1617
      %v1652 = vmul.f32 %v744, %v1622
      %v1653 = vmul.f32 %v749, %v1627
      %v1654 = vmul.f32 %v754, %v1632
      %v1655 = vmul.f32 %v759, %v1637
      %v1656 = vsel %vm1009, %v1640, 0.0
      %1657 = vadd.xlane.f32.xlu0 %v1656
      %v1658 = vpop.xlane.xlu0 %1657
      %v1659 = vsel %vm1009, %v1641, 0.0
      %1660 = vadd.xlane.f32.xlu0 %v1659
      %v1661 = vpop.xlane.xlu0 %1660
      %v1662 = vsel %vm1009, %v1642, 0.0
      %1663 = vadd.xlane.f32.xlu0 %v1662
      %v1664 = vpop.xlane.xlu0 %1663
      %v1665 = vsel %vm1009, %v1643, 0.0
      %1666 = vadd.xlane.f32.xlu0 %v1665
      %v1667 = vpop.xlane.xlu0 %1666
      %v1668 = vsel %vm1009, %v1644, 0.0
      %1669 = vadd.xlane.f32.xlu0 %v1668
      %v1670 = vpop.xlane.xlu0 %1669
      %v1671 = vsel %vm1009, %v1645, 0.0
      %1672 = vadd.xlane.f32.xlu0 %v1671
      %v1673 = vpop.xlane.xlu0 %1672
      %v1674 = vsel %vm1009, %v1646, 0.0
      %1675 = vadd.xlane.f32.xlu0 %v1674
      %v1676 = vpop.xlane.xlu0 %1675
      %v1677 = vsel %vm1009, %v1647, 0.0
      %1678 = vadd.xlane.f32.xlu0 %v1677
      %v1679 = vpop.xlane.xlu0 %1678
      %v1680 = vsel %vm1009, %v1648, 0.0
      %1681 = vadd.xlane.f32.xlu0 %v1680
      %v1682 = vpop.xlane.xlu0 %1681
      %v1683 = vsel %vm1009, %v1649, 0.0
      %1684 = vadd.xlane.f32.xlu0 %v1683
      %v1685 = vpop.xlane.xlu0 %1684
      %v1686 = vsel %vm1009, %v1650, 0.0
      %1687 = vadd.xlane.f32.xlu0 %v1686
      %v1688 = vpop.xlane.xlu0 %1687
      %v1689 = vsel %vm1009, %v1651, 0.0
      %1690 = vadd.xlane.f32.xlu0 %v1689
      %v1691 = vpop.xlane.xlu0 %1690
      %v1692 = vsel %vm1009, %v1652, 0.0
      %1693 = vadd.xlane.f32.xlu0 %v1692
      %v1694 = vpop.xlane.xlu0 %1693
      %v1695 = vsel %vm1009, %v1653, 0.0
      %1696 = vadd.xlane.f32.xlu0 %v1695
      %v1697 = vpop.xlane.xlu0 %1696
      %v1698 = vsel %vm1009, %v1654, 0.0
      %1699 = vadd.xlane.f32.xlu0 %v1698
      %v1700 = vpop.xlane.xlu0 %1699
      %v1701 = vsel %vm1009, %v1655, 0.0
      %1702 = vadd.xlane.f32.xlu0 %v1701
      %v1703 = vpop.xlane.xlu0 %1702
      %v1704 = vmul.f32 %v684, %v1658
      %v1705 = vmul.f32 %v689, %v1661
      %v1706 = vmul.f32 %v694, %v1664
      %v1707 = vmul.f32 %v699, %v1667
      %v1708 = vmul.f32 %v704, %v1670
      %v1709 = vmul.f32 %v709, %v1673
      %v1710 = vmul.f32 %v714, %v1676
      %v1711 = vmul.f32 %v719, %v1679
      %v1712 = vmul.f32 %v724, %v1682
      %v1713 = vmul.f32 %v729, %v1685
      %v1714 = vmul.f32 %v734, %v1688
      %v1715 = vmul.f32 %v739, %v1691
      %v1716 = vmul.f32 %v744, %v1694
      %v1717 = vmul.f32 %v749, %v1697
      %v1718 = vmul.f32 %v754, %v1700
      %v1719 = vmul.f32 %v759, %v1703
      %v1720 = vrot.slane %v1704, 7
      %v1721 = vrot.slane %v1705, 7
      %v1722 = vrot.slane %v1706, 7
      %v1723 = vrot.slane %v1707, 7
      %v1724 = vrot.slane %v1708, 7
      %v1725 = vrot.slane %v1709, 7
      %v1726 = vrot.slane %v1710, 7
      %v1727 = vrot.slane %v1711, 7
      %v1728 = vrot.slane %v1712, 7
      %v1729 = vrot.slane %v1713, 7
      %v1730 = vrot.slane %v1714, 7
      %v1731 = vrot.slane %v1715, 7
      %v1732 = vrot.slane %v1716, 7
      %v1733 = vrot.slane %v1717, 7
      %v1734 = vrot.slane %v1718, 7
      %v1735 = vrot.slane %v1719, 7
      %vm1736 = vcmp.lt.s32.totalorder %v356, 1
      %v1737 = vsel %vm1736, %v1734, %v1735
      %v1738 = vsel %vm1736, %v1733, %v1734
      %v1739 = vsel %vm1736, %v1732, %v1733
      %v1740 = vsel %vm1736, %v1731, %v1732
      %v1741 = vsel %vm1736, %v1730, %v1731
      %v1742 = vsel %vm1736, %v1729, %v1730
      %v1743 = vsel %vm1736, %v1728, %v1729
      %v1744 = vsel %vm1736, %v1727, %v1728
      %v1745 = vsel %vm1736, %v1726, %v1727
      %v1746 = vsel %vm1736, %v1725, %v1726
      %v1747 = vsel %vm1736, %v1724, %v1725
      %v1748 = vsel %vm1736, %v1723, %v1724
      %v1749 = vsel %vm1736, %v1722, %v1723
      %v1750 = vsel %vm1736, %v1721, %v1722
      %v1751 = vsel %vm1736, %v1720, %v1721
      %v1752 = vsel %vm1736, %v1735, %v1720
      %v1753 = vrot.slane %v1704, 1
      %v1754 = vrot.slane %v1705, 1
      %v1755 = vrot.slane %v1706, 1
      %v1756 = vrot.slane %v1707, 1
      %v1757 = vrot.slane %v1708, 1
      %v1758 = vrot.slane %v1709, 1
      %v1759 = vrot.slane %v1710, 1
      %v1760 = vrot.slane %v1711, 1
      %v1761 = vrot.slane %v1712, 1
      %v1762 = vrot.slane %v1713, 1
      %v1763 = vrot.slane %v1714, 1
      %v1764 = vrot.slane %v1715, 1
      %v1765 = vrot.slane %v1716, 1
      %v1766 = vrot.slane %v1717, 1
      %v1767 = vrot.slane %v1718, 1
      %v1768 = vrot.slane %v1719, 1
      %vm1769 = vcmp.lt.s32.totalorder %v356, 7
      %v1770 = vsel %vm1769, %v1767, %v1768
      %v1771 = vsel %vm1769, %v1766, %v1767
      %v1772 = vsel %vm1769, %v1765, %v1766
      %v1773 = vsel %vm1769, %v1764, %v1765
      %v1774 = vsel %vm1769, %v1763, %v1764
      %v1775 = vsel %vm1769, %v1762, %v1763
      %v1776 = vsel %vm1769, %v1761, %v1762
      %v1777 = vsel %vm1769, %v1760, %v1761
      %v1778 = vsel %vm1769, %v1759, %v1760
      %v1779 = vsel %vm1769, %v1758, %v1759
      %v1780 = vsel %vm1769, %v1757, %v1758
      %v1781 = vsel %vm1769, %v1756, %v1757
      %v1782 = vsel %vm1769, %v1755, %v1756
      %v1783 = vsel %vm1769, %v1754, %v1755
      %v1784 = vsel %vm1769, %v1753, %v1754
      %v1785 = vsel %vm1769, %v1768, %v1753
      %1802 = vrot.lane.b32.xlu0 %v1719, 32
      %v1803 = vpop.permute.xlu0 %1802
      %1804 = vrot.lane.b32.xlu0 %v1704, 32
      %v1805 = vpop.permute.xlu0 %1804
      %1806 = vrot.lane.b32.xlu0 %v1705, 32
      %v1807 = vpop.permute.xlu0 %1806
      %1808 = vrot.lane.b32.xlu0 %v1706, 32
      %v1809 = vpop.permute.xlu0 %1808
      %1810 = vrot.lane.b32.xlu0 %v1707, 32
      %v1811 = vpop.permute.xlu0 %1810
      %1812 = vrot.lane.b32.xlu0 %v1708, 32
      %v1813 = vpop.permute.xlu0 %1812
      %1814 = vrot.lane.b32.xlu0 %v1709, 32
      %v1815 = vpop.permute.xlu0 %1814
      %1816 = vrot.lane.b32.xlu0 %v1710, 32
      %v1817 = vpop.permute.xlu0 %1816
      %1818 = vrot.lane.b32.xlu0 %v1711, 32
      %v1819 = vpop.permute.xlu0 %1818
      %1820 = vrot.lane.b32.xlu0 %v1712, 32
      %v1821 = vpop.permute.xlu0 %1820
      %1822 = vrot.lane.b32.xlu0 %v1713, 32
      %v1823 = vpop.permute.xlu0 %1822
      %1824 = vrot.lane.b32.xlu0 %v1714, 32
      %v1825 = vpop.permute.xlu0 %1824
      %1826 = vrot.lane.b32.xlu0 %v1715, 32
      %v1827 = vpop.permute.xlu0 %1826
      %1828 = vrot.lane.b32.xlu0 %v1716, 32
      %v1829 = vpop.permute.xlu0 %1828
      %1830 = vrot.lane.b32.xlu0 %v1717, 32
      %v1831 = vpop.permute.xlu0 %1830
      %1832 = vrot.lane.b32.xlu0 %v1718, 32
      %v1833 = vpop.permute.xlu0 %1832
      %1866 = vrot.lane.b32.xlu0 %v1785, 64
      %v1867 = vpop.permute.xlu0 %1866
      %1868 = vrot.lane.b32.xlu0 %v1784, 64
      %v1869 = vpop.permute.xlu0 %1868
      %1870 = vrot.lane.b32.xlu0 %v1783, 64
      %v1871 = vpop.permute.xlu0 %1870
      %1872 = vrot.lane.b32.xlu0 %v1782, 64
      %v1873 = vpop.permute.xlu0 %1872
      %1874 = vrot.lane.b32.xlu0 %v1781, 64
      %v1875 = vpop.permute.xlu0 %1874
      %1876 = vrot.lane.b32.xlu0 %v1780, 64
      %v1877 = vpop.permute.xlu0 %1876
      %1878 = vrot.lane.b32.xlu0 %v1779, 64
      %v1879 = vpop.permute.xlu0 %1878
      %1880 = vrot.lane.b32.xlu0 %v1778, 64
      %v1881 = vpop.permute.xlu0 %1880
      %1882 = vrot.lane.b32.xlu0 %v1777, 64
      %v1883 = vpop.permute.xlu0 %1882
      %1884 = vrot.lane.b32.xlu0 %v1776, 64
      %v1885 = vpop.permute.xlu0 %1884
      %1886 = vrot.lane.b32.xlu0 %v1775, 64
      %v1887 = vpop.permute.xlu0 %1886
      %1888 = vrot.lane.b32.xlu0 %v1774, 64
      %v1889 = vpop.permute.xlu0 %1888
      %1890 = vrot.lane.b32.xlu0 %v1773, 64
      %v1891 = vpop.permute.xlu0 %1890
      %1892 = vrot.lane.b32.xlu0 %v1772, 64
      %v1893 = vpop.permute.xlu0 %1892
      %1894 = vrot.lane.b32.xlu0 %v1771, 64
      %v1895 = vpop.permute.xlu0 %1894
      %1896 = vrot.lane.b32.xlu0 %v1770, 64
      %v1897 = vpop.permute.xlu0 %1896
      %1930 = vrot.lane.b32.xlu0 %v1752, 96
      %v1931 = vpop.permute.xlu0 %1930
      %1932 = vrot.lane.b32.xlu0 %v1751, 96
      %v1933 = vpop.permute.xlu0 %1932
      %1934 = vrot.lane.b32.xlu0 %v1750, 96
      %v1935 = vpop.permute.xlu0 %1934
      %1936 = vrot.lane.b32.xlu0 %v1749, 96
      %v1937 = vpop.permute.xlu0 %1936
      %1938 = vrot.lane.b32.xlu0 %v1748, 96
      %v1939 = vpop.permute.xlu0 %1938
      %1940 = vrot.lane.b32.xlu0 %v1747, 96
      %v1941 = vpop.permute.xlu0 %1940
      %1942 = vrot.lane.b32.xlu0 %v1746, 96
      %v1943 = vpop.permute.xlu0 %1942
      %1944 = vrot.lane.b32.xlu0 %v1745, 96
      %v1945 = vpop.permute.xlu0 %1944
      %1946 = vrot.lane.b32.xlu0 %v1744, 96
      %v1947 = vpop.permute.xlu0 %1946
      %1948 = vrot.lane.b32.xlu0 %v1743, 96
      %v1949 = vpop.permute.xlu0 %1948
      %1950 = vrot.lane.b32.xlu0 %v1742, 96
      %v1951 = vpop.permute.xlu0 %1950
      %1952 = vrot.lane.b32.xlu0 %v1741, 96
      %v1953 = vpop.permute.xlu0 %1952
      %1954 = vrot.lane.b32.xlu0 %v1740, 96
      %v1955 = vpop.permute.xlu0 %1954
      %1956 = vrot.lane.b32.xlu0 %v1739, 96
      %v1957 = vpop.permute.xlu0 %1956
      %1958 = vrot.lane.b32.xlu0 %v1738, 96
      %v1959 = vpop.permute.xlu0 %1958
      %1960 = vrot.lane.b32.xlu0 %v1737, 96
      %v1961 = vpop.permute.xlu0 %1960
      %1978 = vrot.lane.b32.xlu0 %v1784, 32
      %v1979 = vpop.permute.xlu0 %1978
      %1980 = vrot.lane.b32.xlu0 %v1783, 32
      %v1981 = vpop.permute.xlu0 %1980
      %1982 = vrot.lane.b32.xlu0 %v1782, 32
      %v1983 = vpop.permute.xlu0 %1982
      %1984 = vrot.lane.b32.xlu0 %v1781, 32
      %v1985 = vpop.permute.xlu0 %1984
      %1986 = vrot.lane.b32.xlu0 %v1780, 32
      %v1987 = vpop.permute.xlu0 %1986
      %1988 = vrot.lane.b32.xlu0 %v1779, 32
      %v1989 = vpop.permute.xlu0 %1988
      %1990 = vrot.lane.b32.xlu0 %v1778, 32
      %v1991 = vpop.permute.xlu0 %1990
      %1992 = vrot.lane.b32.xlu0 %v1777, 32
      %v1993 = vpop.permute.xlu0 %1992
      %1994 = vrot.lane.b32.xlu0 %v1776, 32
      %v1995 = vpop.permute.xlu0 %1994
      %1996 = vrot.lane.b32.xlu0 %v1775, 32
      %v1997 = vpop.permute.xlu0 %1996
      %1998 = vrot.lane.b32.xlu0 %v1774, 32
      %v1999 = vpop.permute.xlu0 %1998
      %2000 = vrot.lane.b32.xlu0 %v1773, 32
      %v2001 = vpop.permute.xlu0 %2000
      %2002 = vrot.lane.b32.xlu0 %v1772, 32
      %v2003 = vpop.permute.xlu0 %2002
      %2004 = vrot.lane.b32.xlu0 %v1771, 32
      %v2005 = vpop.permute.xlu0 %2004
      %2006 = vrot.lane.b32.xlu0 %v1770, 32
      %v2007 = vpop.permute.xlu0 %2006
      %2008 = vrot.lane.b32.xlu0 %v1785, 32
      %v2009 = vpop.permute.xlu0 %2008
      %2026 = vrot.lane.b32.xlu0 %v1751, 64
      %v2027 = vpop.permute.xlu0 %2026
      %2028 = vrot.lane.b32.xlu0 %v1750, 64
      %v2029 = vpop.permute.xlu0 %2028
      %2030 = vrot.lane.b32.xlu0 %v1749, 64
      %v2031 = vpop.permute.xlu0 %2030
      %2032 = vrot.lane.b32.xlu0 %v1748, 64
      %v2033 = vpop.permute.xlu0 %2032
      %2034 = vrot.lane.b32.xlu0 %v1747, 64
      %v2035 = vpop.permute.xlu0 %2034
      %2036 = vrot.lane.b32.xlu0 %v1746, 64
      %v2037 = vpop.permute.xlu0 %2036
      %2038 = vrot.lane.b32.xlu0 %v1745, 64
      %v2039 = vpop.permute.xlu0 %2038
      %2040 = vrot.lane.b32.xlu0 %v1744, 64
      %v2041 = vpop.permute.xlu0 %2040
      %2042 = vrot.lane.b32.xlu0 %v1743, 64
      %v2043 = vpop.permute.xlu0 %2042
      %2044 = vrot.lane.b32.xlu0 %v1742, 64
      %v2045 = vpop.permute.xlu0 %2044
      %2046 = vrot.lane.b32.xlu0 %v1741, 64
      %v2047 = vpop.permute.xlu0 %2046
      %2048 = vrot.lane.b32.xlu0 %v1740, 64
      %v2049 = vpop.permute.xlu0 %2048
      %2050 = vrot.lane.b32.xlu0 %v1739, 64
      %v2051 = vpop.permute.xlu0 %2050
      %2052 = vrot.lane.b32.xlu0 %v1738, 64
      %v2053 = vpop.permute.xlu0 %2052
      %2054 = vrot.lane.b32.xlu0 %v1737, 64
      %v2055 = vpop.permute.xlu0 %2054
      %2056 = vrot.lane.b32.xlu0 %v1752, 64
      %v2057 = vpop.permute.xlu0 %2056
      %2074 = vrot.lane.b32.xlu0 %v1705, 96
      %v2075 = vpop.permute.xlu0 %2074
      %2076 = vrot.lane.b32.xlu0 %v1706, 96
      %v2077 = vpop.permute.xlu0 %2076
      %2078 = vrot.lane.b32.xlu0 %v1707, 96
      %v2079 = vpop.permute.xlu0 %2078
      %2080 = vrot.lane.b32.xlu0 %v1708, 96
      %v2081 = vpop.permute.xlu0 %2080
      %2082 = vrot.lane.b32.xlu0 %v1709, 96
      %v2083 = vpop.permute.xlu0 %2082
      %2084 = vrot.lane.b32.xlu0 %v1710, 96
      %v2085 = vpop.permute.xlu0 %2084
      %2086 = vrot.lane.b32.xlu0 %v1711, 96
      %v2087 = vpop.permute.xlu0 %2086
      %2088 = vrot.lane.b32.xlu0 %v1712, 96
      %v2089 = vpop.permute.xlu0 %2088
      %2090 = vrot.lane.b32.xlu0 %v1713, 96
      %v2091 = vpop.permute.xlu0 %2090
      %2092 = vrot.lane.b32.xlu0 %v1714, 96
      %v2093 = vpop.permute.xlu0 %2092
      %2094 = vrot.lane.b32.xlu0 %v1715, 96
      %v2095 = vpop.permute.xlu0 %2094
      %2096 = vrot.lane.b32.xlu0 %v1716, 96
      %v2097 = vpop.permute.xlu0 %2096
      %2098 = vrot.lane.b32.xlu0 %v1717, 96
      %v2099 = vpop.permute.xlu0 %2098
      %2100 = vrot.lane.b32.xlu0 %v1718, 96
      %v2101 = vpop.permute.xlu0 %2100
      %2102 = vrot.lane.b32.xlu0 %v1719, 96
      %v2103 = vpop.permute.xlu0 %2102
      %2104 = vrot.lane.b32.xlu0 %v1704, 96
      %v2105 = vpop.permute.xlu0 %2104
      %v2122 = vsel %vm1009, %v1737, %v1803
      %v2123 = vsel %vm1009, %v1752, %v1805
      %v2124 = vsel %vm1009, %v1751, %v1807
      %v2125 = vsel %vm1009, %v1750, %v1809
      %v2126 = vsel %vm1009, %v1749, %v1811
      %v2127 = vsel %vm1009, %v1748, %v1813
      %v2128 = vsel %vm1009, %v1747, %v1815
      %v2129 = vsel %vm1009, %v1746, %v1817
      %v2130 = vsel %vm1009, %v1745, %v1819
      %v2131 = vsel %vm1009, %v1744, %v1821
      %v2132 = vsel %vm1009, %v1743, %v1823
      %v2133 = vsel %vm1009, %v1742, %v1825
      %v2134 = vsel %vm1009, %v1741, %v1827
      %v2135 = vsel %vm1009, %v1740, %v1829
      %v2136 = vsel %vm1009, %v1739, %v1831
      %v2137 = vsel %vm1009, %v1738, %v1833
      %v2138 = vsel %vm568, %v2122, %v1867
      %v2139 = vsel %vm568, %v2123, %v1869
      %v2140 = vsel %vm568, %v2124, %v1871
      %v2141 = vsel %vm568, %v2125, %v1873
      %v2142 = vsel %vm568, %v2126, %v1875
      %v2143 = vsel %vm568, %v2127, %v1877
      %v2144 = vsel %vm568, %v2128, %v1879
      %v2145 = vsel %vm568, %v2129, %v1881
      %v2146 = vsel %vm568, %v2130, %v1883
      %v2147 = vsel %vm568, %v2131, %v1885
      %v2148 = vsel %vm568, %v2132, %v1887
      %v2149 = vsel %vm568, %v2133, %v1889
      %v2150 = vsel %vm568, %v2134, %v1891
      %v2151 = vsel %vm568, %v2135, %v1893
      %v2152 = vsel %vm568, %v2136, %v1895
      %v2153 = vsel %vm568, %v2137, %v1897
      %vm2154 = vcmask 785408
      %v2155 = vsel %vm2154, %v2138, %v1931
      %v2156 = vsel %vm2154, %v2139, %v1933
      %v2157 = vsel %vm2154, %v2140, %v1935
      %v2158 = vsel %vm2154, %v2141, %v1937
      %v2159 = vsel %vm2154, %v2142, %v1939
      %v2160 = vsel %vm2154, %v2143, %v1941
      %v2161 = vsel %vm2154, %v2144, %v1943
      %v2162 = vsel %vm2154, %v2145, %v1945
      %v2163 = vsel %vm2154, %v2146, %v1947
      %v2164 = vsel %vm2154, %v2147, %v1949
      %v2165 = vsel %vm2154, %v2148, %v1951
      %v2166 = vsel %vm2154, %v2149, %v1953
      %v2167 = vsel %vm2154, %v2150, %v1955
      %v2168 = vsel %vm2154, %v2151, %v1957
      %v2169 = vsel %vm2154, %v2152, %v1959
      %v2170 = vsel %vm2154, %v2153, %v1961
      %v2171 = vsel %vm1009, %v1704, %v1979
      %v2172 = vsel %vm1009, %v1705, %v1981
      %v2173 = vsel %vm1009, %v1706, %v1983
      %v2174 = vsel %vm1009, %v1707, %v1985
      %v2175 = vsel %vm1009, %v1708, %v1987
      %v2176 = vsel %vm1009, %v1709, %v1989
      %v2177 = vsel %vm1009, %v1710, %v1991
      %v2178 = vsel %vm1009, %v1711, %v1993
      %v2179 = vsel %vm1009, %v1712, %v1995
      %v2180 = vsel %vm1009, %v1713, %v1997
      %v2181 = vsel %vm1009, %v1714, %v1999
      %v2182 = vsel %vm1009, %v1715, %v2001
      %v2183 = vsel %vm1009, %v1716, %v2003
      %v2184 = vsel %vm1009, %v1717, %v2005
      %v2185 = vsel %vm1009, %v1718, %v2007
      %v2186 = vsel %vm1009, %v1719, %v2009
      %v2187 = vsel %vm568, %v2171, %v2027
      %v2188 = vsel %vm568, %v2172, %v2029
      %v2189 = vsel %vm568, %v2173, %v2031
      %v2190 = vsel %vm568, %v2174, %v2033
      %v2191 = vsel %vm568, %v2175, %v2035
      %v2192 = vsel %vm568, %v2176, %v2037
      %v2193 = vsel %vm568, %v2177, %v2039
      %v2194 = vsel %vm568, %v2178, %v2041
      %v2195 = vsel %vm568, %v2179, %v2043
      %v2196 = vsel %vm568, %v2180, %v2045
      %v2197 = vsel %vm568, %v2181, %v2047
      %v2198 = vsel %vm568, %v2182, %v2049
      %v2199 = vsel %vm568, %v2183, %v2051
      %v2200 = vsel %vm568, %v2184, %v2053
      %v2201 = vsel %vm568, %v2185, %v2055
      %v2202 = vsel %vm568, %v2186, %v2057
      %v2203 = vsel %vm2154, %v2187, %v2075
      %v2204 = vsel %vm2154, %v2188, %v2077
      %v2205 = vsel %vm2154, %v2189, %v2079
      %v2206 = vsel %vm2154, %v2190, %v2081
      %v2207 = vsel %vm2154, %v2191, %v2083
      %v2208 = vsel %vm2154, %v2192, %v2085
      %v2209 = vsel %vm2154, %v2193, %v2087
      %v2210 = vsel %vm2154, %v2194, %v2089
      %v2211 = vsel %vm2154, %v2195, %v2091
      %v2212 = vsel %vm2154, %v2196, %v2093
      %v2213 = vsel %vm2154, %v2197, %v2095
      %v2214 = vsel %vm2154, %v2198, %v2097
      %v2215 = vsel %vm2154, %v2199, %v2099
      %v2216 = vsel %vm2154, %v2200, %v2101
      %v2217 = vsel %vm2154, %v2201, %v2103
      %v2218 = vsel %vm2154, %v2202, %v2105
      %v2219 = vld [vmem:[%s3] sm:$0xff]
      %v2220 = vld [vmem:[%s3 + $0x8] sm:$0xff]
      %v2221 = vld [vmem:[%s3 + $0x10] sm:$0xff]
      %v2222 = vld [vmem:[%s3 + $0x18] sm:$0xff]
      %v2223 = vld [vmem:[%s3 + $0x20] sm:$0xff]
      %v2224 = vld [vmem:[%s3 + $0x28] sm:$0xff]
      %v2225 = vld [vmem:[%s3 + $0x30] sm:$0xff]
      %v2226 = vld [vmem:[%s3 + $0x38] sm:$0xff]
      %v2227 = vld [vmem:[%s3 + $0x40] sm:$0xff]
      %v2228 = vld [vmem:[%s3 + $0x48] sm:$0xff]
      %v2229 = vld [vmem:[%s3 + $0x50] sm:$0xff]
      %v2230 = vld [vmem:[%s3 + $0x58] sm:$0xff]
      %v2231 = vld [vmem:[%s3 + $0x60] sm:$0xff]
      %v2232 = vld [vmem:[%s3 + $0x68] sm:$0xff]
      %v2233 = vld [vmem:[%s3 + $0x70] sm:$0xff]
      %v2234 = vld [vmem:[%s3 + $0x78] sm:$0xff]
      %v2235 = vld [vmem:[%s3 + $0x80] sm:$0xff]
      %v2236 = vld [vmem:[%s3 + $0x88] sm:$0xff]
      %v2237 = vld [vmem:[%s3 + $0x90] sm:$0xff]
      %v2238 = vld [vmem:[%s3 + $0x98] sm:$0xff]
      %v2239 = vld [vmem:[%s3 + $0xa0] sm:$0xff]
      %v2240 = vld [vmem:[%s3 + $0xa8] sm:$0xff]
      %v2241 = vld [vmem:[%s3 + $0xb0] sm:$0xff]
      %v2242 = vld [vmem:[%s3 + $0xb8] sm:$0xff]
      %v2243 = vld [vmem:[%s3 + $0xc0] sm:$0xff]
      %v2244 = vld [vmem:[%s3 + $0xc8] sm:$0xff]
      %v2245 = vld [vmem:[%s3 + $0xd0] sm:$0xff]
      %v2246 = vld [vmem:[%s3 + $0xd8] sm:$0xff]
      %v2247 = vld [vmem:[%s3 + $0xe0] sm:$0xff]
      %v2248 = vld [vmem:[%s3 + $0xe8] sm:$0xff]
      %v2249 = vld [vmem:[%s3 + $0xf0] sm:$0xff]
      %v2250 = vld [vmem:[%s3 + $0xf8] sm:$0xff]
      %v2251 = vld [vmem:[%s3 + $0x100] sm:$0xff]
      %v2252 = vld [vmem:[%s3 + $0x108] sm:$0xff]
      %v2253 = vld [vmem:[%s3 + $0x110] sm:$0xff]
      %v2254 = vld [vmem:[%s3 + $0x118] sm:$0xff]
      %v2255 = vld [vmem:[%s3 + $0x120] sm:$0xff]
      %v2256 = vld [vmem:[%s3 + $0x128] sm:$0xff]
      %v2257 = vld [vmem:[%s3 + $0x130] sm:$0xff]
      %v2258 = vld [vmem:[%s3 + $0x138] sm:$0xff]
      %v2259 = vld [vmem:[%s3 + $0x140] sm:$0xff]
      %v2260 = vld [vmem:[%s3 + $0x148] sm:$0xff]
      %v2261 = vld [vmem:[%s3 + $0x150] sm:$0xff]
      %v2262 = vld [vmem:[%s3 + $0x158] sm:$0xff]
      %v2263 = vld [vmem:[%s3 + $0x160] sm:$0xff]
      %v2264 = vld [vmem:[%s3 + $0x168] sm:$0xff]
      %v2265 = vld [vmem:[%s3 + $0x170] sm:$0xff]
      %v2266 = vld [vmem:[%s3 + $0x178] sm:$0xff]
      %v2267 = vmul.f32 %v2155, %v2219
      %v2268 = vmul.f32 %v2203, %v2220
      %v2269 = vmul.f32 %v1783, %v2221
      %v2270 = vmul.f32 %v2156, %v2222
      %v2271 = vmul.f32 %v2204, %v2223
      %v2272 = vmul.f32 %v1782, %v2224
      %v2273 = vmul.f32 %v2157, %v2225
      %v2274 = vmul.f32 %v2205, %v2226
      %v2275 = vmul.f32 %v1781, %v2227
      %v2276 = vmul.f32 %v2158, %v2228
      %v2277 = vmul.f32 %v2206, %v2229
      %v2278 = vmul.f32 %v1780, %v2230
      %v2279 = vmul.f32 %v2159, %v2231
      %v2280 = vmul.f32 %v2207, %v2232
      %v2281 = vmul.f32 %v1779, %v2233
      %v2282 = vmul.f32 %v2160, %v2234
      %v2283 = vmul.f32 %v2208, %v2235
      %v2284 = vmul.f32 %v1778, %v2236
      %v2285 = vmul.f32 %v2161, %v2237
      %v2286 = vmul.f32 %v2209, %v2238
      %v2287 = vmul.f32 %v1777, %v2239
      %v2288 = vmul.f32 %v2162, %v2240
      %v2289 = vmul.f32 %v2210, %v2241
      %v2290 = vmul.f32 %v1776, %v2242
      %v2291 = vmul.f32 %v2163, %v2243
      %v2292 = vmul.f32 %v2211, %v2244
      %v2293 = vmul.f32 %v1775, %v2245
      %v2294 = vmul.f32 %v2164, %v2246
      %v2295 = vmul.f32 %v2212, %v2247
      %v2296 = vmul.f32 %v1774, %v2248
      %v2297 = vmul.f32 %v2165, %v2249
      %v2298 = vmul.f32 %v2213, %v2250
      %v2299 = vmul.f32 %v1773, %v2251
      %v2300 = vmul.f32 %v2166, %v2252
      %v2301 = vmul.f32 %v2214, %v2253
      %v2302 = vmul.f32 %v1772, %v2254
      %v2303 = vmul.f32 %v2167, %v2255
      %v2304 = vmul.f32 %v2215, %v2256
      %v2305 = vmul.f32 %v1771, %v2257
      %v2306 = vmul.f32 %v2168, %v2258
      %v2307 = vmul.f32 %v2216, %v2259
      %v2308 = vmul.f32 %v1770, %v2260
      %v2309 = vmul.f32 %v2169, %v2261
      %v2310 = vmul.f32 %v2217, %v2262
      %v2311 = vmul.f32 %v1785, %v2263
      %v2312 = vmul.f32 %v2170, %v2264
      %v2313 = vmul.f32 %v2218, %v2265
      %v2314 = vmul.f32 %v1784, %v2266
      %v2315 = vlaneseq
      %v2316 = vshrl.u32 %v2315, 7
      %v2317 = vsub.s32 1, %v2316
      %v2318 = vrot.slane %v306, %v2317
      %v2320 = vsel %vm1009, %v2269, 0
      %v2323 = vsel %vm1009, %v2272, 0
      %v2326 = vsel %vm1009, %v2275, 0
      %v2329 = vsel %vm1009, %v2278, 0
      %v2332 = vsel %vm1009, %v2281, 0
      %v2335 = vsel %vm1009, %v2284, 0
      %v2338 = vsel %vm1009, %v2287, 0
      %v2341 = vsel %vm1009, %v2290, 0
      %v2344 = vsel %vm1009, %v2293, 0
      %v2347 = vsel %vm1009, %v2296, 0
      %v2350 = vsel %vm1009, %v2299, 0
      %v2353 = vsel %vm1009, %v2302, 0
      %v2356 = vsel %vm1009, %v2305, 0
      %v2359 = vsel %vm1009, %v2308, 0
      %v2362 = vsel %vm1009, %v2311, 0
      %v2365 = vsel %vm1009, %v2314, 0
      %2367 = vmatprep.subr.mxu0 0.0
      %2368 = vmatpush1.msra.mxu0 %v330
      %2369 = vmatprep.subr.mxu0 0.0
      %2370 = vmatpush1.msra.mxu0 %v329
      %2371 = vmatprep.subr.mxu0 0.0
      %2372 = vmatpush1.msra.mxu0 %v328
      %2373 = vmatprep.subr.mxu0 0.0
      %2374 = vmatpush1.msra.mxu0 %v327
      %2375 = vmatprep.subr.mxu0 0.0
      %2376 = vmatpush1.msra.mxu0 %v326
      %2377 = vmatprep.subr.mxu0 0.0
      %2378 = vmatpush1.msra.mxu0 %v325
      %2379 = vmatprep.subr.mxu0 0.0
      %2380 = vmatpush1.msra.mxu0 %v324
      %2381 = vmatprep.subr.mxu0 0.0
      %2382 = vmatpush1.msra.mxu0 %v323
      %2383 = vmatprep.subr.mxu0 0.0
      %2384 = vmatpush1.msra.mxu0 %v322
      %2385 = vmatprep.subr.mxu0 0.0
      %2386 = vmatpush1.msra.mxu0 %v321
      %2387 = vmatprep.subr.mxu0 0.0
      %2388 = vmatpush1.msra.mxu0 %v320
      %2389 = vmatprep.subr.mxu0 0.0
      %2390 = vmatpush1.msra.mxu0 %v319
      %2391 = vmatprep.subr.mxu0 0.0
      %2392 = vmatpush1.msra.mxu0 %v318
      %2393 = vmatprep.subr.mxu0 0.0
      %2394 = vmatpush1.msra.mxu0 %v317
      %2395 = vmatprep.subr.mxu0 0.0
      %2396 = vmatpush1.msra.mxu0 %v316
      %2397 = vmatprep.subr.mxu0 0.0
      %2398 = vmatpush1.msra.mxu0 %v315
      %2399 = vmatprep.subr.mxu0 0.0
      %2400 = vmatpush2.msra.mxu0 %v346
      %2401 = vmatprep.subr.mxu0 0.0
      %2402 = vmatpush2.msra.mxu0 %v345
      %2403 = vmatprep.subr.mxu0 0.0
      %2404 = vmatpush2.msra.mxu0 %v344
      %2405 = vmatprep.subr.mxu0 0.0
      %2406 = vmatpush2.msra.mxu0 %v343
      %2407 = vmatprep.subr.mxu0 0.0
      %2408 = vmatpush2.msra.mxu0 %v342
      %2409 = vmatprep.subr.mxu0 0.0
      %2410 = vmatpush2.msra.mxu0 %v341
      %2411 = vmatprep.subr.mxu0 0.0
      %2412 = vmatpush2.msra.mxu0 %v340
      %2413 = vmatprep.subr.mxu0 0.0
      %2414 = vmatpush2.msra.mxu0 %v339
      %2415 = vmatprep.subr.mxu0 0.0
      %2416 = vmatpush2.msra.mxu0 %v338
      %2417 = vmatprep.subr.mxu0 0.0
      %2418 = vmatpush2.msra.mxu0 %v337
      %2419 = vmatprep.subr.mxu0 0.0
      %2420 = vmatpush2.msra.mxu0 %v336
      %2421 = vmatprep.subr.mxu0 0.0
      %2422 = vmatpush2.msra.mxu0 %v335
      %2423 = vmatprep.subr.mxu0 0.0
      %2424 = vmatpush2.msra.mxu0 %v334
      %2425 = vmatprep.subr.mxu0 0.0
      %2426 = vmatpush2.msra.mxu0 %v333
      %2427 = vmatprep.subr.mxu0 0.0
      %2428 = vmatpush2.msra.mxu0 %v332
      %2429 = vmatprep.subr.mxu0 0.0
      %2430 = vmatpush2.msra.mxu0 %v331
      %2431 = vmatprep.mubr.f32.mxu0 %v2268
      %2432 = vmatmul.mubr.f32.gmra.mxu0 %v2267
      %v2433 = vpop.f32.mrf.mxu0
      %v2434 = vadd.f32 %v2318, %v2433
      %v2435 = vpop.f32.mrf.mxu0
      %2436 = vmatprep.mubr.f32.mxu0 %v2271
      %2437 = vmatmul.mubr.f32.gmra.mxu0 %v2270
      %v2438 = vpop.f32.mrf.mxu0
      %v2439 = vadd.f32 %v2318, %v2438
      %v2440 = vpop.f32.mrf.mxu0
      %2441 = vmatprep.mubr.f32.mxu0 %v2274
      %2442 = vmatmul.mubr.f32.gmra.mxu0 %v2273
      %v2443 = vpop.f32.mrf.mxu0
      %v2444 = vadd.f32 %v2318, %v2443
      %v2445 = vpop.f32.mrf.mxu0
      %2446 = vmatprep.mubr.f32.mxu0 %v2277
      %2447 = vmatmul.mubr.f32.gmra.mxu0 %v2276
      %v2448 = vpop.f32.mrf.mxu0
      %v2449 = vadd.f32 %v2318, %v2448
      %v2450 = vpop.f32.mrf.mxu0
      %2451 = vmatprep.mubr.f32.mxu0 %v2280
      %2452 = vmatmul.mubr.f32.gmra.mxu0 %v2279
      %v2453 = vpop.f32.mrf.mxu0
      %v2454 = vadd.f32 %v2318, %v2453
      %v2455 = vpop.f32.mrf.mxu0
      %2456 = vmatprep.mubr.f32.mxu0 %v2283
      %2457 = vmatmul.mubr.f32.gmra.mxu0 %v2282
      %v2458 = vpop.f32.mrf.mxu0
      %v2459 = vadd.f32 %v2318, %v2458
      %v2460 = vpop.f32.mrf.mxu0
      %2461 = vmatprep.mubr.f32.mxu0 %v2286
      %2462 = vmatmul.mubr.f32.gmra.mxu0 %v2285
      %v2463 = vpop.f32.mrf.mxu0
      %v2464 = vadd.f32 %v2318, %v2463
      %v2465 = vpop.f32.mrf.mxu0
      %2466 = vmatprep.mubr.f32.mxu0 %v2289
      %2467 = vmatmul.mubr.f32.gmra.mxu0 %v2288
      %v2468 = vpop.f32.mrf.mxu0
      %v2469 = vadd.f32 %v2318, %v2468
      %v2470 = vpop.f32.mrf.mxu0
      %2471 = vmatprep.mubr.f32.mxu0 %v2292
      %2472 = vmatmul.mubr.f32.gmra.mxu0 %v2291
      %v2473 = vpop.f32.mrf.mxu0
      %v2474 = vadd.f32 %v2318, %v2473
      %v2475 = vpop.f32.mrf.mxu0
      %2476 = vmatprep.mubr.f32.mxu0 %v2295
      %2477 = vmatmul.mubr.f32.gmra.mxu0 %v2294
      %v2478 = vpop.f32.mrf.mxu0
      %v2479 = vadd.f32 %v2318, %v2478
      %v2480 = vpop.f32.mrf.mxu0
      %2481 = vmatprep.mubr.f32.mxu0 %v2298
      %2482 = vmatmul.mubr.f32.gmra.mxu0 %v2297
      %v2483 = vpop.f32.mrf.mxu0
      %v2484 = vadd.f32 %v2318, %v2483
      %v2485 = vpop.f32.mrf.mxu0
      %2486 = vmatprep.mubr.f32.mxu0 %v2301
      %2487 = vmatmul.mubr.f32.gmra.mxu0 %v2300
      %v2488 = vpop.f32.mrf.mxu0
      %v2489 = vadd.f32 %v2318, %v2488
      %v2490 = vpop.f32.mrf.mxu0
      %2491 = vmatprep.mubr.f32.mxu0 %v2304
      %2492 = vmatmul.mubr.f32.gmra.mxu0 %v2303
      %v2493 = vpop.f32.mrf.mxu0
      %v2494 = vadd.f32 %v2318, %v2493
      %v2495 = vpop.f32.mrf.mxu0
      %2496 = vmatprep.mubr.f32.mxu0 %v2307
      %2497 = vmatmul.mubr.f32.gmra.mxu0 %v2306
      %v2498 = vpop.f32.mrf.mxu0
      %v2499 = vadd.f32 %v2318, %v2498
      %v2500 = vpop.f32.mrf.mxu0
      %2501 = vmatprep.mubr.f32.mxu0 %v2310
      %2502 = vmatmul.mubr.f32.gmra.mxu0 %v2309
      %v2503 = vpop.f32.mrf.mxu0
      %v2504 = vadd.f32 %v2318, %v2503
      %v2505 = vpop.f32.mrf.mxu0
      %2506 = vmatprep.mubr.f32.mxu0 %v2313
      %2507 = vmatmul.mubr.f32.gmra.mxu0 %v2312
      %v2508 = vpop.f32.mrf.mxu0
      %v2509 = vadd.f32 %v2318, %v2508
      %v2510 = vpop.f32.mrf.mxu0
      %2511 = vdwg.mxu0
      %2512 = vmatprep.subr.mxu0 0.0
      %2513 = vmatpush1.msra.mxu0 0.0
      %2514 = vmatprep.subr.mxu0 0.0
      %2515 = vmatpush1.msra.mxu0 0.0
      %2516 = vmatprep.subr.mxu0 0.0
      %2517 = vmatpush1.msra.mxu0 0.0
      %2518 = vmatprep.subr.mxu0 0.0
      %2519 = vmatpush1.msra.mxu0 0.0
      %2520 = vmatprep.subr.mxu0 0.0
      %2521 = vmatpush1.msra.mxu0 0.0
      %2522 = vmatprep.subr.mxu0 0.0
      %2523 = vmatpush1.msra.mxu0 0.0
      %2524 = vmatprep.subr.mxu0 0.0
      %2525 = vmatpush1.msra.mxu0 0.0
      %2526 = vmatprep.subr.mxu0 0.0
      %2527 = vmatpush1.msra.mxu0 0.0
      %2528 = vmatprep.subr.mxu0 0.0
      %2529 = vmatpush1.msra.mxu0 0.0
      %2530 = vmatprep.subr.mxu0 0.0
      %2531 = vmatpush1.msra.mxu0 0.0
      %2532 = vmatprep.subr.mxu0 0.0
      %2533 = vmatpush1.msra.mxu0 0.0
      %2534 = vmatprep.subr.mxu0 0.0
      %2535 = vmatpush1.msra.mxu0 0.0
      %2536 = vmatprep.subr.mxu0 0.0
      %2537 = vmatpush1.msra.mxu0 %v350
      %2538 = vmatprep.subr.mxu0 0.0
      %2539 = vmatpush1.msra.mxu0 %v349
      %2540 = vmatprep.subr.mxu0 0.0
      %2541 = vmatpush1.msra.mxu0 %v348
      %2542 = vmatprep.subr.mxu0 0.0
      %2543 = vmatpush1.msra.mxu0 %v347
      %2544 = vmatprep.subr.mxu0 0.0
      %2545 = vmatpush2.msra.mxu0 0.0
      %2546 = vmatprep.subr.mxu0 0.0
      %2547 = vmatpush2.msra.mxu0 0.0
      %2548 = vmatprep.subr.mxu0 0.0
      %2549 = vmatpush2.msra.mxu0 0.0
      %2550 = vmatprep.subr.mxu0 0.0
      %2551 = vmatpush2.msra.mxu0 0.0
      %2552 = vmatprep.subr.mxu0 0.0
      %2553 = vmatpush2.msra.mxu0 0.0
      %2554 = vmatprep.subr.mxu0 0.0
      %2555 = vmatpush2.msra.mxu0 0.0
      %2556 = vmatprep.subr.mxu0 0.0
      %2557 = vmatpush2.msra.mxu0 0.0
      %2558 = vmatprep.subr.mxu0 0.0
      %2559 = vmatpush2.msra.mxu0 0.0
      %2560 = vmatprep.subr.mxu0 0.0
      %2561 = vmatpush2.msra.mxu0 0.0
      %2562 = vmatprep.subr.mxu0 0.0
      %2563 = vmatpush2.msra.mxu0 0.0
      %2564 = vmatprep.subr.mxu0 0.0
      %2565 = vmatpush2.msra.mxu0 0.0
      %2566 = vmatprep.subr.mxu0 0.0
      %2567 = vmatpush2.msra.mxu0 0.0
      %2568 = vmatprep.subr.mxu0 0.0
      %2569 = vmatpush2.msra.mxu0 0.0
      %2570 = vmatprep.subr.mxu0 0.0
      %2571 = vmatpush2.msra.mxu0 0.0
      %2572 = vmatprep.subr.mxu0 0.0
      %2573 = vmatpush2.msra.mxu0 0.0
      %2574 = vmatprep.subr.mxu0 0.0
      %2575 = vmatpush2.msra.mxu0 0.0
      %2576 = vmatprep.mubr.f32.mxu0 0.0
      %2577 = vmatmul.mubr.f32.gmra.mxu0 %v2320
      %v2578 = vpop.f32.mrf.mxu0
      %v2579 = vadd.f32 %v2434, %v2578
      %v2580 = vpop.f32.mrf.mxu0
      %2581 = vmatprep.mubr.f32.mxu0 0.0
      %2582 = vmatmul.mubr.f32.gmra.mxu0 %v2323
      %v2583 = vpop.f32.mrf.mxu0
      %v2584 = vadd.f32 %v2439, %v2583
      %v2585 = vpop.f32.mrf.mxu0
      %2586 = vmatprep.mubr.f32.mxu0 0.0
      %2587 = vmatmul.mubr.f32.gmra.mxu0 %v2326
      %v2588 = vpop.f32.mrf.mxu0
      %v2589 = vadd.f32 %v2444, %v2588
      %v2590 = vpop.f32.mrf.mxu0
      %2591 = vmatprep.mubr.f32.mxu0 0.0
      %2592 = vmatmul.mubr.f32.gmra.mxu0 %v2329
      %v2593 = vpop.f32.mrf.mxu0
      %v2594 = vadd.f32 %v2449, %v2593
      %v2595 = vpop.f32.mrf.mxu0
      %2596 = vmatprep.mubr.f32.mxu0 0.0
      %2597 = vmatmul.mubr.f32.gmra.mxu0 %v2332
      %v2598 = vpop.f32.mrf.mxu0
      %v2599 = vadd.f32 %v2454, %v2598
      %v2600 = vpop.f32.mrf.mxu0
      %2601 = vmatprep.mubr.f32.mxu0 0.0
      %2602 = vmatmul.mubr.f32.gmra.mxu0 %v2335
      %v2603 = vpop.f32.mrf.mxu0
      %v2604 = vadd.f32 %v2459, %v2603
      %v2605 = vpop.f32.mrf.mxu0
      %2606 = vmatprep.mubr.f32.mxu0 0.0
      %2607 = vmatmul.mubr.f32.gmra.mxu0 %v2338
      %v2608 = vpop.f32.mrf.mxu0
      %v2609 = vadd.f32 %v2464, %v2608
      %v2610 = vpop.f32.mrf.mxu0
      %2611 = vmatprep.mubr.f32.mxu0 0.0
      %2612 = vmatmul.mubr.f32.gmra.mxu0 %v2341
      %v2613 = vpop.f32.mrf.mxu0
      %v2614 = vadd.f32 %v2469, %v2613
      %v2615 = vpop.f32.mrf.mxu0
      %2616 = vmatprep.mubr.f32.mxu0 0.0
      %2617 = vmatmul.mubr.f32.gmra.mxu0 %v2344
      %v2618 = vpop.f32.mrf.mxu0
      %v2619 = vadd.f32 %v2474, %v2618
      %v2620 = vpop.f32.mrf.mxu0
      %2621 = vmatprep.mubr.f32.mxu0 0.0
      %2622 = vmatmul.mubr.f32.gmra.mxu0 %v2347
      %v2623 = vpop.f32.mrf.mxu0
      %v2624 = vadd.f32 %v2479, %v2623
      %v2625 = vpop.f32.mrf.mxu0
      %2626 = vmatprep.mubr.f32.mxu0 0.0
      %2627 = vmatmul.mubr.f32.gmra.mxu0 %v2350
      %v2628 = vpop.f32.mrf.mxu0
      %v2629 = vadd.f32 %v2484, %v2628
      %v2630 = vpop.f32.mrf.mxu0
      %2631 = vmatprep.mubr.f32.mxu0 0.0
      %2632 = vmatmul.mubr.f32.gmra.mxu0 %v2353
      %v2633 = vpop.f32.mrf.mxu0
      %v2634 = vadd.f32 %v2489, %v2633
      %v2635 = vpop.f32.mrf.mxu0
      %2636 = vmatprep.mubr.f32.mxu0 0.0
      %2637 = vmatmul.mubr.f32.gmra.mxu0 %v2356
      %v2638 = vpop.f32.mrf.mxu0
      %v2639 = vadd.f32 %v2494, %v2638
      %v2640 = vpop.f32.mrf.mxu0
      %2641 = vmatprep.mubr.f32.mxu0 0.0
      %2642 = vmatmul.mubr.f32.gmra.mxu0 %v2359
      %v2643 = vpop.f32.mrf.mxu0
      %v2644 = vadd.f32 %v2499, %v2643
      %v2645 = vpop.f32.mrf.mxu0
      %2646 = vmatprep.mubr.f32.mxu0 0.0
      %2647 = vmatmul.mubr.f32.gmra.mxu0 %v2362
      %v2648 = vpop.f32.mrf.mxu0
      %v2649 = vadd.f32 %v2504, %v2648
      %v2650 = vpop.f32.mrf.mxu0
      %2651 = vmatprep.mubr.f32.mxu0 0.0
      %2652 = vmatmul.mubr.f32.gmra.mxu0 %v2365
      %v2653 = vpop.f32.mrf.mxu0
      %v2654 = vadd.f32 %v2509, %v2653
      %v2655 = vpop.f32.mrf.mxu0
      %2656 = vdwg.mxu0
      %2657 = vmatprep.subr.mxu0 0.0
      %2658 = vmatpush1.msra.mxu0 %v2654
      %2659 = vmatprep.subr.mxu0 0.0
      %2660 = vmatpush1.msra.mxu0 %v2649
      %2661 = vmatprep.subr.mxu0 0.0
      %2662 = vmatpush1.msra.mxu0 %v2644
      %2663 = vmatprep.subr.mxu0 0.0
      %2664 = vmatpush1.msra.mxu0 %v2639
      %2665 = vmatprep.subr.mxu0 0.0
      %2666 = vmatpush1.msra.mxu0 %v2634
      %2667 = vmatprep.subr.mxu0 0.0
      %2668 = vmatpush1.msra.mxu0 %v2629
      %2669 = vmatprep.subr.mxu0 0.0
      %2670 = vmatpush1.msra.mxu0 %v2624
      %2671 = vmatprep.subr.mxu0 0.0
      %2672 = vmatpush1.msra.mxu0 %v2619
      %2673 = vmatprep.subr.mxu0 0.0
      %2674 = vmatpush1.msra.mxu0 %v2614
      %2675 = vmatprep.subr.mxu0 0.0
      %2676 = vmatpush1.msra.mxu0 %v2609
      %2677 = vmatprep.subr.mxu0 0.0
      %2678 = vmatpush1.msra.mxu0 %v2604
      %2679 = vmatprep.subr.mxu0 0.0
      %2680 = vmatpush1.msra.mxu0 %v2599
      %2681 = vmatprep.subr.mxu0 0.0
      %2682 = vmatpush1.msra.mxu0 %v2594
      %2683 = vmatprep.subr.mxu0 0.0
      %2684 = vmatpush1.msra.mxu0 %v2589
      %2685 = vmatprep.subr.mxu0 0.0
      %2686 = vmatpush1.msra.mxu0 %v2584
      %2687 = vmatprep.subr.mxu0 0.0
      %2688 = vmatpush1.msra.mxu0 %v2579
      %2689 = vmatprep.subr.mxu0 0.0
      %2690 = vmatpush2.msra.mxu0 0.0
      %2691 = vmatprep.subr.mxu0 0.0
      %2692 = vmatpush2.msra.mxu0 0.0
      %2693 = vmatprep.subr.mxu0 0.0
      %2694 = vmatpush2.msra.mxu0 0.0
      %2695 = vmatprep.subr.mxu0 0.0
      %2696 = vmatpush2.msra.mxu0 0.0
      %2697 = vmatprep.subr.mxu0 0.0
      %2698 = vmatpush2.msra.mxu0 0.0
      %2699 = vmatprep.subr.mxu0 0.0
      %2700 = vmatpush2.msra.mxu0 0.0
      %2701 = vmatprep.subr.mxu0 0.0
      %2702 = vmatpush2.msra.mxu0 0.0
      %2703 = vmatprep.subr.mxu0 0.0
      %2704 = vmatpush2.msra.mxu0 0.0
      %2705 = vmatprep.subr.mxu0 0.0
      %2706 = vmatpush2.msra.mxu0 0.0
      %2707 = vmatprep.subr.mxu0 0.0
      %2708 = vmatpush2.msra.mxu0 0.0
      %2709 = vmatprep.subr.mxu0 0.0
      %2710 = vmatpush2.msra.mxu0 0.0
      %2711 = vmatprep.subr.mxu0 0.0
      %2712 = vmatpush2.msra.mxu0 0.0
      %2713 = vmatprep.subr.mxu0 0.0
      %2714 = vmatpush2.msra.mxu0 0.0
      %2715 = vmatprep.subr.mxu0 0.0
      %2716 = vmatpush2.msra.mxu0 0.0
      %2717 = vmatprep.subr.mxu0 0.0
      %2718 = vmatpush2.msra.mxu0 0.0
      %2719 = vmatprep.subr.mxu0 0.0
      %2720 = vmatpush2.msra.mxu0 0.0
      %2721 = vmatprep.mubr.f32.mxu0 0.0
      %2722 = vmatmul.mubr.f32.gmra.mxu0 %v462
      %v2723 = vpop.f32.mrf.mxu0
      %v2724 = vadd.f32 0.0, %v2723
      %v2725 = vpop.f32.mrf.mxu0
      %2726 = vdwg.mxu0
      %v2727 = vmul.f32 %v2724, 0.015625
      %v2728 = vmul.f32 %v2579, %v2579
      %v2729 = vmul.f32 %v2584, %v2584
      %v2730 = vmul.f32 %v2589, %v2589
      %v2731 = vmul.f32 %v2594, %v2594
      %v2732 = vmul.f32 %v2599, %v2599
      %v2733 = vmul.f32 %v2604, %v2604
      %v2734 = vmul.f32 %v2609, %v2609
      %v2735 = vmul.f32 %v2614, %v2614
      %v2736 = vmul.f32 %v2619, %v2619
      %v2737 = vmul.f32 %v2624, %v2624
      %v2738 = vmul.f32 %v2629, %v2629
      %v2739 = vmul.f32 %v2634, %v2634
      %v2740 = vmul.f32 %v2639, %v2639
      %v2741 = vmul.f32 %v2644, %v2644
      %v2742 = vmul.f32 %v2649, %v2649
      %v2743 = vmul.f32 %v2654, %v2654
      %2744 = vmatprep.subr.mxu0 0.0
      %2745 = vmatpush1.msra.mxu0 %v2743
      %2746 = vmatprep.subr.mxu0 0.0
      %2747 = vmatpush1.msra.mxu0 %v2742
      %2748 = vmatprep.subr.mxu0 0.0
      %2749 = vmatpush1.msra.mxu0 %v2741
      %2750 = vmatprep.subr.mxu0 0.0
      %2751 = vmatpush1.msra.mxu0 %v2740
      %2752 = vmatprep.subr.mxu0 0.0
      %2753 = vmatpush1.msra.mxu0 %v2739
      %2754 = vmatprep.subr.mxu0 0.0
      %2755 = vmatpush1.msra.mxu0 %v2738
      %2756 = vmatprep.subr.mxu0 0.0
      %2757 = vmatpush1.msra.mxu0 %v2737
      %2758 = vmatprep.subr.mxu0 0.0
      %2759 = vmatpush1.msra.mxu0 %v2736
      %2760 = vmatprep.subr.mxu0 0.0
      %2761 = vmatpush1.msra.mxu0 %v2735
      %2762 = vmatprep.subr.mxu0 0.0
      %2763 = vmatpush1.msra.mxu0 %v2734
      %2764 = vmatprep.subr.mxu0 0.0
      %2765 = vmatpush1.msra.mxu0 %v2733
      %2766 = vmatprep.subr.mxu0 0.0
      %2767 = vmatpush1.msra.mxu0 %v2732
      %2768 = vmatprep.subr.mxu0 0.0
      %2769 = vmatpush1.msra.mxu0 %v2731
      %2770 = vmatprep.subr.mxu0 0.0
      %2771 = vmatpush1.msra.mxu0 %v2730
      %2772 = vmatprep.subr.mxu0 0.0
      %2773 = vmatpush1.msra.mxu0 %v2729
      %2774 = vmatprep.subr.mxu0 0.0
      %2775 = vmatpush1.msra.mxu0 %v2728
      %2776 = vmatprep.subr.mxu0 0.0
      %2777 = vmatpush2.msra.mxu0 0.0
      %2778 = vmatprep.subr.mxu0 0.0
      %2779 = vmatpush2.msra.mxu0 0.0
      %2780 = vmatprep.subr.mxu0 0.0
      %2781 = vmatpush2.msra.mxu0 0.0
      %2782 = vmatprep.subr.mxu0 0.0
      %2783 = vmatpush2.msra.mxu0 0.0
      %2784 = vmatprep.subr.mxu0 0.0
      %2785 = vmatpush2.msra.mxu0 0.0
      %2786 = vmatprep.subr.mxu0 0.0
      %2787 = vmatpush2.msra.mxu0 0.0
      %2788 = vmatprep.subr.mxu0 0.0
      %2789 = vmatpush2.msra.mxu0 0.0
      %2790 = vmatprep.subr.mxu0 0.0
      %2791 = vmatpush2.msra.mxu0 0.0
      %2792 = vmatprep.subr.mxu0 0.0
      %2793 = vmatpush2.msra.mxu0 0.0
      %2794 = vmatprep.subr.mxu0 0.0
      %2795 = vmatpush2.msra.mxu0 0.0
      %2796 = vmatprep.subr.mxu0 0.0
      %2797 = vmatpush2.msra.mxu0 0.0
      %2798 = vmatprep.subr.mxu0 0.0
      %2799 = vmatpush2.msra.mxu0 0.0
      %2800 = vmatprep.subr.mxu0 0.0
      %2801 = vmatpush2.msra.mxu0 0.0
      %2802 = vmatprep.subr.mxu0 0.0
      %2803 = vmatpush2.msra.mxu0 0.0
      %2804 = vmatprep.subr.mxu0 0.0
      %2805 = vmatpush2.msra.mxu0 0.0
      %2806 = vmatprep.subr.mxu0 0.0
      %2807 = vmatpush2.msra.mxu0 0.0
      %2808 = vmatprep.mubr.f32.mxu0 0.0
      %2809 = vmatmul.mubr.f32.gmra.mxu0 %v462
      %v2810 = vpop.f32.mrf.mxu0
      %v2811 = vadd.f32 0.0, %v2810
      %v2812 = vpop.f32.mrf.mxu0
      %2813 = vdwg.mxu0
      %v2814 = vmul.f32 %v2811, 0.015625
      %v2815 = vmul.f32 %v2727, %v2727
      %v2816 = vsub.f32 %v2814, %v2815
      %v2817 = vmax.f32 %v2816, 0.0
      %v2818 = vadd.f32 %v2817, 1e-05
      %v2819 = vrsqrt.pop %v2818
      %v2820 = vlaneseq
      %v2821 = vshrl.u32 %v2820, 7
      %v2822 = vsub.s32 2, %v2821
      %v2823 = vrot.slane %v306, %v2822
      %v2824 = vmul.f32 %v2819, %v2823
      %v2825 = vmul.f32 %v2727, %v2824
      %v2826 = vlaneseq
      %v2827 = vshrl.u32 %v2826, 7
      %v2828 = vsub.s32 3, %v2827
      %v2829 = vrot.slane %v306, %v2828
      %v2830 = vsub.f32 %v2829, %v2825
      %v2832 = vsel %vm1491, %v2824, 0
      %2834 = vmatprep.subr.mxu0 0.0
      %2835 = vmatpush1.msra.mxu0 0.0
      %2836 = vmatprep.subr.mxu0 0.0
      %2837 = vmatpush1.msra.mxu0 0.0
      %2838 = vmatprep.subr.mxu0 0.0
      %2839 = vmatpush1.msra.mxu0 0.0
      %2840 = vmatprep.subr.mxu0 0.0
      %2841 = vmatpush1.msra.mxu0 0.0
      %2842 = vmatprep.subr.mxu0 0.0
      %2843 = vmatpush1.msra.mxu0 0.0
      %2844 = vmatprep.subr.mxu0 0.0
      %2845 = vmatpush1.msra.mxu0 0.0
      %2846 = vmatprep.subr.mxu0 0.0
      %2847 = vmatpush1.msra.mxu0 0.0
      %2848 = vmatprep.subr.mxu0 0.0
      %2849 = vmatpush1.msra.mxu0 0.0
      %2850 = vmatprep.subr.mxu0 0.0
      %2851 = vmatpush1.msra.mxu0 0.0
      %2852 = vmatprep.subr.mxu0 0.0
      %2853 = vmatpush1.msra.mxu0 0.0
      %2854 = vmatprep.subr.mxu0 0.0
      %2855 = vmatpush1.msra.mxu0 0.0
      %2856 = vmatprep.subr.mxu0 0.0
      %2857 = vmatpush1.msra.mxu0 0.0
      %2858 = vmatprep.subr.mxu0 0.0
      %2859 = vmatpush1.msra.mxu0 0.0
      %2860 = vmatprep.subr.mxu0 0.0
      %2861 = vmatpush1.msra.mxu0 0.0
      %2862 = vmatprep.subr.mxu0 0.0
      %2863 = vmatpush1.msra.mxu0 0.0
      %2864 = vmatprep.subr.mxu0 0.0
      %2865 = vmatpush1.msra.mxu0 %v2832
      %2866 = vmatprep.subr.mxu0 0.0
      %2867 = vmatpush2.msra.mxu0 0.0
      %2868 = vmatprep.subr.mxu0 0.0
      %2869 = vmatpush2.msra.mxu0 0.0
      %2870 = vmatprep.subr.mxu0 0.0
      %2871 = vmatpush2.msra.mxu0 0.0
      %2872 = vmatprep.subr.mxu0 0.0
      %2873 = vmatpush2.msra.mxu0 0.0
      %2874 = vmatprep.subr.mxu0 0.0
      %2875 = vmatpush2.msra.mxu0 0.0
      %2876 = vmatprep.subr.mxu0 0.0
      %2877 = vmatpush2.msra.mxu0 0.0
      %2878 = vmatprep.subr.mxu0 0.0
      %2879 = vmatpush2.msra.mxu0 0.0
      %2880 = vmatprep.subr.mxu0 0.0
      %2881 = vmatpush2.msra.mxu0 0.0
      %2882 = vmatprep.subr.mxu0 0.0
      %2883 = vmatpush2.msra.mxu0 0.0
      %2884 = vmatprep.subr.mxu0 0.0
      %2885 = vmatpush2.msra.mxu0 0.0
      %2886 = vmatprep.subr.mxu0 0.0
      %2887 = vmatpush2.msra.mxu0 0.0
      %2888 = vmatprep.subr.mxu0 0.0
      %2889 = vmatpush2.msra.mxu0 0.0
      %2890 = vmatprep.subr.mxu0 0.0
      %2891 = vmatpush2.msra.mxu0 0.0
      %2892 = vmatprep.subr.mxu0 0.0
      %2893 = vmatpush2.msra.mxu0 0.0
      %2894 = vmatprep.subr.mxu0 0.0
      %2895 = vmatpush2.msra.mxu0 0.0
      %2896 = vmatprep.subr.mxu0 0.0
      %2897 = vmatpush2.msra.mxu0 0.0
      %2898 = vmatprep.mubr.f32.mxu0 0.0
      %2899 = vmatmul.mubr.f32.gmra.mxu0 %v1444
      %v2900 = vpop.f32.mrf.mxu0
      %v2901 = vadd.f32 0.0, %v2900
      %v2902 = vpop.f32.mrf.mxu0
      %2903 = vmatprep.mubr.f32.mxu0 0.0
      %2904 = vmatmul.mubr.f32.gmra.mxu0 %v1447
      %v2905 = vpop.f32.mrf.mxu0
      %v2906 = vadd.f32 0.0, %v2905
      %v2907 = vpop.f32.mrf.mxu0
      %2908 = vmatprep.mubr.f32.mxu0 0.0
      %2909 = vmatmul.mubr.f32.gmra.mxu0 %v1450
      %v2910 = vpop.f32.mrf.mxu0
      %v2911 = vadd.f32 0.0, %v2910
      %v2912 = vpop.f32.mrf.mxu0
      %2913 = vmatprep.mubr.f32.mxu0 0.0
      %2914 = vmatmul.mubr.f32.gmra.mxu0 %v1453
      %v2915 = vpop.f32.mrf.mxu0
      %v2916 = vadd.f32 0.0, %v2915
      %v2917 = vpop.f32.mrf.mxu0
      %2918 = vmatprep.mubr.f32.mxu0 0.0
      %2919 = vmatmul.mubr.f32.gmra.mxu0 %v1456
      %v2920 = vpop.f32.mrf.mxu0
      %v2921 = vadd.f32 0.0, %v2920
      %v2922 = vpop.f32.mrf.mxu0
      %2923 = vmatprep.mubr.f32.mxu0 0.0
      %2924 = vmatmul.mubr.f32.gmra.mxu0 %v1459
      %v2925 = vpop.f32.mrf.mxu0
      %v2926 = vadd.f32 0.0, %v2925
      %v2927 = vpop.f32.mrf.mxu0
      %2928 = vmatprep.mubr.f32.mxu0 0.0
      %2929 = vmatmul.mubr.f32.gmra.mxu0 %v1462
      %v2930 = vpop.f32.mrf.mxu0
      %v2931 = vadd.f32 0.0, %v2930
      %v2932 = vpop.f32.mrf.mxu0
      %2933 = vmatprep.mubr.f32.mxu0 0.0
      %2934 = vmatmul.mubr.f32.gmra.mxu0 %v1465
      %v2935 = vpop.f32.mrf.mxu0
      %v2936 = vadd.f32 0.0, %v2935
      %v2937 = vpop.f32.mrf.mxu0
      %2938 = vmatprep.mubr.f32.mxu0 0.0
      %2939 = vmatmul.mubr.f32.gmra.mxu0 %v1468
      %v2940 = vpop.f32.mrf.mxu0
      %v2941 = vadd.f32 0.0, %v2940
      %v2942 = vpop.f32.mrf.mxu0
      %2943 = vmatprep.mubr.f32.mxu0 0.0
      %2944 = vmatmul.mubr.f32.gmra.mxu0 %v1471
      %v2945 = vpop.f32.mrf.mxu0
      %v2946 = vadd.f32 0.0, %v2945
      %v2947 = vpop.f32.mrf.mxu0
      %2948 = vmatprep.mubr.f32.mxu0 0.0
      %2949 = vmatmul.mubr.f32.gmra.mxu0 %v1474
      %v2950 = vpop.f32.mrf.mxu0
      %v2951 = vadd.f32 0.0, %v2950
      %v2952 = vpop.f32.mrf.mxu0
      %2953 = vmatprep.mubr.f32.mxu0 0.0
      %2954 = vmatmul.mubr.f32.gmra.mxu0 %v1477
      %v2955 = vpop.f32.mrf.mxu0
      %v2956 = vadd.f32 0.0, %v2955
      %v2957 = vpop.f32.mrf.mxu0
      %2958 = vmatprep.mubr.f32.mxu0 0.0
      %2959 = vmatmul.mubr.f32.gmra.mxu0 %v1480
      %v2960 = vpop.f32.mrf.mxu0
      %v2961 = vadd.f32 0.0, %v2960
      %v2962 = vpop.f32.mrf.mxu0
      %2963 = vmatprep.mubr.f32.mxu0 0.0
      %2964 = vmatmul.mubr.f32.gmra.mxu0 %v1483
      %v2965 = vpop.f32.mrf.mxu0
      %v2966 = vadd.f32 0.0, %v2965
      %v2967 = vpop.f32.mrf.mxu0
      %2968 = vmatprep.mubr.f32.mxu0 0.0
      %2969 = vmatmul.mubr.f32.gmra.mxu0 %v1486
      %v2970 = vpop.f32.mrf.mxu0
      %v2971 = vadd.f32 0.0, %v2970
      %v2972 = vpop.f32.mrf.mxu0
      %2973 = vmatprep.mubr.f32.mxu0 0.0
      %2974 = vmatmul.mubr.f32.gmra.mxu0 %v1489
      %v2975 = vpop.f32.mrf.mxu0
      %v2976 = vadd.f32 0.0, %v2975
      %v2977 = vpop.f32.mrf.mxu0
      %2978 = vdwg.mxu0
      %v2979 = vmul.f32 %v2579, %v2901
      %v2980 = vmul.f32 %v2584, %v2906
      %v2981 = vmul.f32 %v2589, %v2911
      %v2982 = vmul.f32 %v2594, %v2916
      %v2983 = vmul.f32 %v2599, %v2921
      %v2984 = vmul.f32 %v2604, %v2926
      %v2985 = vmul.f32 %v2609, %v2931
      %v2986 = vmul.f32 %v2614, %v2936
      %v2987 = vmul.f32 %v2619, %v2941
      %v2988 = vmul.f32 %v2624, %v2946
      %v2989 = vmul.f32 %v2629, %v2951
      %v2990 = vmul.f32 %v2634, %v2956
      %v2991 = vmul.f32 %v2639, %v2961
      %v2992 = vmul.f32 %v2644, %v2966
      %v2993 = vmul.f32 %v2649, %v2971
      %v2994 = vmul.f32 %v2654, %v2976
      %v2996 = vsel %vm1491, %v2830, 0
      %2998 = vmatprep.subr.mxu0 0.0
      %2999 = vmatpush1.msra.mxu0 0.0
      %3000 = vmatprep.subr.mxu0 0.0
      %3001 = vmatpush1.msra.mxu0 0.0
      %3002 = vmatprep.subr.mxu0 0.0
      %3003 = vmatpush1.msra.mxu0 0.0
      %3004 = vmatprep.subr.mxu0 0.0
      %3005 = vmatpush1.msra.mxu0 0.0
      %3006 = vmatprep.subr.mxu0 0.0
      %3007 = vmatpush1.msra.mxu0 0.0
      %3008 = vmatprep.subr.mxu0 0.0
      %3009 = vmatpush1.msra.mxu0 0.0
      %3010 = vmatprep.subr.mxu0 0.0
      %3011 = vmatpush1.msra.mxu0 0.0
      %3012 = vmatprep.subr.mxu0 0.0
      %3013 = vmatpush1.msra.mxu0 0.0
      %3014 = vmatprep.subr.mxu0 0.0
      %3015 = vmatpush1.msra.mxu0 0.0
      %3016 = vmatprep.subr.mxu0 0.0
      %3017 = vmatpush1.msra.mxu0 0.0
      %3018 = vmatprep.subr.mxu0 0.0
      %3019 = vmatpush1.msra.mxu0 0.0
      %3020 = vmatprep.subr.mxu0 0.0
      %3021 = vmatpush1.msra.mxu0 0.0
      %3022 = vmatprep.subr.mxu0 0.0
      %3023 = vmatpush1.msra.mxu0 0.0
      %3024 = vmatprep.subr.mxu0 0.0
      %3025 = vmatpush1.msra.mxu0 0.0
      %3026 = vmatprep.subr.mxu0 0.0
      %3027 = vmatpush1.msra.mxu0 0.0
      %3028 = vmatprep.subr.mxu0 0.0
      %3029 = vmatpush1.msra.mxu0 %v2996
      %3030 = vmatprep.subr.mxu0 0.0
      %3031 = vmatpush2.msra.mxu0 0.0
      %3032 = vmatprep.subr.mxu0 0.0
      %3033 = vmatpush2.msra.mxu0 0.0
      %3034 = vmatprep.subr.mxu0 0.0
      %3035 = vmatpush2.msra.mxu0 0.0
      %3036 = vmatprep.subr.mxu0 0.0
      %3037 = vmatpush2.msra.mxu0 0.0
      %3038 = vmatprep.subr.mxu0 0.0
      %3039 = vmatpush2.msra.mxu0 0.0
      %3040 = vmatprep.subr.mxu0 0.0
      %3041 = vmatpush2.msra.mxu0 0.0
      %3042 = vmatprep.subr.mxu0 0.0
      %3043 = vmatpush2.msra.mxu0 0.0
      %3044 = vmatprep.subr.mxu0 0.0
      %3045 = vmatpush2.msra.mxu0 0.0
      %3046 = vmatprep.subr.mxu0 0.0
      %3047 = vmatpush2.msra.mxu0 0.0
      %3048 = vmatprep.subr.mxu0 0.0
      %3049 = vmatpush2.msra.mxu0 0.0
      %3050 = vmatprep.subr.mxu0 0.0
      %3051 = vmatpush2.msra.mxu0 0.0
      %3052 = vmatprep.subr.mxu0 0.0
      %3053 = vmatpush2.msra.mxu0 0.0
      %3054 = vmatprep.subr.mxu0 0.0
      %3055 = vmatpush2.msra.mxu0 0.0
      %3056 = vmatprep.subr.mxu0 0.0
      %3057 = vmatpush2.msra.mxu0 0.0
      %3058 = vmatprep.subr.mxu0 0.0
      %3059 = vmatpush2.msra.mxu0 0.0
      %3060 = vmatprep.subr.mxu0 0.0
      %3061 = vmatpush2.msra.mxu0 0.0
      %3062 = vmatprep.mubr.f32.mxu0 0.0
      %3063 = vmatmul.mubr.f32.gmra.mxu0 %v1444
      %v3064 = vpop.f32.mrf.mxu0
      %v3065 = vadd.f32 0.0, %v3064
      %v3066 = vpop.f32.mrf.mxu0
      %3067 = vmatprep.mubr.f32.mxu0 0.0
      %3068 = vmatmul.mubr.f32.gmra.mxu0 %v1447
      %v3069 = vpop.f32.mrf.mxu0
      %v3070 = vadd.f32 0.0, %v3069
      %v3071 = vpop.f32.mrf.mxu0
      %3072 = vmatprep.mubr.f32.mxu0 0.0
      %3073 = vmatmul.mubr.f32.gmra.mxu0 %v1450
      %v3074 = vpop.f32.mrf.mxu0
      %v3075 = vadd.f32 0.0, %v3074
      %v3076 = vpop.f32.mrf.mxu0
      %3077 = vmatprep.mubr.f32.mxu0 0.0
      %3078 = vmatmul.mubr.f32.gmra.mxu0 %v1453
      %v3079 = vpop.f32.mrf.mxu0
      %v3080 = vadd.f32 0.0, %v3079
      %v3081 = vpop.f32.mrf.mxu0
      %3082 = vmatprep.mubr.f32.mxu0 0.0
      %3083 = vmatmul.mubr.f32.gmra.mxu0 %v1456
      %v3084 = vpop.f32.mrf.mxu0
      %v3085 = vadd.f32 0.0, %v3084
      %v3086 = vpop.f32.mrf.mxu0
      %3087 = vmatprep.mubr.f32.mxu0 0.0
      %3088 = vmatmul.mubr.f32.gmra.mxu0 %v1459
      %v3089 = vpop.f32.mrf.mxu0
      %v3090 = vadd.f32 0.0, %v3089
      %v3091 = vpop.f32.mrf.mxu0
      %3092 = vmatprep.mubr.f32.mxu0 0.0
      %3093 = vmatmul.mubr.f32.gmra.mxu0 %v1462
      %v3094 = vpop.f32.mrf.mxu0
      %v3095 = vadd.f32 0.0, %v3094
      %v3096 = vpop.f32.mrf.mxu0
      %3097 = vmatprep.mubr.f32.mxu0 0.0
      %3098 = vmatmul.mubr.f32.gmra.mxu0 %v1465
      %v3099 = vpop.f32.mrf.mxu0
      %v3100 = vadd.f32 0.0, %v3099
      %v3101 = vpop.f32.mrf.mxu0
      %3102 = vmatprep.mubr.f32.mxu0 0.0
      %3103 = vmatmul.mubr.f32.gmra.mxu0 %v1468
      %v3104 = vpop.f32.mrf.mxu0
      %v3105 = vadd.f32 0.0, %v3104
      %v3106 = vpop.f32.mrf.mxu0
      %3107 = vmatprep.mubr.f32.mxu0 0.0
      %3108 = vmatmul.mubr.f32.gmra.mxu0 %v1471
      %v3109 = vpop.f32.mrf.mxu0
      %v3110 = vadd.f32 0.0, %v3109
      %v3111 = vpop.f32.mrf.mxu0
      %3112 = vmatprep.mubr.f32.mxu0 0.0
      %3113 = vmatmul.mubr.f32.gmra.mxu0 %v1474
      %v3114 = vpop.f32.mrf.mxu0
      %v3115 = vadd.f32 0.0, %v3114
      %v3116 = vpop.f32.mrf.mxu0
      %3117 = vmatprep.mubr.f32.mxu0 0.0
      %3118 = vmatmul.mubr.f32.gmra.mxu0 %v1477
      %v3119 = vpop.f32.mrf.mxu0
      %v3120 = vadd.f32 0.0, %v3119
      %v3121 = vpop.f32.mrf.mxu0
      %3122 = vmatprep.mubr.f32.mxu0 0.0
      %3123 = vmatmul.mubr.f32.gmra.mxu0 %v1480
      %v3124 = vpop.f32.mrf.mxu0
      %v3125 = vadd.f32 0.0, %v3124
      %v3126 = vpop.f32.mrf.mxu0
      %3127 = vmatprep.mubr.f32.mxu0 0.0
      %3128 = vmatmul.mubr.f32.gmra.mxu0 %v1483
      %v3129 = vpop.f32.mrf.mxu0
      %v3130 = vadd.f32 0.0, %v3129
      %v3131 = vpop.f32.mrf.mxu0
      %3132 = vmatprep.mubr.f32.mxu0 0.0
      %3133 = vmatmul.mubr.f32.gmra.mxu0 %v1486
      %v3134 = vpop.f32.mrf.mxu0
      %v3135 = vadd.f32 0.0, %v3134
      %v3136 = vpop.f32.mrf.mxu0
      %3137 = vmatprep.mubr.f32.mxu0 0.0
      %3138 = vmatmul.mubr.f32.gmra.mxu0 %v1489
      %v3139 = vpop.f32.mrf.mxu0
      %v3140 = vadd.f32 0.0, %v3139
      %v3141 = vpop.f32.mrf.mxu0
      %3142 = vdwg.mxu0
      %v3143 = vadd.f32 %v2979, %v3065
      %v3144 = vadd.f32 %v2980, %v3070
      %v3145 = vadd.f32 %v2981, %v3075
      %v3146 = vadd.f32 %v2982, %v3080
      %v3147 = vadd.f32 %v2983, %v3085
      %v3148 = vadd.f32 %v2984, %v3090
      %v3149 = vadd.f32 %v2985, %v3095
      %v3150 = vadd.f32 %v2986, %v3100
      %v3151 = vadd.f32 %v2987, %v3105
      %v3152 = vadd.f32 %v2988, %v3110
      %v3153 = vadd.f32 %v2989, %v3115
      %v3154 = vadd.f32 %v2990, %v3120
      %v3155 = vadd.f32 %v2991, %v3125
      %v3156 = vadd.f32 %v2992, %v3130
      %v3157 = vadd.f32 %v2993, %v3135
      %v3158 = vadd.f32 %v2994, %v3140
      %v3159 = vmax.f32 %v3143, 0.0
      %v3160 = vmax.f32 %v3144, 0.0
      %v3161 = vmax.f32 %v3145, 0.0
      %v3162 = vmax.f32 %v3146, 0.0
      %v3163 = vmax.f32 %v3147, 0.0
      %v3164 = vmax.f32 %v3148, 0.0
      %v3165 = vmax.f32 %v3149, 0.0
      %v3166 = vmax.f32 %v3150, 0.0
      %v3167 = vmax.f32 %v3151, 0.0
      %v3168 = vmax.f32 %v3152, 0.0
      %v3169 = vmax.f32 %v3153, 0.0
      %v3170 = vmax.f32 %v3154, 0.0
      %v3171 = vmax.f32 %v3155, 0.0
      %v3172 = vmax.f32 %v3156, 0.0
      %v3173 = vmax.f32 %v3157, 0.0
      %v3174 = vmax.f32 %v3158, 0.0
      %v3175 = vlaneseq
      %v3176 = vshrl.u32 %v3175, 7
      %v3177 = vsub.s32 4, %v3176
      %v3178 = vrot.slane %v306, %v3177
      %v3179 = vmul.f32 %v3159, %v3178
      %v3180 = vmul.f32 %v3160, %v3178
      %v3181 = vmul.f32 %v3161, %v3178
      %v3182 = vmul.f32 %v3162, %v3178
      %v3183 = vmul.f32 %v3163, %v3178
      %v3184 = vmul.f32 %v3164, %v3178
      %v3185 = vmul.f32 %v3165, %v3178
      %v3186 = vmul.f32 %v3166, %v3178
      %v3187 = vmul.f32 %v3167, %v3178
      %v3188 = vmul.f32 %v3168, %v3178
      %v3189 = vmul.f32 %v3169, %v3178
      %v3190 = vmul.f32 %v3170, %v3178
      %v3191 = vmul.f32 %v3171, %v3178
      %v3192 = vmul.f32 %v3172, %v3178
      %v3193 = vmul.f32 %v3173, %v3178
      %v3194 = vmul.f32 %v3174, %v3178
      %v3195 = vsel %vm1009, %v3179, 0.0
      %3196 = vadd.xlane.f32.xlu0 %v3195
      %v3197 = vpop.xlane.xlu0 %3196
      %v3198 = vsel %vm1009, %v3180, 0.0
      %3199 = vadd.xlane.f32.xlu0 %v3198
      %v3200 = vpop.xlane.xlu0 %3199
      %v3201 = vsel %vm1009, %v3181, 0.0
      %3202 = vadd.xlane.f32.xlu0 %v3201
      %v3203 = vpop.xlane.xlu0 %3202
      %v3204 = vsel %vm1009, %v3182, 0.0
      %3205 = vadd.xlane.f32.xlu0 %v3204
      %v3206 = vpop.xlane.xlu0 %3205
      %v3207 = vsel %vm1009, %v3183, 0.0
      %3208 = vadd.xlane.f32.xlu0 %v3207
      %v3209 = vpop.xlane.xlu0 %3208
      %v3210 = vsel %vm1009, %v3184, 0.0
      %3211 = vadd.xlane.f32.xlu0 %v3210
      %v3212 = vpop.xlane.xlu0 %3211
      %v3213 = vsel %vm1009, %v3185, 0.0
      %3214 = vadd.xlane.f32.xlu0 %v3213
      %v3215 = vpop.xlane.xlu0 %3214
      %v3216 = vsel %vm1009, %v3186, 0.0
      %3217 = vadd.xlane.f32.xlu0 %v3216
      %v3218 = vpop.xlane.xlu0 %3217
      %v3219 = vsel %vm1009, %v3187, 0.0
      %3220 = vadd.xlane.f32.xlu0 %v3219
      %v3221 = vpop.xlane.xlu0 %3220
      %v3222 = vsel %vm1009, %v3188, 0.0
      %3223 = vadd.xlane.f32.xlu0 %v3222
      %v3224 = vpop.xlane.xlu0 %3223
      %v3225 = vsel %vm1009, %v3189, 0.0
      %3226 = vadd.xlane.f32.xlu0 %v3225
      %v3227 = vpop.xlane.xlu0 %3226
      %v3228 = vsel %vm1009, %v3190, 0.0
      %3229 = vadd.xlane.f32.xlu0 %v3228
      %v3230 = vpop.xlane.xlu0 %3229
      %v3231 = vsel %vm1009, %v3191, 0.0
      %3232 = vadd.xlane.f32.xlu0 %v3231
      %v3233 = vpop.xlane.xlu0 %3232
      %v3234 = vsel %vm1009, %v3192, 0.0
      %3235 = vadd.xlane.f32.xlu0 %v3234
      %v3236 = vpop.xlane.xlu0 %3235
      %v3237 = vsel %vm1009, %v3193, 0.0
      %3238 = vadd.xlane.f32.xlu0 %v3237
      %v3239 = vpop.xlane.xlu0 %3238
      %v3240 = vsel %vm1009, %v3194, 0.0
      %3241 = vadd.xlane.f32.xlu0 %v3240
      %v3242 = vpop.xlane.xlu0 %3241
      %v3243 = vsel %vm408, %v3197, -1e+30
      %v3244 = vsel %vm409, %v3200, -1e+30
      %v3245 = vsel %vm410, %v3203, -1e+30
      %v3246 = vsel %vm411, %v3206, -1e+30
      %v3247 = vsel %vm412, %v3209, -1e+30
      %v3248 = vsel %vm413, %v3212, -1e+30
      %v3249 = vsel %vm414, %v3215, -1e+30
      %v3250 = vsel %vm415, %v3218, -1e+30
      %v3251 = vsel %vm416, %v3221, -1e+30
      %v3252 = vsel %vm417, %v3224, -1e+30
      %v3253 = vsel %vm418, %v3227, -1e+30
      %v3254 = vsel %vm419, %v3230, -1e+30
      %v3255 = vsel %vm420, %v3233, -1e+30
      %v3256 = vsel %vm421, %v3236, -1e+30
      %v3257 = vsel %vm422, %v3239, -1e+30
      %v3258 = vsel %vm423, %v3242, -1e+30
      %v3259 = vsel %vm1090, %v3243, -inf
      %v3260 = vsel %vm1090, %v3244, -inf
      %v3261 = vsel %vm1090, %v3245, -inf
      %v3262 = vsel %vm1090, %v3246, -inf
      %v3263 = vsel %vm1090, %v3247, -inf
      %v3264 = vmax.f32 %v3259, %v3263
      %v3265 = vsel %vm1090, %v3248, -inf
      %v3266 = vmax.f32 %v3260, %v3265
      %v3267 = vsel %vm1090, %v3249, -inf
      %v3268 = vmax.f32 %v3261, %v3267
      %v3269 = vsel %vm1090, %v3250, -inf
      %v3270 = vmax.f32 %v3262, %v3269
      %v3271 = vsel %vm1090, %v3251, -inf
      %v3272 = vmax.f32 %v3264, %v3271
      %v3273 = vsel %vm1090, %v3252, -inf
      %v3274 = vmax.f32 %v3266, %v3273
      %v3275 = vsel %vm1090, %v3253, -inf
      %v3276 = vmax.f32 %v3268, %v3275
      %v3277 = vsel %vm1090, %v3254, -inf
      %v3278 = vmax.f32 %v3270, %v3277
      %v3279 = vsel %vm1090, %v3255, -inf
      %v3280 = vmax.f32 %v3272, %v3279
      %v3281 = vsel %vm1090, %v3256, -inf
      %v3282 = vmax.f32 %v3274, %v3281
      %v3283 = vsel %vm1090, %v3257, -inf
      %v3284 = vmax.f32 %v3276, %v3283
      %v3285 = vsel %vm1090, %v3258, -inf
      %v3286 = vmax.f32 %v3278, %v3285
      %v3287 = vmax.f32 %v3280, %v3282
      %v3288 = vmax.f32 %v3284, %v3286
      %v3289 = vmax.f32 %v3287, %v3288
      %v3290 = vrot.slane %v3289, 4
      %v3291 = vmax.f32 %v3289, %v3290
      %v3292 = vrot.slane %v3291, 2
      %v3293 = vmax.f32 %v3291, %v3292
      %v3294 = vrot.slane %v3293, 1
      %v3295 = vmax.f32 %v3293, %v3294
      %v3296 = vsub.f32 %v3243, %v3295
      %v3297 = vsub.f32 %v3244, %v3295
      %v3298 = vsub.f32 %v3245, %v3295
      %v3299 = vsub.f32 %v3246, %v3295
      %v3300 = vsub.f32 %v3247, %v3295
      %v3301 = vsub.f32 %v3248, %v3295
      %v3302 = vsub.f32 %v3249, %v3295
      %v3303 = vsub.f32 %v3250, %v3295
      %v3304 = vsub.f32 %v3251, %v3295
      %v3305 = vsub.f32 %v3252, %v3295
      %v3306 = vsub.f32 %v3253, %v3295
      %v3307 = vsub.f32 %v3254, %v3295
      %v3308 = vsub.f32 %v3255, %v3295
      %v3309 = vsub.f32 %v3256, %v3295
      %v3310 = vsub.f32 %v3257, %v3295
      %v3311 = vsub.f32 %v3258, %v3295
      %v3312 = vmul.f32 %v3296, 1.442695
      %v3313 = vpow.pop %v3312
      %v3314 = vmul.f32 %v3297, 1.442695
      %v3315 = vpow.pop %v3314
      %v3316 = vmul.f32 %v3298, 1.442695
      %v3317 = vpow.pop %v3316
      %v3318 = vmul.f32 %v3299, 1.442695
      %v3319 = vpow.pop %v3318
      %v3320 = vmul.f32 %v3300, 1.442695
      %v3321 = vpow.pop %v3320
      %v3322 = vmul.f32 %v3301, 1.442695
      %v3323 = vpow.pop %v3322
      %v3324 = vmul.f32 %v3302, 1.442695
      %v3325 = vpow.pop %v3324
      %v3326 = vmul.f32 %v3303, 1.442695
      %v3327 = vpow.pop %v3326
      %v3328 = vmul.f32 %v3304, 1.442695
      %v3329 = vpow.pop %v3328
      %v3330 = vmul.f32 %v3305, 1.442695
      %v3331 = vpow.pop %v3330
      %v3332 = vmul.f32 %v3306, 1.442695
      %v3333 = vpow.pop %v3332
      %v3334 = vmul.f32 %v3307, 1.442695
      %v3335 = vpow.pop %v3334
      %v3336 = vmul.f32 %v3308, 1.442695
      %v3337 = vpow.pop %v3336
      %v3338 = vmul.f32 %v3309, 1.442695
      %v3339 = vpow.pop %v3338
      %v3340 = vmul.f32 %v3310, 1.442695
      %v3341 = vpow.pop %v3340
      %v3342 = vmul.f32 %v3311, 1.442695
      %v3343 = vpow.pop %v3342
      %v3344 = vmul.f32 %v3313, %v440
      %v3345 = vmul.f32 %v3315, %v441
      %v3346 = vmul.f32 %v3317, %v442
      %v3347 = vmul.f32 %v3319, %v443
      %v3348 = vmul.f32 %v3321, %v444
      %v3349 = vmul.f32 %v3323, %v445
      %v3350 = vmul.f32 %v3325, %v446
      %v3351 = vmul.f32 %v3327, %v447
      %v3352 = vmul.f32 %v3329, %v448
      %v3353 = vmul.f32 %v3331, %v449
      %v3354 = vmul.f32 %v3333, %v450
      %v3355 = vmul.f32 %v3335, %v451
      %v3356 = vmul.f32 %v3337, %v452
      %v3357 = vmul.f32 %v3339, %v453
      %v3358 = vmul.f32 %v3341, %v454
      %v3359 = vmul.f32 %v3343, %v455
      %v3360 = vsel %vm1090, %v3344, 0.0
      %v3361 = vsel %vm1090, %v3345, 0.0
      %v3362 = vadd.f32 %v3360, %v3361
      %v3363 = vsel %vm1090, %v3346, 0.0
      %v3364 = vadd.f32 %v3362, %v3363
      %v3365 = vsel %vm1090, %v3347, 0.0
      %v3366 = vadd.f32 %v3364, %v3365
      %v3367 = vsel %vm1090, %v3348, 0.0
      %v3368 = vadd.f32 %v3366, %v3367
      %v3369 = vsel %vm1090, %v3349, 0.0
      %v3370 = vadd.f32 %v3368, %v3369
      %v3371 = vsel %vm1090, %v3350, 0.0
      %v3372 = vadd.f32 %v3370, %v3371
      %v3373 = vsel %vm1090, %v3351, 0.0
      %v3374 = vadd.f32 %v3372, %v3373
      %v3375 = vsel %vm1090, %v3352, 0.0
      %v3376 = vadd.f32 %v3374, %v3375
      %v3377 = vsel %vm1090, %v3353, 0.0
      %v3378 = vadd.f32 %v3376, %v3377
      %v3379 = vsel %vm1090, %v3354, 0.0
      %v3380 = vadd.f32 %v3378, %v3379
      %v3381 = vsel %vm1090, %v3355, 0.0
      %v3382 = vadd.f32 %v3380, %v3381
      %v3383 = vsel %vm1090, %v3356, 0.0
      %v3384 = vadd.f32 %v3382, %v3383
      %v3385 = vsel %vm1090, %v3357, 0.0
      %v3386 = vadd.f32 %v3384, %v3385
      %v3387 = vsel %vm1090, %v3358, 0.0
      %v3388 = vadd.f32 %v3386, %v3387
      %v3389 = vsel %vm1090, %v3359, 0.0
      %v3390 = vadd.f32 %v3388, %v3389
      %v3391 = vrot.slane %v3390, 4
      %v3392 = vadd.f32 %v3390, %v3391
      %v3393 = vrot.slane %v3392, 2
      %v3394 = vadd.f32 %v3392, %v3393
      %v3395 = vrot.slane %v3394, 1
      %v3396 = vadd.f32 %v3394, %v3395
      %3397 = vadd.xlane.f32.xlu0 %v3360
      %v3398 = vpop.xlane.xlu0 %3397
      %3399 = vadd.xlane.f32.xlu0 %v3361
      %v3400 = vpop.xlane.xlu0 %3399
      %3401 = vadd.xlane.f32.xlu0 %v3363
      %v3402 = vpop.xlane.xlu0 %3401
      %3403 = vadd.xlane.f32.xlu0 %v3365
      %v3404 = vpop.xlane.xlu0 %3403
      %3405 = vadd.xlane.f32.xlu0 %v3367
      %v3406 = vpop.xlane.xlu0 %3405
      %3407 = vadd.xlane.f32.xlu0 %v3369
      %v3408 = vpop.xlane.xlu0 %3407
      %3409 = vadd.xlane.f32.xlu0 %v3371
      %v3410 = vpop.xlane.xlu0 %3409
      %3411 = vadd.xlane.f32.xlu0 %v3373
      %v3412 = vpop.xlane.xlu0 %3411
      %3413 = vadd.xlane.f32.xlu0 %v3375
      %v3414 = vpop.xlane.xlu0 %3413
      %3415 = vadd.xlane.f32.xlu0 %v3377
      %v3416 = vpop.xlane.xlu0 %3415
      %3417 = vadd.xlane.f32.xlu0 %v3379
      %v3418 = vpop.xlane.xlu0 %3417
      %3419 = vadd.xlane.f32.xlu0 %v3381
      %v3420 = vpop.xlane.xlu0 %3419
      %3421 = vadd.xlane.f32.xlu0 %v3383
      %v3422 = vpop.xlane.xlu0 %3421
      %3423 = vadd.xlane.f32.xlu0 %v3385
      %v3424 = vpop.xlane.xlu0 %3423
      %3425 = vadd.xlane.f32.xlu0 %v3387
      %v3426 = vpop.xlane.xlu0 %3425
      %3427 = vadd.xlane.f32.xlu0 %v3389
      %v3428 = vpop.xlane.xlu0 %3427
      %v3429 = vmul.f32 %v440, %v3396
      %v3430 = vmul.f32 %v441, %v3396
      %v3431 = vmul.f32 %v442, %v3396
      %v3432 = vmul.f32 %v443, %v3396
      %v3433 = vmul.f32 %v444, %v3396
      %v3434 = vmul.f32 %v445, %v3396
      %v3435 = vmul.f32 %v446, %v3396
      %v3436 = vmul.f32 %v447, %v3396
      %v3437 = vmul.f32 %v448, %v3396
      %v3438 = vmul.f32 %v449, %v3396
      %v3439 = vmul.f32 %v450, %v3396
      %v3440 = vmul.f32 %v451, %v3396
      %v3441 = vmul.f32 %v452, %v3396
      %v3442 = vmul.f32 %v453, %v3396
      %v3443 = vmul.f32 %v454, %v3396
      %v3444 = vmul.f32 %v455, %v3396
      %v3445 = vsel %vm1090, %v3429, 0.0
      %3446 = vadd.xlane.f32.xlu0 %v3445
      %v3447 = vpop.xlane.xlu0 %3446
      %v3448 = vsel %vm1090, %v3430, 0.0
      %3449 = vadd.xlane.f32.xlu0 %v3448
      %v3450 = vpop.xlane.xlu0 %3449
      %v3451 = vsel %vm1090, %v3431, 0.0
      %3452 = vadd.xlane.f32.xlu0 %v3451
      %v3453 = vpop.xlane.xlu0 %3452
      %v3454 = vsel %vm1090, %v3432, 0.0
      %3455 = vadd.xlane.f32.xlu0 %v3454
      %v3456 = vpop.xlane.xlu0 %3455
      %v3457 = vsel %vm1090, %v3433, 0.0
      %3458 = vadd.xlane.f32.xlu0 %v3457
      %v3459 = vpop.xlane.xlu0 %3458
      %v3460 = vsel %vm1090, %v3434, 0.0
      %3461 = vadd.xlane.f32.xlu0 %v3460
      %v3462 = vpop.xlane.xlu0 %3461
      %v3463 = vsel %vm1090, %v3435, 0.0
      %3464 = vadd.xlane.f32.xlu0 %v3463
      %v3465 = vpop.xlane.xlu0 %3464
      %v3466 = vsel %vm1090, %v3436, 0.0
      %3467 = vadd.xlane.f32.xlu0 %v3466
      %v3468 = vpop.xlane.xlu0 %3467
      %v3469 = vsel %vm1090, %v3437, 0.0
      %3470 = vadd.xlane.f32.xlu0 %v3469
      %v3471 = vpop.xlane.xlu0 %3470
      %v3472 = vsel %vm1090, %v3438, 0.0
      %3473 = vadd.xlane.f32.xlu0 %v3472
      %v3474 = vpop.xlane.xlu0 %3473
      %v3475 = vsel %vm1090, %v3439, 0.0
      %3476 = vadd.xlane.f32.xlu0 %v3475
      %v3477 = vpop.xlane.xlu0 %3476
      %v3478 = vsel %vm1090, %v3440, 0.0
      %3479 = vadd.xlane.f32.xlu0 %v3478
      %v3480 = vpop.xlane.xlu0 %3479
      %v3481 = vsel %vm1090, %v3441, 0.0
      %3482 = vadd.xlane.f32.xlu0 %v3481
      %v3483 = vpop.xlane.xlu0 %3482
      %v3484 = vsel %vm1090, %v3442, 0.0
      %3485 = vadd.xlane.f32.xlu0 %v3484
      %v3486 = vpop.xlane.xlu0 %3485
      %v3487 = vsel %vm1090, %v3443, 0.0
      %3488 = vadd.xlane.f32.xlu0 %v3487
      %v3489 = vpop.xlane.xlu0 %3488
      %v3490 = vsel %vm1090, %v3444, 0.0
      %3491 = vadd.xlane.f32.xlu0 %v3490
      %v3492 = vpop.xlane.xlu0 %3491
      %v3493 = vrcp.pop %v3447
      %v3494 = vmul.f32 %v3398, %v3493
      %v3495 = vrcp.pop %v3450
      %v3496 = vmul.f32 %v3400, %v3495
      %v3497 = vrcp.pop %v3453
      %v3498 = vmul.f32 %v3402, %v3497
      %v3499 = vrcp.pop %v3456
      %v3500 = vmul.f32 %v3404, %v3499
      %v3501 = vrcp.pop %v3459
      %v3502 = vmul.f32 %v3406, %v3501
      %v3503 = vrcp.pop %v3462
      %v3504 = vmul.f32 %v3408, %v3503
      %v3505 = vrcp.pop %v3465
      %v3506 = vmul.f32 %v3410, %v3505
      %v3507 = vrcp.pop %v3468
      %v3508 = vmul.f32 %v3412, %v3507
      %v3509 = vrcp.pop %v3471
      %v3510 = vmul.f32 %v3414, %v3509
      %v3511 = vrcp.pop %v3474
      %v3512 = vmul.f32 %v3416, %v3511
      %v3513 = vrcp.pop %v3477
      %v3514 = vmul.f32 %v3418, %v3513
      %v3515 = vrcp.pop %v3480
      %v3516 = vmul.f32 %v3420, %v3515
      %v3517 = vrcp.pop %v3483
      %v3518 = vmul.f32 %v3422, %v3517
      %v3519 = vrcp.pop %v3486
      %v3520 = vmul.f32 %v3424, %v3519
      %v3521 = vrcp.pop %v3489
      %v3522 = vmul.f32 %v3426, %v3521
      %v3523 = vrcp.pop %v3492
      %v3524 = vmul.f32 %v3428, %v3523
      %v3525 = vld [vmem:[%s4] sm:$0xff]
      %v3526 = vld [vmem:[%s4 + $0x8] sm:$0xff]
      %v3527 = vld [vmem:[%s4 + $0x10] sm:$0xff]
      %v3528 = vld [vmem:[%s4 + $0x18] sm:$0xff]
      %v3529 = vld [vmem:[%s4 + $0x20] sm:$0xff]
      %v3530 = vld [vmem:[%s4 + $0x28] sm:$0xff]
      %v3531 = vld [vmem:[%s4 + $0x30] sm:$0xff]
      %v3532 = vld [vmem:[%s4 + $0x38] sm:$0xff]
      %v3533 = vld [vmem:[%s4 + $0x40] sm:$0xff]
      %v3534 = vld [vmem:[%s4 + $0x48] sm:$0xff]
      %v3535 = vld [vmem:[%s4 + $0x50] sm:$0xff]
      %v3536 = vld [vmem:[%s4 + $0x58] sm:$0xff]
      %v3537 = vld [vmem:[%s4 + $0x60] sm:$0xff]
      %v3538 = vld [vmem:[%s4 + $0x68] sm:$0xff]
      %v3539 = vld [vmem:[%s4 + $0x70] sm:$0xff]
      %v3540 = vld [vmem:[%s4 + $0x78] sm:$0xff]
      %v3541 = vmul.f32 %v3494, %v3525
      %v3542 = vmul.f32 %v3496, %v3526
      %v3543 = vmul.f32 %v3498, %v3527
      %v3544 = vmul.f32 %v3500, %v3528
      %v3545 = vmul.f32 %v3502, %v3529
      %v3546 = vmul.f32 %v3504, %v3530
      %v3547 = vmul.f32 %v3506, %v3531
      %v3548 = vmul.f32 %v3508, %v3532
      %v3549 = vmul.f32 %v3510, %v3533
      %v3550 = vmul.f32 %v3512, %v3534
      %v3551 = vmul.f32 %v3514, %v3535
      %v3552 = vmul.f32 %v3516, %v3536
      %v3553 = vmul.f32 %v3518, %v3537
      %v3554 = vmul.f32 %v3520, %v3538
      %v3555 = vmul.f32 %v3522, %v3539
      %v3556 = vmul.f32 %v3524, %v3540
      %3557 = vmatprep.subr.mxu0 0.0
      %3558 = vmatpush1.msra.mxu0 %v3556
      %3559 = vmatprep.subr.mxu0 0.0
      %3560 = vmatpush1.msra.mxu0 %v3555
      %3561 = vmatprep.subr.mxu0 0.0
      %3562 = vmatpush1.msra.mxu0 %v3554
      %3563 = vmatprep.subr.mxu0 0.0
      %3564 = vmatpush1.msra.mxu0 %v3553
      %3565 = vmatprep.subr.mxu0 0.0
      %3566 = vmatpush1.msra.mxu0 %v3552
      %3567 = vmatprep.subr.mxu0 0.0
      %3568 = vmatpush1.msra.mxu0 %v3551
      %3569 = vmatprep.subr.mxu0 0.0
      %3570 = vmatpush1.msra.mxu0 %v3550
      %3571 = vmatprep.subr.mxu0 0.0
      %3572 = vmatpush1.msra.mxu0 %v3549
      %3573 = vmatprep.subr.mxu0 0.0
      %3574 = vmatpush1.msra.mxu0 %v3548
      %3575 = vmatprep.subr.mxu0 0.0
      %3576 = vmatpush1.msra.mxu0 %v3547
      %3577 = vmatprep.subr.mxu0 0.0
      %3578 = vmatpush1.msra.mxu0 %v3546
      %3579 = vmatprep.subr.mxu0 0.0
      %3580 = vmatpush1.msra.mxu0 %v3545
      %3581 = vmatprep.subr.mxu0 0.0
      %3582 = vmatpush1.msra.mxu0 %v3544
      %3583 = vmatprep.subr.mxu0 0.0
      %3584 = vmatpush1.msra.mxu0 %v3543
      %3585 = vmatprep.subr.mxu0 0.0
      %3586 = vmatpush1.msra.mxu0 %v3542
      %3587 = vmatprep.subr.mxu0 0.0
      %3588 = vmatpush1.msra.mxu0 %v3541
      %3589 = vmatprep.subr.mxu0 0.0
      %3590 = vmatpush2.msra.mxu0 0.0
      %3591 = vmatprep.subr.mxu0 0.0
      %3592 = vmatpush2.msra.mxu0 0.0
      %3593 = vmatprep.subr.mxu0 0.0
      %3594 = vmatpush2.msra.mxu0 0.0
      %3595 = vmatprep.subr.mxu0 0.0
      %3596 = vmatpush2.msra.mxu0 0.0
      %3597 = vmatprep.subr.mxu0 0.0
      %3598 = vmatpush2.msra.mxu0 0.0
      %3599 = vmatprep.subr.mxu0 0.0
      %3600 = vmatpush2.msra.mxu0 0.0
      %3601 = vmatprep.subr.mxu0 0.0
      %3602 = vmatpush2.msra.mxu0 0.0
      %3603 = vmatprep.subr.mxu0 0.0
      %3604 = vmatpush2.msra.mxu0 0.0
      %3605 = vmatprep.subr.mxu0 0.0
      %3606 = vmatpush2.msra.mxu0 0.0
      %3607 = vmatprep.subr.mxu0 0.0
      %3608 = vmatpush2.msra.mxu0 0.0
      %3609 = vmatprep.subr.mxu0 0.0
      %3610 = vmatpush2.msra.mxu0 0.0
      %3611 = vmatprep.subr.mxu0 0.0
      %3612 = vmatpush2.msra.mxu0 0.0
      %3613 = vmatprep.subr.mxu0 0.0
      %3614 = vmatpush2.msra.mxu0 0.0
      %3615 = vmatprep.subr.mxu0 0.0
      %3616 = vmatpush2.msra.mxu0 0.0
      %3617 = vmatprep.subr.mxu0 0.0
      %3618 = vmatpush2.msra.mxu0 0.0
      %3619 = vmatprep.subr.mxu0 0.0
      %3620 = vmatpush2.msra.mxu0 0.0
      %3621 = vmatprep.mubr.f32.mxu0 0.0
      %3622 = vmatmul.mubr.f32.gmra.mxu0 %v462
      %v3623 = vpop.f32.mrf.mxu0
      %v3624 = vadd.f32 0.0, %v3623
      %v3625 = vpop.f32.mrf.mxu0
      %3626 = vdwg.mxu0
      %v3627 = vsel %vm1009, %v1440, 0
      %3629 = vmatprep.subr.mxu0 0.0
      %3630 = vmatpush1.msra.mxu0 0.0
      %3631 = vmatprep.subr.mxu0 0.0
      %3632 = vmatpush1.msra.mxu0 0.0
      %3633 = vmatprep.subr.mxu0 0.0
      %3634 = vmatpush1.msra.mxu0 0.0
      %3635 = vmatprep.subr.mxu0 0.0
      %3636 = vmatpush1.msra.mxu0 0.0
      %3637 = vmatprep.subr.mxu0 0.0
      %3638 = vmatpush1.msra.mxu0 0.0
      %3639 = vmatprep.subr.mxu0 0.0
      %3640 = vmatpush1.msra.mxu0 0.0
      %3641 = vmatprep.subr.mxu0 0.0
      %3642 = vmatpush1.msra.mxu0 0.0
      %3643 = vmatprep.subr.mxu0 0.0
      %3644 = vmatpush1.msra.mxu0 0.0
      %3645 = vmatprep.subr.mxu0 0.0
      %3646 = vmatpush1.msra.mxu0 0.0
      %3647 = vmatprep.subr.mxu0 0.0
      %3648 = vmatpush1.msra.mxu0 0.0
      %3649 = vmatprep.subr.mxu0 0.0
      %3650 = vmatpush1.msra.mxu0 0.0
      %3651 = vmatprep.subr.mxu0 0.0
      %3652 = vmatpush1.msra.mxu0 0.0
      %3653 = vmatprep.subr.mxu0 0.0
      %3654 = vmatpush1.msra.mxu0 %v354
      %3655 = vmatprep.subr.mxu0 0.0
      %3656 = vmatpush1.msra.mxu0 %v353
      %3657 = vmatprep.subr.mxu0 0.0
      %3658 = vmatpush1.msra.mxu0 %v352
      %3659 = vmatprep.subr.mxu0 0.0
      %3660 = vmatpush1.msra.mxu0 %v351
      %3661 = vmatprep.subr.mxu0 0.0
      %3662 = vmatpush2.msra.mxu0 0.0
      %3663 = vmatprep.subr.mxu0 0.0
      %3664 = vmatpush2.msra.mxu0 0.0
      %3665 = vmatprep.subr.mxu0 0.0
      %3666 = vmatpush2.msra.mxu0 0.0
      %3667 = vmatprep.subr.mxu0 0.0
      %3668 = vmatpush2.msra.mxu0 0.0
      %3669 = vmatprep.subr.mxu0 0.0
      %3670 = vmatpush2.msra.mxu0 0.0
      %3671 = vmatprep.subr.mxu0 0.0
      %3672 = vmatpush2.msra.mxu0 0.0
      %3673 = vmatprep.subr.mxu0 0.0
      %3674 = vmatpush2.msra.mxu0 0.0
      %3675 = vmatprep.subr.mxu0 0.0
      %3676 = vmatpush2.msra.mxu0 0.0
      %3677 = vmatprep.subr.mxu0 0.0
      %3678 = vmatpush2.msra.mxu0 0.0
      %3679 = vmatprep.subr.mxu0 0.0
      %3680 = vmatpush2.msra.mxu0 0.0
      %3681 = vmatprep.subr.mxu0 0.0
      %3682 = vmatpush2.msra.mxu0 0.0
      %3683 = vmatprep.subr.mxu0 0.0
      %3684 = vmatpush2.msra.mxu0 0.0
      %3685 = vmatprep.subr.mxu0 0.0
      %3686 = vmatpush2.msra.mxu0 0.0
      %3687 = vmatprep.subr.mxu0 0.0
      %3688 = vmatpush2.msra.mxu0 0.0
      %3689 = vmatprep.subr.mxu0 0.0
      %3690 = vmatpush2.msra.mxu0 0.0
      %3691 = vmatprep.subr.mxu0 0.0
      %3692 = vmatpush2.msra.mxu0 0.0
      %3693 = vmatprep.mubr.f32.mxu0 0.0
      %3694 = vmatmul.mubr.f32.gmra.mxu0 %v3627
      %v3695 = vpop.f32.mrf.mxu0
      %v3696 = vadd.f32 0.0, %v3695
      %v3697 = vpop.f32.mrf.mxu0
      %3698 = vdwg.mxu0
      %v3699 = vmax.f32 %v3696, 0.0
      %v3700 = vld [vmem:[%s6] sm:$0xff]
      %v3701 = vld [vmem:[%s6 + $0x8] sm:$0xff]
      %v3702 = vld [vmem:[%s6 + $0x10] sm:$0xff]
      %v3703 = vld [vmem:[%s6 + $0x18] sm:$0xff]
      %v3704 = vlaneseq
      %v3705 = vshrl.u32 %v3704, 7
      %v3706 = vsub.s32 5, %v3705
      %v3707 = vrot.slane %v306, %v3706
      %v3709 = vsel %vm1009, %v3699, 0
      %3711 = vmatprep.subr.mxu0 0.0
      %3712 = vmatpush1.msra.mxu0 0.0
      %3713 = vmatprep.subr.mxu0 0.0
      %3714 = vmatpush1.msra.mxu0 0.0
      %3715 = vmatprep.subr.mxu0 0.0
      %3716 = vmatpush1.msra.mxu0 0.0
      %3717 = vmatprep.subr.mxu0 0.0
      %3718 = vmatpush1.msra.mxu0 0.0
      %3719 = vmatprep.subr.mxu0 0.0
      %3720 = vmatpush1.msra.mxu0 0.0
      %3721 = vmatprep.subr.mxu0 0.0
      %3722 = vmatpush1.msra.mxu0 0.0
      %3723 = vmatprep.subr.mxu0 0.0
      %3724 = vmatpush1.msra.mxu0 0.0
      %3725 = vmatprep.subr.mxu0 0.0
      %3726 = vmatpush1.msra.mxu0 0.0
      %3727 = vmatprep.subr.mxu0 0.0
      %3728 = vmatpush1.msra.mxu0 0.0
      %3729 = vmatprep.subr.mxu0 0.0
      %3730 = vmatpush1.msra.mxu0 0.0
      %3731 = vmatprep.subr.mxu0 0.0
      %3732 = vmatpush1.msra.mxu0 0.0
      %3733 = vmatprep.subr.mxu0 0.0
      %3734 = vmatpush1.msra.mxu0 0.0
      %3735 = vmatprep.subr.mxu0 0.0
      %3736 = vmatpush1.msra.mxu0 %v3703
      %3737 = vmatprep.subr.mxu0 0.0
      %3738 = vmatpush1.msra.mxu0 %v3702
      %3739 = vmatprep.subr.mxu0 0.0
      %3740 = vmatpush1.msra.mxu0 %v3701
      %3741 = vmatprep.subr.mxu0 0.0
      %3742 = vmatpush1.msra.mxu0 %v3700
      %3743 = vmatprep.subr.mxu0 0.0
      %3744 = vmatpush2.msra.mxu0 0.0
      %3745 = vmatprep.subr.mxu0 0.0
      %3746 = vmatpush2.msra.mxu0 0.0
      %3747 = vmatprep.subr.mxu0 0.0
      %3748 = vmatpush2.msra.mxu0 0.0
      %3749 = vmatprep.subr.mxu0 0.0
      %3750 = vmatpush2.msra.mxu0 0.0
      %3751 = vmatprep.subr.mxu0 0.0
      %3752 = vmatpush2.msra.mxu0 0.0
      %3753 = vmatprep.subr.mxu0 0.0
      %3754 = vmatpush2.msra.mxu0 0.0
      %3755 = vmatprep.subr.mxu0 0.0
      %3756 = vmatpush2.msra.mxu0 0.0
      %3757 = vmatprep.subr.mxu0 0.0
      %3758 = vmatpush2.msra.mxu0 0.0
      %3759 = vmatprep.subr.mxu0 0.0
      %3760 = vmatpush2.msra.mxu0 0.0
      %3761 = vmatprep.subr.mxu0 0.0
      %3762 = vmatpush2.msra.mxu0 0.0
      %3763 = vmatprep.subr.mxu0 0.0
      %3764 = vmatpush2.msra.mxu0 0.0
      %3765 = vmatprep.subr.mxu0 0.0
      %3766 = vmatpush2.msra.mxu0 0.0
      %3767 = vmatprep.subr.mxu0 0.0
      %3768 = vmatpush2.msra.mxu0 0.0
      %3769 = vmatprep.subr.mxu0 0.0
      %3770 = vmatpush2.msra.mxu0 0.0
      %3771 = vmatprep.subr.mxu0 0.0
      %3772 = vmatpush2.msra.mxu0 0.0
      %3773 = vmatprep.subr.mxu0 0.0
      %3774 = vmatpush2.msra.mxu0 0.0
      %3775 = vmatprep.mubr.f32.mxu0 0.0
      %3776 = vmatmul.mubr.f32.gmra.mxu0 %v3709
      %v3777 = vpop.f32.mrf.mxu0
      %v3778 = vadd.f32 %v3707, %v3777
      %v3779 = vpop.f32.mrf.mxu0
      %3780 = vdwg.mxu0
      %v3781 = vsub.f32 0.0, %v3778
      %v3782 = vmul.f32 %v3781, 1.442695
      %v3783 = vpow.pop %v3782
      %v3784 = vadd.f32 %v3783, 1.0
      %v3785 = vrcp.pop %v3784
      %v3786 = vmul.f32 1.0, %v3785
      %3788 = vrot.lane.b32.xlu0 %v3786, 2
      %v3789 = vpop.permute.xlu0 %3788
      %v3791 = vsel %vm1090, %v3624, %v3789
      %vm3792 = vcmask 48128
      %v3793 = vsel %vm3792, %v3791, 0.0
      %vm3794 = vcmask 58368
      %3795 = vst.msk [vmem:[%s305] sm:$0x3] %vm3794, %v3793
      %p3796 = scmp.lt.s32.totalorder %s19, 1
      %s3797 = scalar_select %p3796, %s19, 1
      %s3798 = smul.addr %s3797, 2
      %s3799 = scalar_lea.vmem %s8, %s3798
      // Predicated region
      $region53: #{_oetr_forward.1} parent=51 // pred_check
        %p3800 = pneg %p210
      $region54: #{_oetr_forward.1} parent=51 // pred_check_branch
        %3802 = sbr.rel (%p3800) target = $region56
      $region55: #{_oetr_forward.1} parent=51 // pred_region
        _
      $region56: #{_oetr_forward.1} parent=51 // pred_fallthru
        _
    $region52: #{_oetr_forward.1} parent=5 // pred_fallthru
      _
    %p3803 = scmp.le.s32.totalorder 2, %s14
    // Predicated region
    $region57: #{_oetr_forward.1} parent=5 // pred_check
      %p3804 = pneg %p3803
    $region58: #{_oetr_forward.1} parent=5 // pred_check_branch
      %3806 = sbr.rel (%p3804) target = $region60
    $region59: #{_oetr_forward.1} parent=5 // pred_region
      %s3807 = ssub.s32 %s14, 2
      // Predicated region
      $region61: #{_oetr_forward.1} parent=59 // pred_check
        %p3808 = pneg %p216
      $region62: #{_oetr_forward.1} parent=59 // pred_check_branch
        %3810 = sbr.rel (%p3808) target = $region64
      $region63: #{_oetr_forward.1} parent=59 // pred_region
        %p3811 = scmp.lt.s32.totalorder %s20, 1
        %s3812 = scalar_select %p3811, %s20, 1
        %s3813 = smul.addr %s3812, 2
        %s3814 = scalar_lea.vmem %s8, %s3813
      $region64: #{_oetr_forward.1} parent=59 // pred_fallthru
        _
    $region60: #{_oetr_forward.1} parent=5 // pred_fallthru
      _
  $region6: #{_oetr_forward.1} parent=0 // loop_footer
    %s18 = sadd.s32 1, %s14
  $region7: #{_oetr_forward.1} parent=0 // loop_footer_branch
    %13 = sbr.rel target = $region3
  $region8: #{_oetr_forward.1} parent=0 // loop_exit
    _

</llo_original>
